<compile_context>
chip_gen: v7x
topology: tpu7x:2x2x1
jax: 0.10.0
libtpu: 0.0.40
codegen_flags: <defaults>
</compile_context>

<pallas_src>
import math
import numpy as np
import jax
import jax.numpy as jnp
from jax.experimental import pallas as pl
from jax.experimental.pallas import tpu as pltpu


# ---------------------------------------------------------------------------
# Fused forward: 2-layer LSTM + head, one pallas_call
# ---------------------------------------------------------------------------
def model_forward(pf, inputs_btf, seq_length):
    """inputs_btf: [B, T, F] float32 (batch_first); seq_length: [B] int, 1 <= len <= T."""
    B, T, F = inputs_btf.shape
    H = pf["whh0_bf"].shape[0]
    G = 4 * H
    C = pf["w3f"].shape[1]

    # Time-major + flattened: the hoisted projection becomes a single 2-D matmul and
    # each per-step slice is a contiguous, sublane-aligned block of B rows.  bf16 cast:
    # MXU operands only — accumulation and all VPU math remain f32.
    x2d = (jnp.transpose(inputs_btf, (1, 0, 2))
              .reshape(T * B, F).astype(jnp.bfloat16))
    lenm1 = (seq_length.astype(jnp.int32) - 1).reshape(B, 1)

    def kernel(x_ref, lenm1_ref,
               wih0_ref, b0_ref, whh0_ref,
               w1cat_ref, b1_ref,
               w1f_ref, b1f_ref, w2_ref, b2_ref, w3f_ref, b3f_ref,
               logits_ref, pred_ref, xp_ref):
        # ---- prologue: hoisted layer-0 input projection (one big MXU matmul, bf16 in / f32 acc) ----
        xp_ref[...] = (jnp.dot(x_ref[...], wih0_ref[...],
                               preferred_element_type=jnp.float32) + b0_ref[...])

        # Hoisted small loads / broadcasts (not re-emitted per unrolled step).
        b1b = jnp.broadcast_to(b1_ref[...], (B, G))
        lm1 = lenm1_ref[...]                               # [B, 1] int32

        def sigm(x):
            # Single-EUP sigmoid: sigmoid(x) == 0.5*tanh(0.5*x) + 0.5 (exact identity),
            # one EUP op instead of exp + reciprocal on the serial gate chain.
            return 0.5 * jnp.tanh(0.5 * x) + 0.5

        def cell(gates, c_prev):
            # PyTorch gate order: input, forget, cell(g), output.
            # H is a multiple of 128 -> each slice is a whole-vreg lane view.
            # All elementwise math in f32 (v5e VPU has no bf16).
            i = sigm(gates[:, 0 * H:1 * H])
            f = sigm(gates[:, 1 * H:2 * H])
            g = jnp.tanh(gates[:, 2 * H:3 * H])
            o = sigm(gates[:, 3 * H:4 * H])
            c = f * c_prev + i * g
            h = o * jnp.tanh(c)
            return h, c

        z0 = jnp.zeros((B, H), jnp.float32)
        h1, c1, h2, c2, out = z0, z0, z0, z0, z0
        # Fully unrolled recurrence (T is static & small): scheduler sees across steps;
        # state stays in vregs, weights stream from VMEM.
        for t in range(T):
            g1 = xp_ref[pl.ds(t * B, B), :] + jnp.dot(
                h1.astype(jnp.bfloat16), whh0_ref[...],
                preferred_element_type=jnp.float32)
            h1, c1 = cell(g1, c1)
            # Layer-1 gates: ONE fused [B, 2H] x [2H, 4H] dot (W_ih1;W_hh1 stacked
            # offline) instead of two dots + a VPU add on the critical path.
            h12 = jnp.concatenate([h1, h2], axis=-1).astype(jnp.bfloat16)
            g2 = jnp.dot(h12, w1cat_ref[...],
                         preferred_element_type=jnp.float32) + b1b
            h2, c2 = cell(g2, c2)
            out = jnp.where(lm1 == t, h2, out)             # keep h2 at t == seq_len-1

        # ---- fused head: BN1/BN2 pre-folded into fc1/fc3 (eval-mode running stats) ----
        # TODO(synk): train-mode Dropout2d / batch-stat BatchNorm not implemented (eval only).
        z1 = jnp.maximum(jnp.dot(out, w1f_ref[...],
                                 preferred_element_type=jnp.float32) + b1f_ref[...], 0.0)
        z2 = jnp.maximum(jnp.dot(z1, w2_ref[...],
                                 preferred_element_type=jnp.float32) + b2_ref[...], 0.0)
        logits = jnp.maximum(jnp.dot(z2, w3f_ref[...],
                                     preferred_element_type=jnp.float32) + b3f_ref[...], 0.0)
        logits_ref[...] = logits                           # C is genuinely tiny; masked store OK
        m = jnp.max(logits, axis=-1, keepdims=True)
        e = jnp.exp(logits - m)
        # approx reciprocal is fine at test tolerance; set approx=False for exact probs.
        pred_ref[...] = e * pl.reciprocal(jnp.sum(e, axis=-1, keepdims=True), approx=True)

    vmem = pl.BlockSpec(memory_space=pltpu.MemorySpace.VMEM)
    logits, pred = pl.pallas_call(
        kernel,
        out_shape=(jax.ShapeDtypeStruct((B, C), jnp.float32),
                   jax.ShapeDtypeStruct((B, C), jnp.float32)),
        in_specs=[vmem] * 13,
        out_specs=(vmem, vmem),
        scratch_shapes=[pltpu.VMEM((T * B, G), jnp.float32)],   # hoisted x-projection
    )(x2d, lenm1,
      pf["wih0_bf"], pf["b0"], pf["whh0_bf"],
      pf["w1cat_bf"], pf["b1"],
      pf["w1f"], pf["b1f"], pf["w2_t"], pf["bb2"], pf["w3f"], pf["b3f"])
    return logits, pred


# ---------------------------------------------------------------------------
# Offline parameter fusion (eval-mode BN folded into adjacent Linear layers;
# layer-1 LSTM weights stacked; MXU operands cast to bf16)
# ---------------------------------------------------------------------------
def fuse_params(p, eps=1e-5):
    s1 = p["g1"] * jax.lax.rsqrt(p["rv1"] + eps)                   # [1, H]
    w1f = p["w1_t"] * s1.reshape(-1, 1)                            # fc1(bn1(x))
    b1f = p["bb1"] + (p["be1"] - p["rm1"] * s1) @ p["w1_t"]
    s2 = p["g2"] * jax.lax.rsqrt(p["rv2"] + eps)                   # [1, temp]
    w3f = p["w3_t"] * s2.reshape(-1, 1)                            # fc3(bn2(z)) (dropout=id)
    b3f = p["bb3"] + (p["be2"] - p["rm2"] * s2) @ p["w3_t"]
    return {
        # LSTM MXU operands -> bf16 (f32 accumulation in-kernel); biases stay f32.
        "wih0_bf": p["wih0_t"].astype(jnp.bfloat16),
        "whh0_bf": p["whh0_t"].astype(jnp.bfloat16),
        "w1cat_bf": jnp.concatenate([p["wih1_t"], p["whh1_t"]],
                                    axis=0).astype(jnp.bfloat16),   # [2H, 4H]
        "b0": p["b0"], "b1": p["b1"],
        # Head (runs once, tiny) stays f32 for accuracy.
        "w1f": w1f, "b1f": b1f, "w2_t": p["w2_t"], "bb2": p["bb2"],
        "w3f": w3f, "b3f": b3f,
    }


# ---------------------------------------------------------------------------
# Pure-JAX reference (unfused, separate BNs, f32 throughout) for correctness check
# ---------------------------------------------------------------------------
def ref_forward(p, inputs, seq_length):
    B, T, F = inputs.shape
    H = p["whh0_t"].shape[0]

    def cell(x_t, h, c, wih_t, whh_t, b):
        g = x_t @ wih_t + h @ whh_t + b
        i, f, gg, o = jnp.split(g, 4, axis=-1)
        c = jax.nn.sigmoid(f) * c + jax.nn.sigmoid(i) * jnp.tanh(gg)
        h = jax.nn.sigmoid(o) * jnp.tanh(c)
        return h, c

    def step(carry, x_t):
        h1, c1, h2, c2 = carry
        h1, c1 = cell(x_t, h1, c1, p["wih0_t"], p["whh0_t"], p["b0"])
        h2, c2 = cell(h1, h2, c2, p["wih1_t"], p["whh1_t"], p["b1"])
        return (h1, c1, h2, c2), h2

    z = jnp.zeros((B, H), jnp.float32)
    _, outs = jax.lax.scan(step, (z, z, z, z), jnp.transpose(inputs, (1, 0, 2)))
    h_last = outs[seq_length - 1, jnp.arange(B)]

    eps = 1e-5
    x = (h_last - p["rm1"]) * jax.lax.rsqrt(p["rv1"] + eps) * p["g1"] + p["be1"]
    zz = jnp.maximum(x @ p["w1_t"] + p["bb1"], 0.0)
    zz = jnp.maximum(zz @ p["w2_t"] + p["bb2"], 0.0)
    zz = (zz - p["rm2"]) * jax.lax.rsqrt(p["rv2"] + eps) * p["g2"] + p["be2"]
    logits = jnp.maximum(zz @ p["w3_t"] + p["bb3"], 0.0)
    pred = jax.nn.softmax(logits, axis=-1)
    return logits, pred


# ---------------------------------------------------------------------------
# Deterministic parameter init (PyTorch-style uniform bounds; non-trivial BN stats
# so the eval-mode BN folding is actually exercised)
# ---------------------------------------------------------------------------
def init_params(key, F, H, C):
    temp = int(math.sqrt(H / C))
    ks = jax.random.split(key, 22)
    u = lambda k, shape, bound: jax.random.uniform(k, shape, jnp.float32, -bound, bound)
    sH = 1.0 / math.sqrt(H)
    sT = 1.0 / math.sqrt(temp)
    p = {
        # LSTM layer 0 (weights pre-transposed to [in, out]); b = b_ih + b_hh folded
        "wih0_t": u(ks[0], (F, 4 * H), sH),
        "whh0_t": u(ks[1], (H, 4 * H), sH),
        "b0":     u(ks[2], (1, 4 * H), sH) + u(ks[3], (1, 4 * H), sH),
        # LSTM layer 1 (input dim = H)
        "wih1_t": u(ks[4], (H, 4 * H), sH),
        "whh1_t": u(ks[5], (H, 4 * H), sH),
        "b1":     u(ks[6], (1, 4 * H), sH) + u(ks[7], (1, 4 * H), sH),
        # BatchNorm1d(H), eval mode with non-trivial running stats
        "g1":  1.0 + 0.2 * jax.random.normal(ks[8], (1, H), jnp.float32),
        "be1": 0.1 * jax.random.normal(ks[9], (1, H), jnp.float32),
        "rm1": 0.1 * jax.random.normal(ks[10], (1, H), jnp.float32),
        "rv1": jax.random.uniform(ks[11], (1, H), jnp.float32, 0.5, 1.5),
        # Linear(H -> temp)
        "w1_t": u(ks[12], (H, temp), sH),
        "bb1":  u(ks[13], (1, temp), sH),
        # Linear(temp -> temp)
        "w2_t": u(ks[14], (temp, temp), sT),
        "bb2":  u(ks[15], (1, temp), sT),
        # BatchNorm1d(temp), eval mode
        "g2":  1.0 + 0.2 * jax.random.normal(ks[16], (1, temp), jnp.float32),
        "be2": 0.1 * jax.random.normal(ks[17], (1, temp), jnp.float32),
        "rm2": 0.1 * jax.random.normal(ks[18], (1, temp), jnp.float32),
        "rv2": jax.random.uniform(ks[19], (1, temp), jnp.float32, 0.5, 1.5),
        # Linear(temp -> C)
        "w3_t": u(ks[20], (temp, C), sT),
        "bb3":  u(ks[21], (1, C), sT),
    }
    return p


if __name__ == "__main__":
    # Small, lane/sublane-aligned shapes consistent with the module
    # (feat_dim, lstm_size, num_classes scaled down): temp_size = int(sqrt(H/C)) = 4.
    B, T, F, H, C = 8, 8, 128, 128, 8
    key = jax.random.PRNGKey(0)
    kp, kx = jax.random.split(key)
    params = init_params(kp, F, H, C)
    fused = fuse_params(params)

    inputs = jax.random.normal(kx, (B, T, F), jnp.float32)             # batch_first [B, T, F]
    seq_length = jnp.array([8, 7, 6, 5, 5, 4, 3, 2], dtype=jnp.int32)  # sorted desc, >= 1

    logits, pred = model_forward(fused, inputs, seq_length)
    jax.block_until_ready((logits, pred))

    ref_logits, ref_pred = ref_forward(params, inputs, seq_length)
    # Tolerances account for bf16 MXU operands in the LSTM recurrence (reference is f32).
    np.testing.assert_allclose(np.asarray(logits), np.asarray(ref_logits), rtol=2e-2, atol=1e-2)
    np.testing.assert_allclose(np.asarray(pred), np.asarray(ref_pred), rtol=2e-2, atol=2e-3)

    print("KERNEL_OK")
</pallas_src>

<mosaic_0001>
module attributes {stable_mosaic.version = 11 : i64} {
  func.func @kernel(%arg0: memref<64x128xbf16, #tpu.memory_space<vmem>>, %arg1: memref<8x1xi32, #tpu.memory_space<vmem>>, %arg2: memref<128x512xbf16, #tpu.memory_space<vmem>>, %arg3: memref<1x512xf32, #tpu.memory_space<vmem>>, %arg4: memref<128x512xbf16, #tpu.memory_space<vmem>>, %arg5: memref<256x512xbf16, #tpu.memory_space<vmem>>, %arg6: memref<1x512xf32, #tpu.memory_space<vmem>>, %arg7: memref<128x4xf32, #tpu.memory_space<vmem>>, %arg8: memref<1x4xf32, #tpu.memory_space<vmem>>, %arg9: memref<4x4xf32, #tpu.memory_space<vmem>>, %arg10: memref<1x4xf32, #tpu.memory_space<vmem>>, %arg11: memref<4x8xf32, #tpu.memory_space<vmem>>, %arg12: memref<1x8xf32, #tpu.memory_space<vmem>>, %arg13: memref<8x8xf32, #tpu.memory_space<vmem>>, %arg14: memref<8x8xf32, #tpu.memory_space<vmem>>, %arg15: memref<64x512xf32, #tpu.memory_space<vmem>>) attributes {dimension_semantics = [], scalar_prefetch = 0 : i64, scratch_operands = 1 : i64, tpu.core_type = #tpu.core_type<tc>} {
    %c0 = arith.constant 0 : index
    %c0_0 = arith.constant 0 : index
    %0 = vector.load %arg0[%c0, %c0_0] : memref<64x128xbf16, #tpu.memory_space<vmem>>, vector<64x128xbf16>
    %c0_1 = arith.constant 0 : index
    %c0_2 = arith.constant 0 : index
    %1 = vector.load %arg2[%c0_1, %c0_2] : memref<128x512xbf16, #tpu.memory_space<vmem>>, vector<128x512xbf16>
    %cst = arith.constant dense<0.000000e+00> : vector<64x512xf32>
    %2 = tpu.matmul %0, %1, %cst {dimension_numbers = #tpu.dot_dimension_numbers<[1], [0], [0], [1], [0, 0, 1, 1], [], []>} : vector<64x128xbf16>, vector<128x512xbf16>, vector<64x512xf32> -> vector<64x512xf32>
    %c0_3 = arith.constant 0 : index
    %c0_4 = arith.constant 0 : index
    %3 = vector.load %arg3[%c0_3, %c0_4] : memref<1x512xf32, #tpu.memory_space<vmem>>, vector<1x512xf32>
    %4 = vector.broadcast %3 : vector<1x512xf32> to vector<64x512xf32>
    %5 = arith.addf %2, %4 : vector<64x512xf32>
    %c0_5 = arith.constant 0 : index
    %c0_6 = arith.constant 0 : index
    %6 = vector.load %arg15[%c0_5, %c0_6] : memref<64x512xf32, #tpu.memory_space<vmem>>, vector<64x512xf32>
    tpu.vector_store %arg15[%c0_5, %c0_6], %5 {strides = array<i32>} : memref<64x512xf32, #tpu.memory_space<vmem>>, vector<64x512xf32>,
    %c0_7 = arith.constant 0 : index
    %c0_8 = arith.constant 0 : index
    %7 = vector.load %arg6[%c0_7, %c0_8] : memref<1x512xf32, #tpu.memory_space<vmem>>, vector<1x512xf32>
    %8 = vector.shape_cast %7 : vector<1x512xf32> to vector<1x512xf32>
    %9 = vector.broadcast %8 : vector<1x512xf32> to vector<8x512xf32>
    %c0_9 = arith.constant 0 : index
    %c0_10 = arith.constant 0 : index
    %10 = vector.load %arg1[%c0_9, %c0_10] : memref<8x1xi32, #tpu.memory_space<vmem>>, vector<8x1xi32>
    %cst_11 = arith.constant 0.000000e+00 : f32
    %11 = vector.broadcast %cst_11 : f32 to vector<8x128xf32>
    %c0_12 = arith.constant 0 : index
    %c0_13 = arith.constant 0 : index
    %12 = vector.load %arg15[%c0_12, %c0_13] : memref<64x512xf32, #tpu.memory_space<vmem>>, vector<8x512xf32>
    %13 = arith.truncf %11 : vector<8x128xf32> to vector<8x128xbf16>
    %c0_14 = arith.constant 0 : index
    %c0_15 = arith.constant 0 : index
    %14 = vector.load %arg4[%c0_14, %c0_15] : memref<128x512xbf16, #tpu.memory_space<vmem>>, vector<128x512xbf16>
    %cst_16 = arith.constant dense<0.000000e+00> : vector<8x512xf32>
    %15 = tpu.matmul %13, %14, %cst_16 {dimension_numbers = #tpu.dot_dimension_numbers<[1], [0], [0], [1], [0, 0, 1, 1], [], []>} : vector<8x128xbf16>, vector<128x512xbf16>, vector<8x512xf32> -> vector<8x512xf32>
    %16 = arith.addf %12, %15 : vector<8x512xf32>
    %17 = vector.extract_strided_slice %16 {offsets = [0, 0], sizes = [8, 128], strides = [1, 1]} : vector<8x512xf32> to vector<8x128xf32>
    %cst_17 = arith.constant 5.000000e-01 : f32
    %18 = vector.broadcast %cst_17 : f32 to vector<8x128xf32>
    %19 = arith.mulf %18, %17 : vector<8x128xf32>
    %20 = math.tanh %19 : vector<8x128xf32>
    %cst_18 = arith.constant 5.000000e-01 : f32
    %21 = vector.broadcast %cst_18 : f32 to vector<8x128xf32>
    %22 = arith.mulf %21, %20 : vector<8x128xf32>
    %cst_19 = arith.constant 5.000000e-01 : f32
    %23 = vector.broadcast %cst_19 : f32 to vector<8x128xf32>
    %24 = arith.addf %22, %23 : vector<8x128xf32>
    %25 = vector.extract_strided_slice %16 {offsets = [0, 128], sizes = [8, 128], strides = [1, 1]} : vector<8x512xf32> to vector<8x128xf32>
    %cst_20 = arith.constant 5.000000e-01 : f32
    %26 = vector.broadcast %cst_20 : f32 to vector<8x128xf32>
    %27 = arith.mulf %26, %25 : vector<8x128xf32>
    %28 = math.tanh %27 : vector<8x128xf32>
    %cst_21 = arith.constant 5.000000e-01 : f32
    %29 = vector.broadcast %cst_21 : f32 to vector<8x128xf32>
    %30 = arith.mulf %29, %28 : vector<8x128xf32>
    %cst_22 = arith.constant 5.000000e-01 : f32
    %31 = vector.broadcast %cst_22 : f32 to vector<8x128xf32>
    %32 = arith.addf %30, %31 : vector<8x128xf32>
    %33 = vector.extract_strided_slice %16 {offsets = [0, 256], sizes = [8, 128], strides = [1, 1]} : vector<8x512xf32> to vector<8x128xf32>
    %34 = math.tanh %33 : vector<8x128xf32>
    %35 = vector.extract_strided_slice %16 {offsets = [0, 384], sizes = [8, 128], strides = [1, 1]} : vector<8x512xf32> to vector<8x128xf32>
    %cst_23 = arith.constant 5.000000e-01 : f32
    %36 = vector.broadcast %cst_23 : f32 to vector<8x128xf32>
    %37 = arith.mulf %36, %35 : vector<8x128xf32>
    %38 = math.tanh %37 : vector<8x128xf32>
    %cst_24 = arith.constant 5.000000e-01 : f32
    %39 = vector.broadcast %cst_24 : f32 to vector<8x128xf32>
    %40 = arith.mulf %39, %38 : vector<8x128xf32>
    %cst_25 = arith.constant 5.000000e-01 : f32
    %41 = vector.broadcast %cst_25 : f32 to vector<8x128xf32>
    %42 = arith.addf %40, %41 : vector<8x128xf32>
    %43 = arith.mulf %32, %11 : vector<8x128xf32>
    %44 = arith.mulf %24, %34 : vector<8x128xf32>
    %45 = arith.addf %43, %44 : vector<8x128xf32>
    %46 = math.tanh %45 : vector<8x128xf32>
    %47 = arith.mulf %42, %46 : vector<8x128xf32>
    %48 = tpu.concatenate %47, %11 in 1 : vector<8x128xf32>, vector<8x128xf32> -> vector<8x256xf32>
    %49 = arith.truncf %48 : vector<8x256xf32> to vector<8x256xbf16>
    %c0_26 = arith.constant 0 : index
    %c0_27 = arith.constant 0 : index
    %50 = vector.load %arg5[%c0_26, %c0_27] : memref<256x512xbf16, #tpu.memory_space<vmem>>, vector<256x512xbf16>
    %cst_28 = arith.constant dense<0.000000e+00> : vector<8x512xf32>
    %51 = tpu.matmul %49, %50, %cst_28 {dimension_numbers = #tpu.dot_dimension_numbers<[1], [0], [0], [1], [0, 0, 1, 1], [], []>} : vector<8x256xbf16>, vector<256x512xbf16>, vector<8x512xf32> -> vector<8x512xf32>
    %52 = arith.addf %51, %9 : vector<8x512xf32>
    %53 = vector.extract_strided_slice %52 {offsets = [0, 0], sizes = [8, 128], strides = [1, 1]} : vector<8x512xf32> to vector<8x128xf32>
    %cst_29 = arith.constant 5.000000e-01 : f32
    %54 = vector.broadcast %cst_29 : f32 to vector<8x128xf32>
    %55 = arith.mulf %54, %53 : vector<8x128xf32>
    %56 = math.tanh %55 : vector<8x128xf32>
    %cst_30 = arith.constant 5.000000e-01 : f32
    %57 = vector.broadcast %cst_30 : f32 to vector<8x128xf32>
    %58 = arith.mulf %57, %56 : vector<8x128xf32>
    %cst_31 = arith.constant 5.000000e-01 : f32
    %59 = vector.broadcast %cst_31 : f32 to vector<8x128xf32>
    %60 = arith.addf %58, %59 : vector<8x128xf32>
    %61 = vector.extract_strided_slice %52 {offsets = [0, 128], sizes = [8, 128], strides = [1, 1]} : vector<8x512xf32> to vector<8x128xf32>
    %cst_32 = arith.constant 5.000000e-01 : f32
    %62 = vector.broadcast %cst_32 : f32 to vector<8x128xf32>
    %63 = arith.mulf %62, %61 : vector<8x128xf32>
    %64 = math.tanh %63 : vector<8x128xf32>
    %cst_33 = arith.constant 5.000000e-01 : f32
    %65 = vector.broadcast %cst_33 : f32 to vector<8x128xf32>
    %66 = arith.mulf %65, %64 : vector<8x128xf32>
    %cst_34 = arith.constant 5.000000e-01 : f32
    %67 = vector.broadcast %cst_34 : f32 to vector<8x128xf32>
    %68 = arith.addf %66, %67 : vector<8x128xf32>
    %69 = vector.extract_strided_slice %52 {offsets = [0, 256], sizes = [8, 128], strides = [1, 1]} : vector<8x512xf32> to vector<8x128xf32>
    %70 = math.tanh %69 : vector<8x128xf32>
    %71 = vector.extract_strided_slice %52 {offsets = [0, 384], sizes = [8, 128], strides = [1, 1]} : vector<8x512xf32> to vector<8x128xf32>
    %cst_35 = arith.constant 5.000000e-01 : f32
    %72 = vector.broadcast %cst_35 : f32 to vector<8x128xf32>
    %73 = arith.mulf %72, %71 : vector<8x128xf32>
    %74 = math.tanh %73 : vector<8x128xf32>
    %cst_36 = arith.constant 5.000000e-01 : f32
    %75 = vector.broadcast %cst_36 : f32 to vector<8x128xf32>
    %76 = arith.mulf %75, %74 : vector<8x128xf32>
    %cst_37 = arith.constant 5.000000e-01 : f32
    %77 = vector.broadcast %cst_37 : f32 to vector<8x128xf32>
    %78 = arith.addf %76, %77 : vector<8x128xf32>
    %79 = arith.mulf %68, %11 : vector<8x128xf32>
    %80 = arith.mulf %60, %70 : vector<8x128xf32>
    %81 = arith.addf %79, %80 : vector<8x128xf32>
    %82 = math.tanh %81 : vector<8x128xf32>
    %83 = arith.mulf %78, %82 : vector<8x128xf32>
    %c0_i32 = arith.constant 0 : i32
    %84 = vector.broadcast %c0_i32 : i32 to vector<8x1xi32>
    %85 = arith.cmpi eq, %10, %84 : vector<8x1xi32>
    %86 = vector.shape_cast %85 : vector<8x1xi1> to vector<8x1xi1>
    %87 = vector.broadcast %86 : vector<8x1xi1> to vector<8x128xi1>
    %88 = arith.select %87, %83, %11 : vector<8x128xi1>, vector<8x128xf32>
    %c8 = arith.constant 8 : index
    %c0_38 = arith.constant 0 : index
    %89 = vector.load %arg15[%c8, %c0_38] : memref<64x512xf32, #tpu.memory_space<vmem>>, vector<8x512xf32>
    %90 = arith.truncf %47 : vector<8x128xf32> to vector<8x128xbf16>
    %c0_39 = arith.constant 0 : index
    %c0_40 = arith.constant 0 : index
    %91 = vector.load %arg4[%c0_39, %c0_40] : memref<128x512xbf16, #tpu.memory_space<vmem>>, vector<128x512xbf16>
    %cst_41 = arith.constant dense<0.000000e+00> : vector<8x512xf32>
    %92 = tpu.matmul %90, %91, %cst_41 {dimension_numbers = #tpu.dot_dimension_numbers<[1], [0], [0], [1], [0, 0, 1, 1], [], []>} : vector<8x128xbf16>, vector<128x512xbf16>, vector<8x512xf32> -> vector<8x512xf32>
    %93 = arith.addf %89, %92 : vector<8x512xf32>
    %94 = vector.extract_strided_slice %93 {offsets = [0, 0], sizes = [8, 128], strides = [1, 1]} : vector<8x512xf32> to vector<8x128xf32>
    %cst_42 = arith.constant 5.000000e-01 : f32
    %95 = vector.broadcast %cst_42 : f32 to vector<8x128xf32>
    %96 = arith.mulf %95, %94 : vector<8x128xf32>
    %97 = math.tanh %96 : vector<8x128xf32>
    %cst_43 = arith.constant 5.000000e-01 : f32
    %98 = vector.broadcast %cst_43 : f32 to vector<8x128xf32>
    %99 = arith.mulf %98, %97 : vector<8x128xf32>
    %cst_44 = arith.constant 5.000000e-01 : f32
    %100 = vector.broadcast %cst_44 : f32 to vector<8x128xf32>
    %101 = arith.addf %99, %100 : vector<8x128xf32>
    %102 = vector.extract_strided_slice %93 {offsets = [0, 128], sizes = [8, 128], strides = [1, 1]} : vector<8x512xf32> to vector<8x128xf32>
    %cst_45 = arith.constant 5.000000e-01 : f32
    %103 = vector.broadcast %cst_45 : f32 to vector<8x128xf32>
    %104 = arith.mulf %103, %102 : vector<8x128xf32>
    %105 = math.tanh %104 : vector<8x128xf32>
    %cst_46 = arith.constant 5.000000e-01 : f32
    %106 = vector.broadcast %cst_46 : f32 to vector<8x128xf32>
    %107 = arith.mulf %106, %105 : vector<8x128xf32>
    %cst_47 = arith.constant 5.000000e-01 : f32
    %108 = vector.broadcast %cst_47 : f32 to vector<8x128xf32>
    %109 = arith.addf %107, %108 : vector<8x128xf32>
    %110 = vector.extract_strided_slice %93 {offsets = [0, 256], sizes = [8, 128], strides = [1, 1]} : vector<8x512xf32> to vector<8x128xf32>
    %111 = math.tanh %110 : vector<8x128xf32>
    %112 = vector.extract_strided_slice %93 {offsets = [0, 384], sizes = [8, 128], strides = [1, 1]} : vector<8x512xf32> to vector<8x128xf32>
    %cst_48 = arith.constant 5.000000e-01 : f32
    %113 = vector.broadcast %cst_48 : f32 to vector<8x128xf32>
    %114 = arith.mulf %113, %112 : vector<8x128xf32>
    %115 = math.tanh %114 : vector<8x128xf32>
    %cst_49 = arith.constant 5.000000e-01 : f32
    %116 = vector.broadcast %cst_49 : f32 to vector<8x128xf32>
    %117 = arith.mulf %116, %115 : vector<8x128xf32>
    %cst_50 = arith.constant 5.000000e-01 : f32
    %118 = vector.broadcast %cst_50 : f32 to vector<8x128xf32>
    %119 = arith.addf %117, %118 : vector<8x128xf32>
    %120 = arith.mulf %109, %45 : vector<8x128xf32>
    %121 = arith.mulf %101, %111 : vector<8x128xf32>
    %122 = arith.addf %120, %121 : vector<8x128xf32>
    %123 = math.tanh %122 : vector<8x128xf32>
    %124 = arith.mulf %119, %123 : vector<8x128xf32>
    %125 = tpu.concatenate %124, %83 in 1 : vector<8x128xf32>, vector<8x128xf32> -> vector<8x256xf32>
    %126 = arith.truncf %125 : vector<8x256xf32> to vector<8x256xbf16>
    %c0_51 = arith.constant 0 : index
    %c0_52 = arith.constant 0 : index
    %127 = vector.load %arg5[%c0_51, %c0_52] : memref<256x512xbf16, #tpu.memory_space<vmem>>, vector<256x512xbf16>
    %cst_53 = arith.constant dense<0.000000e+00> : vector<8x512xf32>
    %128 = tpu.matmul %126, %127, %cst_53 {dimension_numbers = #tpu.dot_dimension_numbers<[1], [0], [0], [1], [0, 0, 1, 1], [], []>} : vector<8x256xbf16>, vector<256x512xbf16>, vector<8x512xf32> -> vector<8x512xf32>
    %129 = arith.addf %128, %9 : vector<8x512xf32>
    %130 = vector.extract_strided_slice %129 {offsets = [0, 0], sizes = [8, 128], strides = [1, 1]} : vector<8x512xf32> to vector<8x128xf32>
    %cst_54 = arith.constant 5.000000e-01 : f32
    %131 = vector.broadcast %cst_54 : f32 to vector<8x128xf32>
    %132 = arith.mulf %131, %130 : vector<8x128xf32>
    %133 = math.tanh %132 : vector<8x128xf32>
    %cst_55 = arith.constant 5.000000e-01 : f32
    %134 = vector.broadcast %cst_55 : f32 to vector<8x128xf32>
    %135 = arith.mulf %134, %133 : vector<8x128xf32>
    %cst_56 = arith.constant 5.000000e-01 : f32
    %136 = vector.broadcast %cst_56 : f32 to vector<8x128xf32>
    %137 = arith.addf %135, %136 : vector<8x128xf32>
    %138 = vector.extract_strided_slice %129 {offsets = [0, 128], sizes = [8, 128], strides = [1, 1]} : vector<8x512xf32> to vector<8x128xf32>
    %cst_57 = arith.constant 5.000000e-01 : f32
    %139 = vector.broadcast %cst_57 : f32 to vector<8x128xf32>
    %140 = arith.mulf %139, %138 : vector<8x128xf32>
    %141 = math.tanh %140 : vector<8x128xf32>
    %cst_58 = arith.constant 5.000000e-01 : f32
    %142 = vector.broadcast %cst_58 : f32 to vector<8x128xf32>
    %143 = arith.mulf %142, %141 : vector<8x128xf32>
    %cst_59 = arith.constant 5.000000e-01 : f32
    %144 = vector.broadcast %cst_59 : f32 to vector<8x128xf32>
    %145 = arith.addf %143, %144 : vector<8x128xf32>
    %146 = vector.extract_strided_slice %129 {offsets = [0, 256], sizes = [8, 128], strides = [1, 1]} : vector<8x512xf32> to vector<8x128xf32>
    %147 = math.tanh %146 : vector<8x128xf32>
    %148 = vector.extract_strided_slice %129 {offsets = [0, 384], sizes = [8, 128], strides = [1, 1]} : vector<8x512xf32> to vector<8x128xf32>
    %cst_60 = arith.constant 5.000000e-01 : f32
    %149 = vector.broadcast %cst_60 : f32 to vector<8x128xf32>
    %150 = arith.mulf %149, %148 : vector<8x128xf32>
    %151 = math.tanh %150 : vector<8x128xf32>
    %cst_61 = arith.constant 5.000000e-01 : f32
    %152 = vector.broadcast %cst_61 : f32 to vector<8x128xf32>
    %153 = arith.mulf %152, %151 : vector<8x128xf32>
    %cst_62 = arith.constant 5.000000e-01 : f32
    %154 = vector.broadcast %cst_62 : f32 to vector<8x128xf32>
    %155 = arith.addf %153, %154 : vector<8x128xf32>
    %156 = arith.mulf %145, %81 : vector<8x128xf32>
    %157 = arith.mulf %137, %147 : vector<8x128xf32>
    %158 = arith.addf %156, %157 : vector<8x128xf32>
    %159 = math.tanh %158 : vector<8x128xf32>
    %160 = arith.mulf %155, %159 : vector<8x128xf32>
    %c1_i32 = arith.constant 1 : i32
    %161 = vector.broadcast %c1_i32 : i32 to vector<8x1xi32>
    %162 = arith.cmpi eq, %10, %161 : vector<8x1xi32>
    %163 = vector.shape_cast %162 : vector<8x1xi1> to vector<8x1xi1>
    %164 = vector.broadcast %163 : vector<8x1xi1> to vector<8x128xi1>
    %165 = arith.select %164, %160, %88 : vector<8x128xi1>, vector<8x128xf32>
    %c16 = arith.constant 16 : index
    %c0_63 = arith.constant 0 : index
    %166 = vector.load %arg15[%c16, %c0_63] : memref<64x512xf32, #tpu.memory_space<vmem>>, vector<8x512xf32>
    %167 = arith.truncf %124 : vector<8x128xf32> to vector<8x128xbf16>
    %c0_64 = arith.constant 0 : index
    %c0_65 = arith.constant 0 : index
    %168 = vector.load %arg4[%c0_64, %c0_65] : memref<128x512xbf16, #tpu.memory_space<vmem>>, vector<128x512xbf16>
    %cst_66 = arith.constant dense<0.000000e+00> : vector<8x512xf32>
    %169 = tpu.matmul %167, %168, %cst_66 {dimension_numbers = #tpu.dot_dimension_numbers<[1], [0], [0], [1], [0, 0, 1, 1], [], []>} : vector<8x128xbf16>, vector<128x512xbf16>, vector<8x512xf32> -> vector<8x512xf32>
    %170 = arith.addf %166, %169 : vector<8x512xf32>
    %171 = vector.extract_strided_slice %170 {offsets = [0, 0], sizes = [8, 128], strides = [1, 1]} : vector<8x512xf32> to vector<8x128xf32>
    %cst_67 = arith.constant 5.000000e-01 : f32
    %172 = vector.broadcast %cst_67 : f32 to vector<8x128xf32>
    %173 = arith.mulf %172, %171 : vector<8x128xf32>
    %174 = math.tanh %173 : vector<8x128xf32>
    %cst_68 = arith.constant 5.000000e-01 : f32
    %175 = vector.broadcast %cst_68 : f32 to vector<8x128xf32>
    %176 = arith.mulf %175, %174 : vector<8x128xf32>
    %cst_69 = arith.constant 5.000000e-01 : f32
    %177 = vector.broadcast %cst_69 : f32 to vector<8x128xf32>
    %178 = arith.addf %176, %177 : vector<8x128xf32>
    %179 = vector.extract_strided_slice %170 {offsets = [0, 128], sizes = [8, 128], strides = [1, 1]} : vector<8x512xf32> to vector<8x128xf32>
    %cst_70 = arith.constant 5.000000e-01 : f32
    %180 = vector.broadcast %cst_70 : f32 to vector<8x128xf32>
    %181 = arith.mulf %180, %179 : vector<8x128xf32>
    %182 = math.tanh %181 : vector<8x128xf32>
    %cst_71 = arith.constant 5.000000e-01 : f32
    %183 = vector.broadcast %cst_71 : f32 to vector<8x128xf32>
    %184 = arith.mulf %183, %182 : vector<8x128xf32>
    %cst_72 = arith.constant 5.000000e-01 : f32
    %185 = vector.broadcast %cst_72 : f32 to vector<8x128xf32>
    %186 = arith.addf %184, %185 : vector<8x128xf32>
    %187 = vector.extract_strided_slice %170 {offsets = [0, 256], sizes = [8, 128], strides = [1, 1]} : vector<8x512xf32> to vector<8x128xf32>
    %188 = math.tanh %187 : vector<8x128xf32>
    %189 = vector.extract_strided_slice %170 {offsets = [0, 384], sizes = [8, 128], strides = [1, 1]} : vector<8x512xf32> to vector<8x128xf32>
    %cst_73 = arith.constant 5.000000e-01 : f32
    %190 = vector.broadcast %cst_73 : f32 to vector<8x128xf32>
    %191 = arith.mulf %190, %189 : vector<8x128xf32>
    %192 = math.tanh %191 : vector<8x128xf32>
    %cst_74 = arith.constant 5.000000e-01 : f32
    %193 = vector.broadcast %cst_74 : f32 to vector<8x128xf32>
    %194 = arith.mulf %193, %192 : vector<8x128xf32>
    %cst_75 = arith.constant 5.000000e-01 : f32
    %195 = vector.broadcast %cst_75 : f32 to vector<8x128xf32>
    %196 = arith.addf %194, %195 : vector<8x128xf32>
    %197 = arith.mulf %186, %122 : vector<8x128xf32>
    %198 = arith.mulf %178, %188 : vector<8x128xf32>
    %199 = arith.addf %197, %198 : vector<8x128xf32>
    %200 = math.tanh %199 : vector<8x128xf32>
    %201 = arith.mulf %196, %200 : vector<8x128xf32>
    %202 = tpu.concatenate %201, %160 in 1 : vector<8x128xf32>, vector<8x128xf32> -> vector<8x256xf32>
    %203 = arith.truncf %202 : vector<8x256xf32> to vector<8x256xbf16>
    %c0_76 = arith.constant 0 : index
    %c0_77 = arith.constant 0 : index
    %204 = vector.load %arg5[%c0_76, %c0_77] : memref<256x512xbf16, #tpu.memory_space<vmem>>, vector<256x512xbf16>
    %cst_78 = arith.constant dense<0.000000e+00> : vector<8x512xf32>
    %205 = tpu.matmul %203, %204, %cst_78 {dimension_numbers = #tpu.dot_dimension_numbers<[1], [0], [0], [1], [0, 0, 1, 1], [], []>} : vector<8x256xbf16>, vector<256x512xbf16>, vector<8x512xf32> -> vector<8x512xf32>
    %206 = arith.addf %205, %9 : vector<8x512xf32>
    %207 = vector.extract_strided_slice %206 {offsets = [0, 0], sizes = [8, 128], strides = [1, 1]} : vector<8x512xf32> to vector<8x128xf32>
    %cst_79 = arith.constant 5.000000e-01 : f32
    %208 = vector.broadcast %cst_79 : f32 to vector<8x128xf32>
    %209 = arith.mulf %208, %207 : vector<8x128xf32>
    %210 = math.tanh %209 : vector<8x128xf32>
    %cst_80 = arith.constant 5.000000e-01 : f32
    %211 = vector.broadcast %cst_80 : f32 to vector<8x128xf32>
    %212 = arith.mulf %211, %210 : vector<8x128xf32>
    %cst_81 = arith.constant 5.000000e-01 : f32
    %213 = vector.broadcast %cst_81 : f32 to vector<8x128xf32>
    %214 = arith.addf %212, %213 : vector<8x128xf32>
    %215 = vector.extract_strided_slice %206 {offsets = [0, 128], sizes = [8, 128], strides = [1, 1]} : vector<8x512xf32> to vector<8x128xf32>
    %cst_82 = arith.constant 5.000000e-01 : f32
    %216 = vector.broadcast %cst_82 : f32 to vector<8x128xf32>
    %217 = arith.mulf %216, %215 : vector<8x128xf32>
    %218 = math.tanh %217 : vector<8x128xf32>
    %cst_83 = arith.constant 5.000000e-01 : f32
    %219 = vector.broadcast %cst_83 : f32 to vector<8x128xf32>
    %220 = arith.mulf %219, %218 : vector<8x128xf32>
    %cst_84 = arith.constant 5.000000e-01 : f32
    %221 = vector.broadcast %cst_84 : f32 to vector<8x128xf32>
    %222 = arith.addf %220, %221 : vector<8x128xf32>
    %223 = vector.extract_strided_slice %206 {offsets = [0, 256], sizes = [8, 128], strides = [1, 1]} : vector<8x512xf32> to vector<8x128xf32>
    %224 = math.tanh %223 : vector<8x128xf32>
    %225 = vector.extract_strided_slice %206 {offsets = [0, 384], sizes = [8, 128], strides = [1, 1]} : vector<8x512xf32> to vector<8x128xf32>
    %cst_85 = arith.constant 5.000000e-01 : f32
    %226 = vector.broadcast %cst_85 : f32 to vector<8x128xf32>
    %227 = arith.mulf %226, %225 : vector<8x128xf32>
    %228 = math.tanh %227 : vector<8x128xf32>
    %cst_86 = arith.constant 5.000000e-01 : f32
    %229 = vector.broadcast %cst_86 : f32 to vector<8x128xf32>
    %230 = arith.mulf %229, %228 : vector<8x128xf32>
    %cst_87 = arith.constant 5.000000e-01 : f32
    %231 = vector.broadcast %cst_87 : f32 to vector<8x128xf32>
    %232 = arith.addf %230, %231 : vector<8x128xf32>
    %233 = arith.mulf %222, %158 : vector<8x128xf32>
    %234 = arith.mulf %214, %224 : vector<8x128xf32>
    %235 = arith.addf %233, %234 : vector<8x128xf32>
    %236 = math.tanh %235 : vector<8x128xf32>
    %237 = arith.mulf %232, %236 : vector<8x128xf32>
    %c2_i32 = arith.constant 2 : i32
    %238 = vector.broadcast %c2_i32 : i32 to vector<8x1xi32>
    %239 = arith.cmpi eq, %10, %238 : vector<8x1xi32>
    %240 = vector.shape_cast %239 : vector<8x1xi1> to vector<8x1xi1>
    %241 = vector.broadcast %240 : vector<8x1xi1> to vector<8x128xi1>
    %242 = arith.select %241, %237, %165 : vector<8x128xi1>, vector<8x128xf32>
    %c24 = arith.constant 24 : index
    %c0_88 = arith.constant 0 : index
    %243 = vector.load %arg15[%c24, %c0_88] : memref<64x512xf32, #tpu.memory_space<vmem>>, vector<8x512xf32>
    %244 = arith.truncf %201 : vector<8x128xf32> to vector<8x128xbf16>
    %c0_89 = arith.constant 0 : index
    %c0_90 = arith.constant 0 : index
    %245 = vector.load %arg4[%c0_89, %c0_90] : memref<128x512xbf16, #tpu.memory_space<vmem>>, vector<128x512xbf16>
    %cst_91 = arith.constant dense<0.000000e+00> : vector<8x512xf32>
    %246 = tpu.matmul %244, %245, %cst_91 {dimension_numbers = #tpu.dot_dimension_numbers<[1], [0], [0], [1], [0, 0, 1, 1], [], []>} : vector<8x128xbf16>, vector<128x512xbf16>, vector<8x512xf32> -> vector<8x512xf32>
    %247 = arith.addf %243, %246 : vector<8x512xf32>
    %248 = vector.extract_strided_slice %247 {offsets = [0, 0], sizes = [8, 128], strides = [1, 1]} : vector<8x512xf32> to vector<8x128xf32>
    %cst_92 = arith.constant 5.000000e-01 : f32
    %249 = vector.broadcast %cst_92 : f32 to vector<8x128xf32>
    %250 = arith.mulf %249, %248 : vector<8x128xf32>
    %251 = math.tanh %250 : vector<8x128xf32>
    %cst_93 = arith.constant 5.000000e-01 : f32
    %252 = vector.broadcast %cst_93 : f32 to vector<8x128xf32>
    %253 = arith.mulf %252, %251 : vector<8x128xf32>
    %cst_94 = arith.constant 5.000000e-01 : f32
    %254 = vector.broadcast %cst_94 : f32 to vector<8x128xf32>
    %255 = arith.addf %253, %254 : vector<8x128xf32>
    %256 = vector.extract_strided_slice %247 {offsets = [0, 128], sizes = [8, 128], strides = [1, 1]} : vector<8x512xf32> to vector<8x128xf32>
    %cst_95 = arith.constant 5.000000e-01 : f32
    %257 = vector.broadcast %cst_95 : f32 to vector<8x128xf32>
    %258 = arith.mulf %257, %256 : vector<8x128xf32>
    %259 = math.tanh %258 : vector<8x128xf32>
    %cst_96 = arith.constant 5.000000e-01 : f32
    %260 = vector.broadcast %cst_96 : f32 to vector<8x128xf32>
    %261 = arith.mulf %260, %259 : vector<8x128xf32>
    %cst_97 = arith.constant 5.000000e-01 : f32
    %262 = vector.broadcast %cst_97 : f32 to vector<8x128xf32>
    %263 = arith.addf %261, %262 : vector<8x128xf32>
    %264 = vector.extract_strided_slice %247 {offsets = [0, 256], sizes = [8, 128], strides = [1, 1]} : vector<8x512xf32> to vector<8x128xf32>
    %265 = math.tanh %264 : vector<8x128xf32>
    %266 = vector.extract_strided_slice %247 {offsets = [0, 384], sizes = [8, 128], strides = [1, 1]} : vector<8x512xf32> to vector<8x128xf32>
    %cst_98 = arith.constant 5.000000e-01 : f32
    %267 = vector.broadcast %cst_98 : f32 to vector<8x128xf32>
    %268 = arith.mulf %267, %266 : vector<8x128xf32>
    %269 = math.tanh %268 : vector<8x128xf32>
    %cst_99 = arith.constant 5.000000e-01 : f32
    %270 = vector.broadcast %cst_99 : f32 to vector<8x128xf32>
    %271 = arith.mulf %270, %269 : vector<8x128xf32>
    %cst_100 = arith.constant 5.000000e-01 : f32
    %272 = vector.broadcast %cst_100 : f32 to vector<8x128xf32>
    %273 = arith.addf %271, %272 : vector<8x128xf32>
    %274 = arith.mulf %263, %199 : vector<8x128xf32>
    %275 = arith.mulf %255, %265 : vector<8x128xf32>
    %276 = arith.addf %274, %275 : vector<8x128xf32>
    %277 = math.tanh %276 : vector<8x128xf32>
    %278 = arith.mulf %273, %277 : vector<8x128xf32>
    %279 = tpu.concatenate %278, %237 in 1 : vector<8x128xf32>, vector<8x128xf32> -> vector<8x256xf32>
    %280 = arith.truncf %279 : vector<8x256xf32> to vector<8x256xbf16>
    %c0_101 = arith.constant 0 : index
    %c0_102 = arith.constant 0 : index
    %281 = vector.load %arg5[%c0_101, %c0_102] : memref<256x512xbf16, #tpu.memory_space<vmem>>, vector<256x512xbf16>
    %cst_103 = arith.constant dense<0.000000e+00> : vector<8x512xf32>
    %282 = tpu.matmul %280, %281, %cst_103 {dimension_numbers = #tpu.dot_dimension_numbers<[1], [0], [0], [1], [0, 0, 1, 1], [], []>} : vector<8x256xbf16>, vector<256x512xbf16>, vector<8x512xf32> -> vector<8x512xf32>
    %283 = arith.addf %282, %9 : vector<8x512xf32>
    %284 = vector.extract_strided_slice %283 {offsets = [0, 0], sizes = [8, 128], strides = [1, 1]} : vector<8x512xf32> to vector<8x128xf32>
    %cst_104 = arith.constant 5.000000e-01 : f32
    %285 = vector.broadcast %cst_104 : f32 to vector<8x128xf32>
    %286 = arith.mulf %285, %284 : vector<8x128xf32>
    %287 = math.tanh %286 : vector<8x128xf32>
    %cst_105 = arith.constant 5.000000e-01 : f32
    %288 = vector.broadcast %cst_105 : f32 to vector<8x128xf32>
    %289 = arith.mulf %288, %287 : vector<8x128xf32>
    %cst_106 = arith.constant 5.000000e-01 : f32
    %290 = vector.broadcast %cst_106 : f32 to vector<8x128xf32>
    %291 = arith.addf %289, %290 : vector<8x128xf32>
    %292 = vector.extract_strided_slice %283 {offsets = [0, 128], sizes = [8, 128], strides = [1, 1]} : vector<8x512xf32> to vector<8x128xf32>
    %cst_107 = arith.constant 5.000000e-01 : f32
    %293 = vector.broadcast %cst_107 : f32 to vector<8x128xf32>
    %294 = arith.mulf %293, %292 : vector<8x128xf32>
    %295 = math.tanh %294 : vector<8x128xf32>
    %cst_108 = arith.constant 5.000000e-01 : f32
    %296 = vector.broadcast %cst_108 : f32 to vector<8x128xf32>
    %297 = arith.mulf %296, %295 : vector<8x128xf32>
    %cst_109 = arith.constant 5.000000e-01 : f32
    %298 = vector.broadcast %cst_109 : f32 to vector<8x128xf32>
    %299 = arith.addf %297, %298 : vector<8x128xf32>
    %300 = vector.extract_strided_slice %283 {offsets = [0, 256], sizes = [8, 128], strides = [1, 1]} : vector<8x512xf32> to vector<8x128xf32>
    %301 = math.tanh %300 : vector<8x128xf32>
    %302 = vector.extract_strided_slice %283 {offsets = [0, 384], sizes = [8, 128], strides = [1, 1]} : vector<8x512xf32> to vector<8x128xf32>
    %cst_110 = arith.constant 5.000000e-01 : f32
    %303 = vector.broadcast %cst_110 : f32 to vector<8x128xf32>
    %304 = arith.mulf %303, %302 : vector<8x128xf32>
    %305 = math.tanh %304 : vector<8x128xf32>
    %cst_111 = arith.constant 5.000000e-01 : f32
    %306 = vector.broadcast %cst_111 : f32 to vector<8x128xf32>
    %307 = arith.mulf %306, %305 : vector<8x128xf32>
    %cst_112 = arith.constant 5.000000e-01 : f32
    %308 = vector.broadcast %cst_112 : f32 to vector<8x128xf32>
    %309 = arith.addf %307, %308 : vector<8x128xf32>
    %310 = arith.mulf %299, %235 : vector<8x128xf32>
    %311 = arith.mulf %291, %301 : vector<8x128xf32>
    %312 = arith.addf %310, %311 : vector<8x128xf32>
    %313 = math.tanh %312 : vector<8x128xf32>
    %314 = arith.mulf %309, %313 : vector<8x128xf32>
    %c3_i32 = arith.constant 3 : i32
    %315 = vector.broadcast %c3_i32 : i32 to vector<8x1xi32>
    %316 = arith.cmpi eq, %10, %315 : vector<8x1xi32>
    %317 = vector.shape_cast %316 : vector<8x1xi1> to vector<8x1xi1>
    %318 = vector.broadcast %317 : vector<8x1xi1> to vector<8x128xi1>
    %319 = arith.select %318, %314, %242 : vector<8x128xi1>, vector<8x128xf32>
    %c32 = arith.constant 32 : index
    %c0_113 = arith.constant 0 : index
    %320 = vector.load %arg15[%c32, %c0_113] : memref<64x512xf32, #tpu.memory_space<vmem>>, vector<8x512xf32>
    %321 = arith.truncf %278 : vector<8x128xf32> to vector<8x128xbf16>
    %c0_114 = arith.constant 0 : index
    %c0_115 = arith.constant 0 : index
    %322 = vector.load %arg4[%c0_114, %c0_115] : memref<128x512xbf16, #tpu.memory_space<vmem>>, vector<128x512xbf16>
    %cst_116 = arith.constant dense<0.000000e+00> : vector<8x512xf32>
    %323 = tpu.matmul %321, %322, %cst_116 {dimension_numbers = #tpu.dot_dimension_numbers<[1], [0], [0], [1], [0, 0, 1, 1], [], []>} : vector<8x128xbf16>, vector<128x512xbf16>, vector<8x512xf32> -> vector<8x512xf32>
    %324 = arith.addf %320, %323 : vector<8x512xf32>
    %325 = vector.extract_strided_slice %324 {offsets = [0, 0], sizes = [8, 128], strides = [1, 1]} : vector<8x512xf32> to vector<8x128xf32>
    %cst_117 = arith.constant 5.000000e-01 : f32
    %326 = vector.broadcast %cst_117 : f32 to vector<8x128xf32>
    %327 = arith.mulf %326, %325 : vector<8x128xf32>
    %328 = math.tanh %327 : vector<8x128xf32>
    %cst_118 = arith.constant 5.000000e-01 : f32
    %329 = vector.broadcast %cst_118 : f32 to vector<8x128xf32>
    %330 = arith.mulf %329, %328 : vector<8x128xf32>
    %cst_119 = arith.constant 5.000000e-01 : f32
    %331 = vector.broadcast %cst_119 : f32 to vector<8x128xf32>
    %332 = arith.addf %330, %331 : vector<8x128xf32>
    %333 = vector.extract_strided_slice %324 {offsets = [0, 128], sizes = [8, 128], strides = [1, 1]} : vector<8x512xf32> to vector<8x128xf32>
    %cst_120 = arith.constant 5.000000e-01 : f32
    %334 = vector.broadcast %cst_120 : f32 to vector<8x128xf32>
    %335 = arith.mulf %334, %333 : vector<8x128xf32>
    %336 = math.tanh %335 : vector<8x128xf32>
    %cst_121 = arith.constant 5.000000e-01 : f32
    %337 = vector.broadcast %cst_121 : f32 to vector<8x128xf32>
    %338 = arith.mulf %337, %336 : vector<8x128xf32>
    %cst_122 = arith.constant 5.000000e-01 : f32
    %339 = vector.broadcast %cst_122 : f32 to vector<8x128xf32>
    %340 = arith.addf %338, %339 : vector<8x128xf32>
    %341 = vector.extract_strided_slice %324 {offsets = [0, 256], sizes = [8, 128], strides = [1, 1]} : vector<8x512xf32> to vector<8x128xf32>
    %342 = math.tanh %341 : vector<8x128xf32>
    %343 = vector.extract_strided_slice %324 {offsets = [0, 384], sizes = [8, 128], strides = [1, 1]} : vector<8x512xf32> to vector<8x128xf32>
    %cst_123 = arith.constant 5.000000e-01 : f32
    %344 = vector.broadcast %cst_123 : f32 to vector<8x128xf32>
    %345 = arith.mulf %344, %343 : vector<8x128xf32>
    %346 = math.tanh %345 : vector<8x128xf32>
    %cst_124 = arith.constant 5.000000e-01 : f32
    %347 = vector.broadcast %cst_124 : f32 to vector<8x128xf32>
    %348 = arith.mulf %347, %346 : vector<8x128xf32>
    %cst_125 = arith.constant 5.000000e-01 : f32
    %349 = vector.broadcast %cst_125 : f32 to vector<8x128xf32>
    %350 = arith.addf %348, %349 : vector<8x128xf32>
    %351 = arith.mulf %340, %276 : vector<8x128xf32>
    %352 = arith.mulf %332, %342 : vector<8x128xf32>
    %353 = arith.addf %351, %352 : vector<8x128xf32>
    %354 = math.tanh %353 : vector<8x128xf32>
    %355 = arith.mulf %350, %354 : vector<8x128xf32>
    %356 = tpu.concatenate %355, %314 in 1 : vector<8x128xf32>, vector<8x128xf32> -> vector<8x256xf32>
    %357 = arith.truncf %356 : vector<8x256xf32> to vector<8x256xbf16>
    %c0_126 = arith.constant 0 : index
    %c0_127 = arith.constant 0 : index
    %358 = vector.load %arg5[%c0_126, %c0_127] : memref<256x512xbf16, #tpu.memory_space<vmem>>, vector<256x512xbf16>
    %cst_128 = arith.constant dense<0.000000e+00> : vector<8x512xf32>
    %359 = tpu.matmul %357, %358, %cst_128 {dimension_numbers = #tpu.dot_dimension_numbers<[1], [0], [0], [1], [0, 0, 1, 1], [], []>} : vector<8x256xbf16>, vector<256x512xbf16>, vector<8x512xf32> -> vector<8x512xf32>
    %360 = arith.addf %359, %9 : vector<8x512xf32>
    %361 = vector.extract_strided_slice %360 {offsets = [0, 0], sizes = [8, 128], strides = [1, 1]} : vector<8x512xf32> to vector<8x128xf32>
    %cst_129 = arith.constant 5.000000e-01 : f32
    %362 = vector.broadcast %cst_129 : f32 to vector<8x128xf32>
    %363 = arith.mulf %362, %361 : vector<8x128xf32>
    %364 = math.tanh %363 : vector<8x128xf32>
    %cst_130 = arith.constant 5.000000e-01 : f32
    %365 = vector.broadcast %cst_130 : f32 to vector<8x128xf32>
    %366 = arith.mulf %365, %364 : vector<8x128xf32>
    %cst_131 = arith.constant 5.000000e-01 : f32
    %367 = vector.broadcast %cst_131 : f32 to vector<8x128xf32>
    %368 = arith.addf %366, %367 : vector<8x128xf32>
    %369 = vector.extract_strided_slice %360 {offsets = [0, 128], sizes = [8, 128], strides = [1, 1]} : vector<8x512xf32> to vector<8x128xf32>
    %cst_132 = arith.constant 5.000000e-01 : f32
    %370 = vector.broadcast %cst_132 : f32 to vector<8x128xf32>
    %371 = arith.mulf %370, %369 : vector<8x128xf32>
    %372 = math.tanh %371 : vector<8x128xf32>
    %cst_133 = arith.constant 5.000000e-01 : f32
    %373 = vector.broadcast %cst_133 : f32 to vector<8x128xf32>
    %374 = arith.mulf %373, %372 : vector<8x128xf32>
    %cst_134 = arith.constant 5.000000e-01 : f32
    %375 = vector.broadcast %cst_134 : f32 to vector<8x128xf32>
    %376 = arith.addf %374, %375 : vector<8x128xf32>
    %377 = vector.extract_strided_slice %360 {offsets = [0, 256], sizes = [8, 128], strides = [1, 1]} : vector<8x512xf32> to vector<8x128xf32>
    %378 = math.tanh %377 : vector<8x128xf32>
    %379 = vector.extract_strided_slice %360 {offsets = [0, 384], sizes = [8, 128], strides = [1, 1]} : vector<8x512xf32> to vector<8x128xf32>
    %cst_135 = arith.constant 5.000000e-01 : f32
    %380 = vector.broadcast %cst_135 : f32 to vector<8x128xf32>
    %381 = arith.mulf %380, %379 : vector<8x128xf32>
    %382 = math.tanh %381 : vector<8x128xf32>
    %cst_136 = arith.constant 5.000000e-01 : f32
    %383 = vector.broadcast %cst_136 : f32 to vector<8x128xf32>
    %384 = arith.mulf %383, %382 : vector<8x128xf32>
    %cst_137 = arith.constant 5.000000e-01 : f32
    %385 = vector.broadcast %cst_137 : f32 to vector<8x128xf32>
    %386 = arith.addf %384, %385 : vector<8x128xf32>
    %387 = arith.mulf %376, %312 : vector<8x128xf32>
    %388 = arith.mulf %368, %378 : vector<8x128xf32>
    %389 = arith.addf %387, %388 : vector<8x128xf32>
    %390 = math.tanh %389 : vector<8x128xf32>
    %391 = arith.mulf %386, %390 : vector<8x128xf32>
    %c4_i32 = arith.constant 4 : i32
    %392 = vector.broadcast %c4_i32 : i32 to vector<8x1xi32>
    %393 = arith.cmpi eq, %10, %392 : vector<8x1xi32>
    %394 = vector.shape_cast %393 : vector<8x1xi1> to vector<8x1xi1>
    %395 = vector.broadcast %394 : vector<8x1xi1> to vector<8x128xi1>
    %396 = arith.select %395, %391, %319 : vector<8x128xi1>, vector<8x128xf32>
    %c40 = arith.constant 40 : index
    %c0_138 = arith.constant 0 : index
    %397 = vector.load %arg15[%c40, %c0_138] : memref<64x512xf32, #tpu.memory_space<vmem>>, vector<8x512xf32>
    %398 = arith.truncf %355 : vector<8x128xf32> to vector<8x128xbf16>
    %c0_139 = arith.constant 0 : index
    %c0_140 = arith.constant 0 : index
    %399 = vector.load %arg4[%c0_139, %c0_140] : memref<128x512xbf16, #tpu.memory_space<vmem>>, vector<128x512xbf16>
    %cst_141 = arith.constant dense<0.000000e+00> : vector<8x512xf32>
    %400 = tpu.matmul %398, %399, %cst_141 {dimension_numbers = #tpu.dot_dimension_numbers<[1], [0], [0], [1], [0, 0, 1, 1], [], []>} : vector<8x128xbf16>, vector<128x512xbf16>, vector<8x512xf32> -> vector<8x512xf32>
    %401 = arith.addf %397, %400 : vector<8x512xf32>
    %402 = vector.extract_strided_slice %401 {offsets = [0, 0], sizes = [8, 128], strides = [1, 1]} : vector<8x512xf32> to vector<8x128xf32>
    %cst_142 = arith.constant 5.000000e-01 : f32
    %403 = vector.broadcast %cst_142 : f32 to vector<8x128xf32>
    %404 = arith.mulf %403, %402 : vector<8x128xf32>
    %405 = math.tanh %404 : vector<8x128xf32>
    %cst_143 = arith.constant 5.000000e-01 : f32
    %406 = vector.broadcast %cst_143 : f32 to vector<8x128xf32>
    %407 = arith.mulf %406, %405 : vector<8x128xf32>
    %cst_144 = arith.constant 5.000000e-01 : f32
    %408 = vector.broadcast %cst_144 : f32 to vector<8x128xf32>
    %409 = arith.addf %407, %408 : vector<8x128xf32>
    %410 = vector.extract_strided_slice %401 {offsets = [0, 128], sizes = [8, 128], strides = [1, 1]} : vector<8x512xf32> to vector<8x128xf32>
    %cst_145 = arith.constant 5.000000e-01 : f32
    %411 = vector.broadcast %cst_145 : f32 to vector<8x128xf32>
    %412 = arith.mulf %411, %410 : vector<8x128xf32>
    %413 = math.tanh %412 : vector<8x128xf32>
    %cst_146 = arith.constant 5.000000e-01 : f32
    %414 = vector.broadcast %cst_146 : f32 to vector<8x128xf32>
    %415 = arith.mulf %414, %413 : vector<8x128xf32>
    %cst_147 = arith.constant 5.000000e-01 : f32
    %416 = vector.broadcast %cst_147 : f32 to vector<8x128xf32>
    %417 = arith.addf %415, %416 : vector<8x128xf32>
    %418 = vector.extract_strided_slice %401 {offsets = [0, 256], sizes = [8, 128], strides = [1, 1]} : vector<8x512xf32> to vector<8x128xf32>
    %419 = math.tanh %418 : vector<8x128xf32>
    %420 = vector.extract_strided_slice %401 {offsets = [0, 384], sizes = [8, 128], strides = [1, 1]} : vector<8x512xf32> to vector<8x128xf32>
    %cst_148 = arith.constant 5.000000e-01 : f32
    %421 = vector.broadcast %cst_148 : f32 to vector<8x128xf32>
    %422 = arith.mulf %421, %420 : vector<8x128xf32>
    %423 = math.tanh %422 : vector<8x128xf32>
    %cst_149 = arith.constant 5.000000e-01 : f32
    %424 = vector.broadcast %cst_149 : f32 to vector<8x128xf32>
    %425 = arith.mulf %424, %423 : vector<8x128xf32>
    %cst_150 = arith.constant 5.000000e-01 : f32
    %426 = vector.broadcast %cst_150 : f32 to vector<8x128xf32>
    %427 = arith.addf %425, %426 : vector<8x128xf32>
    %428 = arith.mulf %417, %353 : vector<8x128xf32>
    %429 = arith.mulf %409, %419 : vector<8x128xf32>
    %430 = arith.addf %428, %429 : vector<8x128xf32>
    %431 = math.tanh %430 : vector<8x128xf32>
    %432 = arith.mulf %427, %431 : vector<8x128xf32>
    %433 = tpu.concatenate %432, %391 in 1 : vector<8x128xf32>, vector<8x128xf32> -> vector<8x256xf32>
    %434 = arith.truncf %433 : vector<8x256xf32> to vector<8x256xbf16>
    %c0_151 = arith.constant 0 : index
    %c0_152 = arith.constant 0 : index
    %435 = vector.load %arg5[%c0_151, %c0_152] : memref<256x512xbf16, #tpu.memory_space<vmem>>, vector<256x512xbf16>
    %cst_153 = arith.constant dense<0.000000e+00> : vector<8x512xf32>
    %436 = tpu.matmul %434, %435, %cst_153 {dimension_numbers = #tpu.dot_dimension_numbers<[1], [0], [0], [1], [0, 0, 1, 1], [], []>} : vector<8x256xbf16>, vector<256x512xbf16>, vector<8x512xf32> -> vector<8x512xf32>
    %437 = arith.addf %436, %9 : vector<8x512xf32>
    %438 = vector.extract_strided_slice %437 {offsets = [0, 0], sizes = [8, 128], strides = [1, 1]} : vector<8x512xf32> to vector<8x128xf32>
    %cst_154 = arith.constant 5.000000e-01 : f32
    %439 = vector.broadcast %cst_154 : f32 to vector<8x128xf32>
    %440 = arith.mulf %439, %438 : vector<8x128xf32>
    %441 = math.tanh %440 : vector<8x128xf32>
    %cst_155 = arith.constant 5.000000e-01 : f32
    %442 = vector.broadcast %cst_155 : f32 to vector<8x128xf32>
    %443 = arith.mulf %442, %441 : vector<8x128xf32>
    %cst_156 = arith.constant 5.000000e-01 : f32
    %444 = vector.broadcast %cst_156 : f32 to vector<8x128xf32>
    %445 = arith.addf %443, %444 : vector<8x128xf32>
    %446 = vector.extract_strided_slice %437 {offsets = [0, 128], sizes = [8, 128], strides = [1, 1]} : vector<8x512xf32> to vector<8x128xf32>
    %cst_157 = arith.constant 5.000000e-01 : f32
    %447 = vector.broadcast %cst_157 : f32 to vector<8x128xf32>
    %448 = arith.mulf %447, %446 : vector<8x128xf32>
    %449 = math.tanh %448 : vector<8x128xf32>
    %cst_158 = arith.constant 5.000000e-01 : f32
    %450 = vector.broadcast %cst_158 : f32 to vector<8x128xf32>
    %451 = arith.mulf %450, %449 : vector<8x128xf32>
    %cst_159 = arith.constant 5.000000e-01 : f32
    %452 = vector.broadcast %cst_159 : f32 to vector<8x128xf32>
    %453 = arith.addf %451, %452 : vector<8x128xf32>
    %454 = vector.extract_strided_slice %437 {offsets = [0, 256], sizes = [8, 128], strides = [1, 1]} : vector<8x512xf32> to vector<8x128xf32>
    %455 = math.tanh %454 : vector<8x128xf32>
    %456 = vector.extract_strided_slice %437 {offsets = [0, 384], sizes = [8, 128], strides = [1, 1]} : vector<8x512xf32> to vector<8x128xf32>
    %cst_160 = arith.constant 5.000000e-01 : f32
    %457 = vector.broadcast %cst_160 : f32 to vector<8x128xf32>
    %458 = arith.mulf %457, %456 : vector<8x128xf32>
    %459 = math.tanh %458 : vector<8x128xf32>
    %cst_161 = arith.constant 5.000000e-01 : f32
    %460 = vector.broadcast %cst_161 : f32 to vector<8x128xf32>
    %461 = arith.mulf %460, %459 : vector<8x128xf32>
    %cst_162 = arith.constant 5.000000e-01 : f32
    %462 = vector.broadcast %cst_162 : f32 to vector<8x128xf32>
    %463 = arith.addf %461, %462 : vector<8x128xf32>
    %464 = arith.mulf %453, %389 : vector<8x128xf32>
    %465 = arith.mulf %445, %455 : vector<8x128xf32>
    %466 = arith.addf %464, %465 : vector<8x128xf32>
    %467 = math.tanh %466 : vector<8x128xf32>
    %468 = arith.mulf %463, %467 : vector<8x128xf32>
    %c5_i32 = arith.constant 5 : i32
    %469 = vector.broadcast %c5_i32 : i32 to vector<8x1xi32>
    %470 = arith.cmpi eq, %10, %469 : vector<8x1xi32>
    %471 = vector.shape_cast %470 : vector<8x1xi1> to vector<8x1xi1>
    %472 = vector.broadcast %471 : vector<8x1xi1> to vector<8x128xi1>
    %473 = arith.select %472, %468, %396 : vector<8x128xi1>, vector<8x128xf32>
    %c48 = arith.constant 48 : index
    %c0_163 = arith.constant 0 : index
    %474 = vector.load %arg15[%c48, %c0_163] : memref<64x512xf32, #tpu.memory_space<vmem>>, vector<8x512xf32>
    %475 = arith.truncf %432 : vector<8x128xf32> to vector<8x128xbf16>
    %c0_164 = arith.constant 0 : index
    %c0_165 = arith.constant 0 : index
    %476 = vector.load %arg4[%c0_164, %c0_165] : memref<128x512xbf16, #tpu.memory_space<vmem>>, vector<128x512xbf16>
    %cst_166 = arith.constant dense<0.000000e+00> : vector<8x512xf32>
    %477 = tpu.matmul %475, %476, %cst_166 {dimension_numbers = #tpu.dot_dimension_numbers<[1], [0], [0], [1], [0, 0, 1, 1], [], []>} : vector<8x128xbf16>, vector<128x512xbf16>, vector<8x512xf32> -> vector<8x512xf32>
    %478 = arith.addf %474, %477 : vector<8x512xf32>
    %479 = vector.extract_strided_slice %478 {offsets = [0, 0], sizes = [8, 128], strides = [1, 1]} : vector<8x512xf32> to vector<8x128xf32>
    %cst_167 = arith.constant 5.000000e-01 : f32
    %480 = vector.broadcast %cst_167 : f32 to vector<8x128xf32>
    %481 = arith.mulf %480, %479 : vector<8x128xf32>
    %482 = math.tanh %481 : vector<8x128xf32>
    %cst_168 = arith.constant 5.000000e-01 : f32
    %483 = vector.broadcast %cst_168 : f32 to vector<8x128xf32>
    %484 = arith.mulf %483, %482 : vector<8x128xf32>
    %cst_169 = arith.constant 5.000000e-01 : f32
    %485 = vector.broadcast %cst_169 : f32 to vector<8x128xf32>
    %486 = arith.addf %484, %485 : vector<8x128xf32>
    %487 = vector.extract_strided_slice %478 {offsets = [0, 128], sizes = [8, 128], strides = [1, 1]} : vector<8x512xf32> to vector<8x128xf32>
    %cst_170 = arith.constant 5.000000e-01 : f32
    %488 = vector.broadcast %cst_170 : f32 to vector<8x128xf32>
    %489 = arith.mulf %488, %487 : vector<8x128xf32>
    %490 = math.tanh %489 : vector<8x128xf32>
    %cst_171 = arith.constant 5.000000e-01 : f32
    %491 = vector.broadcast %cst_171 : f32 to vector<8x128xf32>
    %492 = arith.mulf %491, %490 : vector<8x128xf32>
    %cst_172 = arith.constant 5.000000e-01 : f32
    %493 = vector.broadcast %cst_172 : f32 to vector<8x128xf32>
    %494 = arith.addf %492, %493 : vector<8x128xf32>
    %495 = vector.extract_strided_slice %478 {offsets = [0, 256], sizes = [8, 128], strides = [1, 1]} : vector<8x512xf32> to vector<8x128xf32>
    %496 = math.tanh %495 : vector<8x128xf32>
    %497 = vector.extract_strided_slice %478 {offsets = [0, 384], sizes = [8, 128], strides = [1, 1]} : vector<8x512xf32> to vector<8x128xf32>
    %cst_173 = arith.constant 5.000000e-01 : f32
    %498 = vector.broadcast %cst_173 : f32 to vector<8x128xf32>
    %499 = arith.mulf %498, %497 : vector<8x128xf32>
    %500 = math.tanh %499 : vector<8x128xf32>
    %cst_174 = arith.constant 5.000000e-01 : f32
    %501 = vector.broadcast %cst_174 : f32 to vector<8x128xf32>
    %502 = arith.mulf %501, %500 : vector<8x128xf32>
    %cst_175 = arith.constant 5.000000e-01 : f32
    %503 = vector.broadcast %cst_175 : f32 to vector<8x128xf32>
    %504 = arith.addf %502, %503 : vector<8x128xf32>
    %505 = arith.mulf %494, %430 : vector<8x128xf32>
    %506 = arith.mulf %486, %496 : vector<8x128xf32>
    %507 = arith.addf %505, %506 : vector<8x128xf32>
    %508 = math.tanh %507 : vector<8x128xf32>
    %509 = arith.mulf %504, %508 : vector<8x128xf32>
    %510 = tpu.concatenate %509, %468 in 1 : vector<8x128xf32>, vector<8x128xf32> -> vector<8x256xf32>
    %511 = arith.truncf %510 : vector<8x256xf32> to vector<8x256xbf16>
    %c0_176 = arith.constant 0 : index
    %c0_177 = arith.constant 0 : index
    %512 = vector.load %arg5[%c0_176, %c0_177] : memref<256x512xbf16, #tpu.memory_space<vmem>>, vector<256x512xbf16>
    %cst_178 = arith.constant dense<0.000000e+00> : vector<8x512xf32>
    %513 = tpu.matmul %511, %512, %cst_178 {dimension_numbers = #tpu.dot_dimension_numbers<[1], [0], [0], [1], [0, 0, 1, 1], [], []>} : vector<8x256xbf16>, vector<256x512xbf16>, vector<8x512xf32> -> vector<8x512xf32>
    %514 = arith.addf %513, %9 : vector<8x512xf32>
    %515 = vector.extract_strided_slice %514 {offsets = [0, 0], sizes = [8, 128], strides = [1, 1]} : vector<8x512xf32> to vector<8x128xf32>
    %cst_179 = arith.constant 5.000000e-01 : f32
    %516 = vector.broadcast %cst_179 : f32 to vector<8x128xf32>
    %517 = arith.mulf %516, %515 : vector<8x128xf32>
    %518 = math.tanh %517 : vector<8x128xf32>
    %cst_180 = arith.constant 5.000000e-01 : f32
    %519 = vector.broadcast %cst_180 : f32 to vector<8x128xf32>
    %520 = arith.mulf %519, %518 : vector<8x128xf32>
    %cst_181 = arith.constant 5.000000e-01 : f32
    %521 = vector.broadcast %cst_181 : f32 to vector<8x128xf32>
    %522 = arith.addf %520, %521 : vector<8x128xf32>
    %523 = vector.extract_strided_slice %514 {offsets = [0, 128], sizes = [8, 128], strides = [1, 1]} : vector<8x512xf32> to vector<8x128xf32>
    %cst_182 = arith.constant 5.000000e-01 : f32
    %524 = vector.broadcast %cst_182 : f32 to vector<8x128xf32>
    %525 = arith.mulf %524, %523 : vector<8x128xf32>
    %526 = math.tanh %525 : vector<8x128xf32>
    %cst_183 = arith.constant 5.000000e-01 : f32
    %527 = vector.broadcast %cst_183 : f32 to vector<8x128xf32>
    %528 = arith.mulf %527, %526 : vector<8x128xf32>
    %cst_184 = arith.constant 5.000000e-01 : f32
    %529 = vector.broadcast %cst_184 : f32 to vector<8x128xf32>
    %530 = arith.addf %528, %529 : vector<8x128xf32>
    %531 = vector.extract_strided_slice %514 {offsets = [0, 256], sizes = [8, 128], strides = [1, 1]} : vector<8x512xf32> to vector<8x128xf32>
    %532 = math.tanh %531 : vector<8x128xf32>
    %533 = vector.extract_strided_slice %514 {offsets = [0, 384], sizes = [8, 128], strides = [1, 1]} : vector<8x512xf32> to vector<8x128xf32>
    %cst_185 = arith.constant 5.000000e-01 : f32
    %534 = vector.broadcast %cst_185 : f32 to vector<8x128xf32>
    %535 = arith.mulf %534, %533 : vector<8x128xf32>
    %536 = math.tanh %535 : vector<8x128xf32>
    %cst_186 = arith.constant 5.000000e-01 : f32
    %537 = vector.broadcast %cst_186 : f32 to vector<8x128xf32>
    %538 = arith.mulf %537, %536 : vector<8x128xf32>
    %cst_187 = arith.constant 5.000000e-01 : f32
    %539 = vector.broadcast %cst_187 : f32 to vector<8x128xf32>
    %540 = arith.addf %538, %539 : vector<8x128xf32>
    %541 = arith.mulf %530, %466 : vector<8x128xf32>
    %542 = arith.mulf %522, %532 : vector<8x128xf32>
    %543 = arith.addf %541, %542 : vector<8x128xf32>
    %544 = math.tanh %543 : vector<8x128xf32>
    %545 = arith.mulf %540, %544 : vector<8x128xf32>
    %c6_i32 = arith.constant 6 : i32
    %546 = vector.broadcast %c6_i32 : i32 to vector<8x1xi32>
    %547 = arith.cmpi eq, %10, %546 : vector<8x1xi32>
    %548 = vector.shape_cast %547 : vector<8x1xi1> to vector<8x1xi1>
    %549 = vector.broadcast %548 : vector<8x1xi1> to vector<8x128xi1>
    %550 = arith.select %549, %545, %473 : vector<8x128xi1>, vector<8x128xf32>
    %c56 = arith.constant 56 : index
    %c0_188 = arith.constant 0 : index
    %551 = vector.load %arg15[%c56, %c0_188] : memref<64x512xf32, #tpu.memory_space<vmem>>, vector<8x512xf32>
    %552 = arith.truncf %509 : vector<8x128xf32> to vector<8x128xbf16>
    %c0_189 = arith.constant 0 : index
    %c0_190 = arith.constant 0 : index
    %553 = vector.load %arg4[%c0_189, %c0_190] : memref<128x512xbf16, #tpu.memory_space<vmem>>, vector<128x512xbf16>
    %cst_191 = arith.constant dense<0.000000e+00> : vector<8x512xf32>
    %554 = tpu.matmul %552, %553, %cst_191 {dimension_numbers = #tpu.dot_dimension_numbers<[1], [0], [0], [1], [0, 0, 1, 1], [], []>} : vector<8x128xbf16>, vector<128x512xbf16>, vector<8x512xf32> -> vector<8x512xf32>
    %555 = arith.addf %551, %554 : vector<8x512xf32>
    %556 = vector.extract_strided_slice %555 {offsets = [0, 0], sizes = [8, 128], strides = [1, 1]} : vector<8x512xf32> to vector<8x128xf32>
    %cst_192 = arith.constant 5.000000e-01 : f32
    %557 = vector.broadcast %cst_192 : f32 to vector<8x128xf32>
    %558 = arith.mulf %557, %556 : vector<8x128xf32>
    %559 = math.tanh %558 : vector<8x128xf32>
    %cst_193 = arith.constant 5.000000e-01 : f32
    %560 = vector.broadcast %cst_193 : f32 to vector<8x128xf32>
    %561 = arith.mulf %560, %559 : vector<8x128xf32>
    %cst_194 = arith.constant 5.000000e-01 : f32
    %562 = vector.broadcast %cst_194 : f32 to vector<8x128xf32>
    %563 = arith.addf %561, %562 : vector<8x128xf32>
    %564 = vector.extract_strided_slice %555 {offsets = [0, 128], sizes = [8, 128], strides = [1, 1]} : vector<8x512xf32> to vector<8x128xf32>
    %cst_195 = arith.constant 5.000000e-01 : f32
    %565 = vector.broadcast %cst_195 : f32 to vector<8x128xf32>
    %566 = arith.mulf %565, %564 : vector<8x128xf32>
    %567 = math.tanh %566 : vector<8x128xf32>
    %cst_196 = arith.constant 5.000000e-01 : f32
    %568 = vector.broadcast %cst_196 : f32 to vector<8x128xf32>
    %569 = arith.mulf %568, %567 : vector<8x128xf32>
    %cst_197 = arith.constant 5.000000e-01 : f32
    %570 = vector.broadcast %cst_197 : f32 to vector<8x128xf32>
    %571 = arith.addf %569, %570 : vector<8x128xf32>
    %572 = vector.extract_strided_slice %555 {offsets = [0, 256], sizes = [8, 128], strides = [1, 1]} : vector<8x512xf32> to vector<8x128xf32>
    %573 = math.tanh %572 : vector<8x128xf32>
    %574 = vector.extract_strided_slice %555 {offsets = [0, 384], sizes = [8, 128], strides = [1, 1]} : vector<8x512xf32> to vector<8x128xf32>
    %cst_198 = arith.constant 5.000000e-01 : f32
    %575 = vector.broadcast %cst_198 : f32 to vector<8x128xf32>
    %576 = arith.mulf %575, %574 : vector<8x128xf32>
    %577 = math.tanh %576 : vector<8x128xf32>
    %cst_199 = arith.constant 5.000000e-01 : f32
    %578 = vector.broadcast %cst_199 : f32 to vector<8x128xf32>
    %579 = arith.mulf %578, %577 : vector<8x128xf32>
    %cst_200 = arith.constant 5.000000e-01 : f32
    %580 = vector.broadcast %cst_200 : f32 to vector<8x128xf32>
    %581 = arith.addf %579, %580 : vector<8x128xf32>
    %582 = arith.mulf %571, %507 : vector<8x128xf32>
    %583 = arith.mulf %563, %573 : vector<8x128xf32>
    %584 = arith.addf %582, %583 : vector<8x128xf32>
    %585 = math.tanh %584 : vector<8x128xf32>
    %586 = arith.mulf %581, %585 : vector<8x128xf32>
    %587 = tpu.concatenate %586, %545 in 1 : vector<8x128xf32>, vector<8x128xf32> -> vector<8x256xf32>
    %588 = arith.truncf %587 : vector<8x256xf32> to vector<8x256xbf16>
    %c0_201 = arith.constant 0 : index
    %c0_202 = arith.constant 0 : index
    %589 = vector.load %arg5[%c0_201, %c0_202] : memref<256x512xbf16, #tpu.memory_space<vmem>>, vector<256x512xbf16>
    %cst_203 = arith.constant dense<0.000000e+00> : vector<8x512xf32>
    %590 = tpu.matmul %588, %589, %cst_203 {dimension_numbers = #tpu.dot_dimension_numbers<[1], [0], [0], [1], [0, 0, 1, 1], [], []>} : vector<8x256xbf16>, vector<256x512xbf16>, vector<8x512xf32> -> vector<8x512xf32>
    %591 = arith.addf %590, %9 : vector<8x512xf32>
    %592 = vector.extract_strided_slice %591 {offsets = [0, 0], sizes = [8, 128], strides = [1, 1]} : vector<8x512xf32> to vector<8x128xf32>
    %cst_204 = arith.constant 5.000000e-01 : f32
    %593 = vector.broadcast %cst_204 : f32 to vector<8x128xf32>
    %594 = arith.mulf %593, %592 : vector<8x128xf32>
    %595 = math.tanh %594 : vector<8x128xf32>
    %cst_205 = arith.constant 5.000000e-01 : f32
    %596 = vector.broadcast %cst_205 : f32 to vector<8x128xf32>
    %597 = arith.mulf %596, %595 : vector<8x128xf32>
    %cst_206 = arith.constant 5.000000e-01 : f32
    %598 = vector.broadcast %cst_206 : f32 to vector<8x128xf32>
    %599 = arith.addf %597, %598 : vector<8x128xf32>
    %600 = vector.extract_strided_slice %591 {offsets = [0, 128], sizes = [8, 128], strides = [1, 1]} : vector<8x512xf32> to vector<8x128xf32>
    %cst_207 = arith.constant 5.000000e-01 : f32
    %601 = vector.broadcast %cst_207 : f32 to vector<8x128xf32>
    %602 = arith.mulf %601, %600 : vector<8x128xf32>
    %603 = math.tanh %602 : vector<8x128xf32>
    %cst_208 = arith.constant 5.000000e-01 : f32
    %604 = vector.broadcast %cst_208 : f32 to vector<8x128xf32>
    %605 = arith.mulf %604, %603 : vector<8x128xf32>
    %cst_209 = arith.constant 5.000000e-01 : f32
    %606 = vector.broadcast %cst_209 : f32 to vector<8x128xf32>
    %607 = arith.addf %605, %606 : vector<8x128xf32>
    %608 = vector.extract_strided_slice %591 {offsets = [0, 256], sizes = [8, 128], strides = [1, 1]} : vector<8x512xf32> to vector<8x128xf32>
    %609 = math.tanh %608 : vector<8x128xf32>
    %610 = vector.extract_strided_slice %591 {offsets = [0, 384], sizes = [8, 128], strides = [1, 1]} : vector<8x512xf32> to vector<8x128xf32>
    %cst_210 = arith.constant 5.000000e-01 : f32
    %611 = vector.broadcast %cst_210 : f32 to vector<8x128xf32>
    %612 = arith.mulf %611, %610 : vector<8x128xf32>
    %613 = math.tanh %612 : vector<8x128xf32>
    %cst_211 = arith.constant 5.000000e-01 : f32
    %614 = vector.broadcast %cst_211 : f32 to vector<8x128xf32>
    %615 = arith.mulf %614, %613 : vector<8x128xf32>
    %cst_212 = arith.constant 5.000000e-01 : f32
    %616 = vector.broadcast %cst_212 : f32 to vector<8x128xf32>
    %617 = arith.addf %615, %616 : vector<8x128xf32>
    %618 = arith.mulf %607, %543 : vector<8x128xf32>
    %619 = arith.mulf %599, %609 : vector<8x128xf32>
    %620 = arith.addf %618, %619 : vector<8x128xf32>
    %621 = math.tanh %620 : vector<8x128xf32>
    %622 = arith.mulf %617, %621 : vector<8x128xf32>
    %c7_i32 = arith.constant 7 : i32
    %623 = vector.broadcast %c7_i32 : i32 to vector<8x1xi32>
    %624 = arith.cmpi eq, %10, %623 : vector<8x1xi32>
    %625 = vector.shape_cast %624 : vector<8x1xi1> to vector<8x1xi1>
    %626 = vector.broadcast %625 : vector<8x1xi1> to vector<8x128xi1>
    %627 = arith.select %626, %622, %550 : vector<8x128xi1>, vector<8x128xf32>
    %c0_213 = arith.constant 0 : index
    %c0_214 = arith.constant 0 : index
    %628 = vector.load %arg7[%c0_213, %c0_214] : memref<128x4xf32, #tpu.memory_space<vmem>>, vector<128x4xf32>
    %cst_215 = arith.constant dense<0.000000e+00> : vector<8x4xf32>
    %629 = tpu.matmul %627, %628, %cst_215 {dimension_numbers = #tpu.dot_dimension_numbers<[1], [0], [0], [1], [0, 0, 1, 1], [], []>} : vector<8x128xf32>, vector<128x4xf32>, vector<8x4xf32> -> vector<8x4xf32>
    %c0_216 = arith.constant 0 : index
    %c0_217 = arith.constant 0 : index
    %630 = vector.load %arg8[%c0_216, %c0_217] : memref<1x4xf32, #tpu.memory_space<vmem>>, vector<1x4xf32>
    %631 = vector.broadcast %630 : vector<1x4xf32> to vector<8x4xf32>
    %632 = arith.addf %629, %631 : vector<8x4xf32>
    %cst_218 = arith.constant 0.000000e+00 : f32
    %633 = vector.broadcast %cst_218 : f32 to vector<8x4xf32>
    %634 = arith.maximumf %632, %633 : vector<8x4xf32>
    %c0_219 = arith.constant 0 : index
    %c0_220 = arith.constant 0 : index
    %635 = vector.load %arg9[%c0_219, %c0_220] : memref<4x4xf32, #tpu.memory_space<vmem>>, vector<4x4xf32>
    %cst_221 = arith.constant dense<0.000000e+00> : vector<8x4xf32>
    %636 = tpu.matmul %634, %635, %cst_221 {dimension_numbers = #tpu.dot_dimension_numbers<[1], [0], [0], [1], [0, 0, 1, 1], [], []>} : vector<8x4xf32>, vector<4x4xf32>, vector<8x4xf32> -> vector<8x4xf32>
    %c0_222 = arith.constant 0 : index
    %c0_223 = arith.constant 0 : index
    %637 = vector.load %arg10[%c0_222, %c0_223] : memref<1x4xf32, #tpu.memory_space<vmem>>, vector<1x4xf32>
    %638 = vector.broadcast %637 : vector<1x4xf32> to vector<8x4xf32>
    %639 = arith.addf %636, %638 : vector<8x4xf32>
    %cst_224 = arith.constant 0.000000e+00 : f32
    %640 = vector.broadcast %cst_224 : f32 to vector<8x4xf32>
    %641 = arith.maximumf %639, %640 : vector<8x4xf32>
    %c0_225 = arith.constant 0 : index
    %c0_226 = arith.constant 0 : index
    %642 = vector.load %arg11[%c0_225, %c0_226] : memref<4x8xf32, #tpu.memory_space<vmem>>, vector<4x8xf32>
    %cst_227 = arith.constant dense<0.000000e+00> : vector<8x8xf32>
    %643 = tpu.matmul %641, %642, %cst_227 {dimension_numbers = #tpu.dot_dimension_numbers<[1], [0], [0], [1], [0, 0, 1, 1], [], []>} : vector<8x4xf32>, vector<4x8xf32>, vector<8x8xf32> -> vector<8x8xf32>
    %c0_228 = arith.constant 0 : index
    %c0_229 = arith.constant 0 : index
    %644 = vector.load %arg12[%c0_228, %c0_229] : memref<1x8xf32, #tpu.memory_space<vmem>>, vector<1x8xf32>
    %645 = vector.broadcast %644 : vector<1x8xf32> to vector<8x8xf32>
    %646 = arith.addf %643, %645 : vector<8x8xf32>
    %cst_230 = arith.constant 0.000000e+00 : f32
    %647 = vector.broadcast %cst_230 : f32 to vector<8x8xf32>
    %648 = arith.maximumf %646, %647 : vector<8x8xf32>
    %c0_231 = arith.constant 0 : index
    %c0_232 = arith.constant 0 : index
    %649 = vector.load %arg13[%c0_231, %c0_232] : memref<8x8xf32, #tpu.memory_space<vmem>>, vector<8x8xf32>
    tpu.vector_store %arg13[%c0_231, %c0_232], %648 {strides = array<i32>} : memref<8x8xf32, #tpu.memory_space<vmem>>, vector<8x8xf32>,
    %cst_233 = arith.constant dense<0xFF800000> : vector<8xf32>
    %650 = vector.multi_reduction <maximumf>, %648, %cst_233 [1] : vector<8x8xf32> to vector<8xf32>
    %651 = vector.shape_cast %650 : vector<8xf32> to vector<8x1xf32>
    %652 = vector.broadcast %651 : vector<8x1xf32> to vector<8x8xf32>
    %653 = arith.subf %648, %652 : vector<8x8xf32>
    %654 = math.exp %653 : vector<8x8xf32>
    %cst_234 = arith.constant dense<0.000000e+00> : vector<8xf32>
    %655 = vector.multi_reduction <add>, %654, %cst_234 [1] : vector<8x8xf32> to vector<8xf32>
    %656 = vector.shape_cast %655 : vector<8xf32> to vector<8x1xf32>
    %657 = tpu.reciprocal %656 {approx = true} : vector<8x1xf32> -> vector<8x1xf32>
    %658 = vector.broadcast %657 : vector<8x1xf32> to vector<8x8xf32>
    %659 = arith.mulf %654, %658 : vector<8x8xf32>
    %c0_235 = arith.constant 0 : index
    %c0_236 = arith.constant 0 : index
    %660 = vector.load %arg14[%c0_235, %c0_236] : memref<8x8xf32, #tpu.memory_space<vmem>>, vector<8x8xf32>
    tpu.vector_store %arg14[%c0_235, %c0_236], %659 {strides = array<i32>} : memref<8x8xf32, #tpu.memory_space<vmem>>, vector<8x8xf32>,
    return
  }
}

</mosaic_0001>

<llo_original>
// kernel: tpu_custom_call.1
$region0: #{tpu_custom_call.1}
  #allocation0 [shape = 'u32[]', space=smem, size = 0x4, offset = 0x4, fixed_abs, tag = 'smem constant byte address 0x4 - core index']
  #allocation1 [shape = 'u32[144,128]{1,0:T(1,128)}', space=vmem, size = 0x12000, scoped, tag = 'internal scratch']
  #allocation2 [shape = 'f32[64,512]{1,0:T(8,128)}', space=vmem, size = 0x20000, scoped, tag = 'scratch operand']
  %s0 = inlined_call_operand.vmem [shape: bf16[64,128], index: 0, kind: input, shape index: {}]
  %s1 = inlined_call_operand.vmem [shape: s32[8,1], index: 1, kind: input, shape index: {}]
  %s2 = inlined_call_operand.hbm [shape: bf16[128,512], index: 2, kind: input, shape index: {}]
  %s3 = inlined_call_operand.vmem [shape: f32[1,512], index: 3, kind: input, shape index: {}]
  %s4 = inlined_call_operand.hbm [shape: bf16[128,512], index: 4, kind: input, shape index: {}]
  %s5 = inlined_call_operand.hbm [shape: bf16[256,512], index: 5, kind: input, shape index: {}]
  %s6 = inlined_call_operand.vmem [shape: f32[1,512], index: 6, kind: input, shape index: {}]
  %s7 = inlined_call_operand.vmem [shape: f32[128,4], index: 7, kind: input, shape index: {}]
  %s8 = inlined_call_operand.vmem [shape: f32[1,4], index: 8, kind: input, shape index: {}]
  %s9 = inlined_call_operand.vmem [shape: f32[4,4], index: 9, kind: input, shape index: {}]
  %s10 = inlined_call_operand.vmem [shape: f32[1,4], index: 10, kind: input, shape index: {}]
  %s11 = inlined_call_operand.vmem [shape: f32[4,8], index: 11, kind: input, shape index: {}]
  %s12 = inlined_call_operand.vmem [shape: f32[1,8], index: 12, kind: input, shape index: {}]
  %s13 = inlined_call_operand.hbm [shape: f32[8,8], index: 13, kind: output, shape index: {0}]
  %s14 = inlined_call_operand.hbm [shape: f32[8,8], index: 14, kind: output, shape index: {1}]
  %15 = xla_tuple %s13, %s14
  %s16 = sld [smem:[#allocation0]]
  $region82: #{tpu_custom_call.1} parent=0
    _
  %s18 = ssub.s32 1, %s16
  %s19 = scalar_select 0, %s18, %s16
  $region1: #{tpu_custom_call.1} parent=0
    #allocation3 [shape = 'u8[131072]{0}', space=vmem, size = 0x20000, scoped, tag = 'input window, operand 2, single buffered']
    #allocation4 [shape = 's32[1]{0}', space=sflag, size = 0x4, scoped, tag = 'scoped memory for tpu_custom_call.1']
    #allocation5 [shape = 's32[1]{0}', space=sflag, size = 0x4, scoped, tag = 'scoped memory for tpu_custom_call.1']
    #allocation6 [shape = 'u8[131072]{0}', space=vmem, size = 0x20000, scoped, tag = 'input window, operand 4, single buffered']
    #allocation7 [shape = 's32[1]{0}', space=sflag, size = 0x4, scoped, tag = 'scoped memory for tpu_custom_call.1']
    #allocation8 [shape = 'u8[262144]{0}', space=vmem, size = 0x40000, scoped, tag = 'input window, operand 5, single buffered']
    #allocation9 [shape = 'u8[4096]{0}', space=vmem, size = 0x1000, scoped, tag = 'output window, operand 0, single buffered']
    #allocation10 [shape = 'u8[4096]{0}', space=vmem, size = 0x1000, scoped, tag = 'output window, operand 1, single buffered']
    #allocation11 [shape = 's32[1]{0}', space=sflag, size = 0x4, scoped, tag = 'scoped memory for tpu_custom_call.1']
    %20 = vsyncpa [#allocation4], 0
    %21 = vsyncpa [#allocation7], 0
    %22 = vsyncpa [#allocation5], 0
    %23 = vsyncpa [#allocation11], 0
    // Predicated region
    $region2: #{tpu_custom_call.1} parent=1 // pred_check
      _
    $region3: #{tpu_custom_call.1} parent=1 // pred_check_branch
      %25 = sbr.rel (0) target = $region5
    $region4: #{tpu_custom_call.1} parent=1 // pred_region
      _
    $region5: #{tpu_custom_call.1} parent=1 // pred_fallthru
      _
    // Predicated region
    $region6: #{tpu_custom_call.1} parent=1 // pred_check
      _
    $region7: #{tpu_custom_call.1} parent=1 // pred_check_branch
      %27 = sbr.rel (0) target = $region9
    $region8: #{tpu_custom_call.1} parent=1 // pred_region
      _
    $region9: #{tpu_custom_call.1} parent=1 // pred_fallthru
      _
    // Predicated region
    $region10: #{tpu_custom_call.1} parent=1 // pred_check
      _
    $region11: #{tpu_custom_call.1} parent=1 // pred_check_branch
      %29 = sbr.rel (0) target = $region13
    $region12: #{tpu_custom_call.1} parent=1 // pred_region
      %s31 = ssub.s32 4096, 4096
      %32 = vsyncadd [#allocation4], %s31
      %s33 = sshll.u32 [#allocation3], 4
      %s34 = int_to_ptr.vmem [resolvable:$true] %s33
      %39 = dma.hbm_to_vmem [thread:$0]  %s2, 4096, %s34, [#allocation4], 256, 256, 16
    $region13: #{tpu_custom_call.1} parent=1 // pred_fallthru
      _
    // Predicated region
    $region14: #{tpu_custom_call.1} parent=1 // pred_check
      _
    $region15: #{tpu_custom_call.1} parent=1 // pred_check_branch
      %41 = sbr.rel (0) target = $region17
    $region16: #{tpu_custom_call.1} parent=1 // pred_region
      _
    $region17: #{tpu_custom_call.1} parent=1 // pred_fallthru
      _
    // Predicated region
    $region18: #{tpu_custom_call.1} parent=1 // pred_check
      _
    $region19: #{tpu_custom_call.1} parent=1 // pred_check_branch
      %43 = sbr.rel (0) target = $region21
    $region20: #{tpu_custom_call.1} parent=1 // pred_region
      %s45 = ssub.s32 4096, 4096
      %46 = vsyncadd [#allocation7], %s45
      %s47 = sshll.u32 [#allocation6], 4
      %s48 = int_to_ptr.vmem [resolvable:$true] %s47
      %53 = dma.hbm_to_vmem [thread:$0]  %s4, 4096, %s48, [#allocation7], 256, 256, 16
    $region21: #{tpu_custom_call.1} parent=1 // pred_fallthru
      _
    // Predicated region
    $region22: #{tpu_custom_call.1} parent=1 // pred_check
      _
    $region23: #{tpu_custom_call.1} parent=1 // pred_check_branch
      %55 = sbr.rel (0) target = $region25
    $region24: #{tpu_custom_call.1} parent=1 // pred_region
      %s57 = ssub.s32 8192, 8192
      %58 = vsyncadd [#allocation7], %s57
      %s59 = sshll.u32 [#allocation8], 4
      %s60 = int_to_ptr.vmem [resolvable:$true] %s59
      %65 = dma.hbm_to_vmem [thread:$0]  %s5, 8192, %s60, [#allocation7], 256, 256, 16
    $region25: #{tpu_custom_call.1} parent=1 // pred_fallthru
      _
    // Predicated region
    $region26: #{tpu_custom_call.1} parent=1 // pred_check
      _
    $region27: #{tpu_custom_call.1} parent=1 // pred_check_branch
      %67 = sbr.rel (0) target = $region29
    $region28: #{tpu_custom_call.1} parent=1 // pred_region
      _
    $region29: #{tpu_custom_call.1} parent=1 // pred_fallthru
      _
    // Predicated region
    $region30: #{tpu_custom_call.1} parent=1 // pred_check
      _
    $region31: #{tpu_custom_call.1} parent=1 // pred_check_branch
      %69 = sbr.rel (0) target = $region33
    $region32: #{tpu_custom_call.1} parent=1 // pred_region
      _
    $region33: #{tpu_custom_call.1} parent=1 // pred_fallthru
      _
    // Predicated region
    $region34: #{tpu_custom_call.1} parent=1 // pred_check
      _
    $region35: #{tpu_custom_call.1} parent=1 // pred_check_branch
      %71 = sbr.rel (0) target = $region37
    $region36: #{tpu_custom_call.1} parent=1 // pred_region
      _
    $region37: #{tpu_custom_call.1} parent=1 // pred_fallthru
      _
    // Predicated region
    $region38: #{tpu_custom_call.1} parent=1 // pred_check
      _
    $region39: #{tpu_custom_call.1} parent=1 // pred_check_branch
      %73 = sbr.rel (0) target = $region41
    $region40: #{tpu_custom_call.1} parent=1 // pred_region
      _
    $region41: #{tpu_custom_call.1} parent=1 // pred_fallthru
      _
    // Predicated region
    $region42: #{tpu_custom_call.1} parent=1 // pred_check
      _
    $region43: #{tpu_custom_call.1} parent=1 // pred_check_branch
      %75 = sbr.rel (0) target = $region45
    $region44: #{tpu_custom_call.1} parent=1 // pred_region
      _
    $region45: #{tpu_custom_call.1} parent=1 // pred_fallthru
      _
    // Predicated region
    $region46: #{tpu_custom_call.1} parent=1 // pred_check
      _
    $region47: #{tpu_custom_call.1} parent=1 // pred_check_branch
      %77 = sbr.rel (0) target = $region49
    $region48: #{tpu_custom_call.1} parent=1 // pred_region
      _
    $region49: #{tpu_custom_call.1} parent=1 // pred_fallthru
      _
    // Predicated region
    $region50: #{tpu_custom_call.1} parent=1 // pred_check
      _
    $region51: #{tpu_custom_call.1} parent=1 // pred_check_branch
      %79 = sbr.rel (0) target = $region53
    $region52: #{tpu_custom_call.1} parent=1 // pred_region
      _
    $region53: #{tpu_custom_call.1} parent=1 // pred_fallthru
      _
    // Predicated region
    $region54: #{tpu_custom_call.1} parent=1 // pred_check
      _
    $region55: #{tpu_custom_call.1} parent=1 // pred_check_branch
      %81 = sbr.rel (0) target = $region57
    $region56: #{tpu_custom_call.1} parent=1 // pred_region
      %82 = dma.done [#allocation4], 4096
    $region57: #{tpu_custom_call.1} parent=1 // pred_fallthru
      _
    // Predicated region
    $region58: #{tpu_custom_call.1} parent=1 // pred_check
      _
    $region59: #{tpu_custom_call.1} parent=1 // pred_check_branch
      %84 = sbr.rel (0) target = $region61
    $region60: #{tpu_custom_call.1} parent=1 // pred_region
      %85 = dma.done [#allocation7], 4096
    $region61: #{tpu_custom_call.1} parent=1 // pred_fallthru
      _
    // Predicated region
    $region62: #{tpu_custom_call.1} parent=1 // pred_check
      _
    $region63: #{tpu_custom_call.1} parent=1 // pred_check_branch
      %87 = sbr.rel (0) target = $region65
    $region64: #{tpu_custom_call.1} parent=1 // pred_region
      %88 = dma.done [#allocation7], 8192
    $region65: #{tpu_custom_call.1} parent=1 // pred_fallthru
      _
    %v90 = vld [vmem:[%s0] sm:$0xf]
    %v91 = vld [vmem:[%s0 + $0x4] sm:$0xf]
    %v92 = vld [vmem:[%s0 + $0x8] sm:$0xf]
    %v93 = vld [vmem:[%s0 + $0xc] sm:$0xf]
    %v94 = vld [vmem:[%s0 + $0x10] sm:$0xf]
    %v95 = vld [vmem:[%s0 + $0x14] sm:$0xf]
    %v96 = vld [vmem:[%s0 + $0x18] sm:$0xf]
    %v97 = vld [vmem:[%s0 + $0x1c] sm:$0xf]
    %v98 = vld [vmem:[#allocation3] sm:$0xff]
    %v99 = vld [vmem:[#allocation3 + $0x8] sm:$0xff]
    %v100 = vld [vmem:[#allocation3 + $0x10] sm:$0xff]
    %v101 = vld [vmem:[#allocation3 + $0x18] sm:$0xff]
    %v102 = vld [vmem:[#allocation3 + $0x20] sm:$0xff]
    %v103 = vld [vmem:[#allocation3 + $0x28] sm:$0xff]
    %v104 = vld [vmem:[#allocation3 + $0x30] sm:$0xff]
    %v105 = vld [vmem:[#allocation3 + $0x38] sm:$0xff]
    %v106 = vld [vmem:[#allocation3 + $0x40] sm:$0xff]
    %v107 = vld [vmem:[#allocation3 + $0x48] sm:$0xff]
    %v108 = vld [vmem:[#allocation3 + $0x50] sm:$0xff]
    %v109 = vld [vmem:[#allocation3 + $0x58] sm:$0xff]
    %v110 = vld [vmem:[#allocation3 + $0x60] sm:$0xff]
    %v111 = vld [vmem:[#allocation3 + $0x68] sm:$0xff]
    %v112 = vld [vmem:[#allocation3 + $0x70] sm:$0xff]
    %v113 = vld [vmem:[#allocation3 + $0x78] sm:$0xff]
    %v114 = vld [vmem:[#allocation3 + $0x80] sm:$0xff]
    %v115 = vld [vmem:[#allocation3 + $0x88] sm:$0xff]
    %v116 = vld [vmem:[#allocation3 + $0x90] sm:$0xff]
    %v117 = vld [vmem:[#allocation3 + $0x98] sm:$0xff]
    %v118 = vld [vmem:[#allocation3 + $0xa0] sm:$0xff]
    %v119 = vld [vmem:[#allocation3 + $0xa8] sm:$0xff]
    %v120 = vld [vmem:[#allocation3 + $0xb0] sm:$0xff]
    %v121 = vld [vmem:[#allocation3 + $0xb8] sm:$0xff]
    %v122 = vld [vmem:[#allocation3 + $0xc0] sm:$0xff]
    %v123 = vld [vmem:[#allocation3 + $0xc8] sm:$0xff]
    %v124 = vld [vmem:[#allocation3 + $0xd0] sm:$0xff]
    %v125 = vld [vmem:[#allocation3 + $0xd8] sm:$0xff]
    %v126 = vld [vmem:[#allocation3 + $0xe0] sm:$0xff]
    %v127 = vld [vmem:[#allocation3 + $0xe8] sm:$0xff]
    %v128 = vld [vmem:[#allocation3 + $0xf0] sm:$0xff]
    %v129 = vld [vmem:[#allocation3 + $0xf8] sm:$0xff]
    %v130 = vld [vmem:[%s3] sm:$0xf]
    %v132 = vlaneseq
    %v133 = vshrl.u32 %v132, 7
    %v134 = vsub.s32 0, %v133
    %v135 = vrot.slane %v130, %v134
    %v136 = vlaneseq
    %v137 = vshrl.u32 %v136, 7
    %v138 = vsub.s32 1, %v137
    %v139 = vrot.slane %v130, %v138
    %v140 = vlaneseq
    %v141 = vshrl.u32 %v140, 7
    %v142 = vsub.s32 2, %v141
    %v143 = vrot.slane %v130, %v142
    %v144 = vlaneseq
    %v145 = vshrl.u32 %v144, 7
    %v146 = vsub.s32 3, %v145
    %v147 = vrot.slane %v130, %v146
    %v160 = vunpack.c.l.b16 %v90
    %v161 = vunpack.c.l.b16 %v91
    %v162 = vunpack.c.l.b16 %v92
    %v163 = vunpack.c.l.b16 %v93
    %v164 = vunpack.c.l.b16 %v94
    %v165 = vunpack.c.l.b16 %v95
    %v166 = vunpack.c.l.b16 %v96
    %v167 = vunpack.c.l.b16 %v97
    %v168 = vpack.c.b16 %v161, %v160
    %v169 = vpack.c.b16 %v163, %v162
    %v170 = vpack.c.b16 %v165, %v164
    %v171 = vpack.c.b16 %v167, %v166
    %v208 = vunpack.c.l.b16 %v98
    %v209 = vunpack.c.h.b16 %v98
    %v210 = vunpack.c.l.b16 %v99
    %v211 = vunpack.c.h.b16 %v99
    %v212 = vunpack.c.l.b16 %v100
    %v213 = vunpack.c.h.b16 %v100
    %v214 = vunpack.c.l.b16 %v101
    %v215 = vunpack.c.h.b16 %v101
    %v216 = vunpack.c.l.b16 %v102
    %v217 = vunpack.c.h.b16 %v102
    %v218 = vunpack.c.l.b16 %v103
    %v219 = vunpack.c.h.b16 %v103
    %v220 = vunpack.c.l.b16 %v104
    %v221 = vunpack.c.h.b16 %v104
    %v222 = vunpack.c.l.b16 %v105
    %v223 = vunpack.c.h.b16 %v105
    %v224 = vunpack.c.l.b16 %v106
    %v225 = vunpack.c.h.b16 %v106
    %v226 = vunpack.c.l.b16 %v107
    %v227 = vunpack.c.h.b16 %v107
    %v228 = vunpack.c.l.b16 %v108
    %v229 = vunpack.c.h.b16 %v108
    %v230 = vunpack.c.l.b16 %v109
    %v231 = vunpack.c.h.b16 %v109
    %v232 = vunpack.c.l.b16 %v110
    %v233 = vunpack.c.h.b16 %v110
    %v234 = vunpack.c.l.b16 %v111
    %v235 = vunpack.c.h.b16 %v111
    %v236 = vunpack.c.l.b16 %v112
    %v237 = vunpack.c.h.b16 %v112
    %v238 = vunpack.c.l.b16 %v113
    %v239 = vunpack.c.h.b16 %v113
    %v240 = vunpack.c.l.b16 %v114
    %v241 = vunpack.c.h.b16 %v114
    %v242 = vunpack.c.l.b16 %v115
    %v243 = vunpack.c.h.b16 %v115
    %v244 = vunpack.c.l.b16 %v116
    %v245 = vunpack.c.h.b16 %v116
    %v246 = vunpack.c.l.b16 %v117
    %v247 = vunpack.c.h.b16 %v117
    %v248 = vunpack.c.l.b16 %v118
    %v249 = vunpack.c.h.b16 %v118
    %v250 = vunpack.c.l.b16 %v119
    %v251 = vunpack.c.h.b16 %v119
    %v252 = vunpack.c.l.b16 %v120
    %v253 = vunpack.c.h.b16 %v120
    %v254 = vunpack.c.l.b16 %v121
    %v255 = vunpack.c.h.b16 %v121
    %v256 = vunpack.c.l.b16 %v122
    %v257 = vunpack.c.h.b16 %v122
    %v258 = vunpack.c.l.b16 %v123
    %v259 = vunpack.c.h.b16 %v123
    %v260 = vunpack.c.l.b16 %v124
    %v261 = vunpack.c.h.b16 %v124
    %v262 = vunpack.c.l.b16 %v125
    %v263 = vunpack.c.h.b16 %v125
    %v264 = vunpack.c.l.b16 %v126
    %v265 = vunpack.c.h.b16 %v126
    %v266 = vunpack.c.l.b16 %v127
    %v267 = vunpack.c.h.b16 %v127
    %v268 = vunpack.c.l.b16 %v128
    %v269 = vunpack.c.h.b16 %v128
    %v270 = vunpack.c.l.b16 %v129
    %v271 = vunpack.c.h.b16 %v129
    %v272 = vpack.c.b16 %v212, %v208
    %v273 = vpack.c.b16 %v213, %v209
    %v274 = vpack.c.b16 %v214, %v210
    %v275 = vpack.c.b16 %v215, %v211
    %v276 = vpack.c.b16 %v220, %v216
    %v277 = vpack.c.b16 %v221, %v217
    %v278 = vpack.c.b16 %v222, %v218
    %v279 = vpack.c.b16 %v223, %v219
    %v280 = vpack.c.b16 %v228, %v224
    %v281 = vpack.c.b16 %v229, %v225
    %v282 = vpack.c.b16 %v230, %v226
    %v283 = vpack.c.b16 %v231, %v227
    %v284 = vpack.c.b16 %v236, %v232
    %v285 = vpack.c.b16 %v237, %v233
    %v286 = vpack.c.b16 %v238, %v234
    %v287 = vpack.c.b16 %v239, %v235
    %v288 = vpack.c.b16 %v244, %v240
    %v289 = vpack.c.b16 %v245, %v241
    %v290 = vpack.c.b16 %v246, %v242
    %v291 = vpack.c.b16 %v247, %v243
    %v292 = vpack.c.b16 %v252, %v248
    %v293 = vpack.c.b16 %v253, %v249
    %v294 = vpack.c.b16 %v254, %v250
    %v295 = vpack.c.b16 %v255, %v251
    %v296 = vpack.c.b16 %v260, %v256
    %v297 = vpack.c.b16 %v261, %v257
    %v298 = vpack.c.b16 %v262, %v258
    %v299 = vpack.c.b16 %v263, %v259
    %v300 = vpack.c.b16 %v268, %v264
    %v301 = vpack.c.b16 %v269, %v265
    %v302 = vpack.c.b16 %v270, %v266
    %v303 = vpack.c.b16 %v271, %v267
    %336 = vmatprep.subr.bf16.mxu0 %v273
    %337 = vmatpush1.bf16.msra.mxu0 %v272
    %338 = vmatprep.subr.bf16.mxu0 %v277
    %339 = vmatpush1.bf16.msra.mxu0 %v276
    %340 = vmatprep.subr.bf16.mxu0 %v281
    %341 = vmatpush1.bf16.msra.mxu0 %v280
    %342 = vmatprep.subr.bf16.mxu0 %v285
    %343 = vmatpush1.bf16.msra.mxu0 %v284
    %344 = vmatprep.subr.bf16.mxu0 %v289
    %345 = vmatpush1.bf16.msra.mxu0 %v288
    %346 = vmatprep.subr.bf16.mxu0 %v293
    %347 = vmatpush1.bf16.msra.mxu0 %v292
    %348 = vmatprep.subr.bf16.mxu0 %v297
    %349 = vmatpush1.bf16.msra.mxu0 %v296
    %350 = vmatprep.subr.bf16.mxu0 %v301
    %351 = vmatpush1.bf16.msra.mxu0 %v300
    %352 = vmatprep.subr.bf16.mxu0 0
    %353 = vmatpush1.bf16.msra.mxu0 0
    %354 = vmatprep.subr.bf16.mxu0 0
    %355 = vmatpush1.bf16.msra.mxu0 0
    %356 = vmatprep.subr.bf16.mxu0 0
    %357 = vmatpush1.bf16.msra.mxu0 0
    %358 = vmatprep.subr.bf16.mxu0 0
    %359 = vmatpush1.bf16.msra.mxu0 0
    %360 = vmatprep.subr.bf16.mxu0 0
    %361 = vmatpush1.bf16.msra.mxu0 0
    %362 = vmatprep.subr.bf16.mxu0 0
    %363 = vmatpush1.bf16.msra.mxu0 0
    %364 = vmatprep.subr.bf16.mxu0 0
    %365 = vmatpush1.bf16.msra.mxu0 0
    %366 = vmatprep.subr.bf16.mxu0 0
    %367 = vmatpush1.bf16.msra.mxu0 0
    %368 = vmatprep.mubr.bf16.mxu0 0
    %369 = vmatmul.mubr.bf16.gmra.mrb[0].mxu0 %v168
    %v370 = vpop.f32.mrb[0].mxu0
    %v371 = vadd.f32 %v135, %v370
    %v372 = vpop.f32.mrb[0].mxu0
    %v373 = vadd.f32 %v139, %v372
    %v374 = vpop.f32.mrb[0].mxu0
    %v375 = vadd.f32 %v135, %v374
    %v376 = vpop.f32.mrb[0].mxu0
    %v377 = vadd.f32 %v139, %v376
    %378 = vmatprep.mubr.bf16.mxu0 0
    %379 = vmatmul.mubr.bf16.gmra.mrb[0].mxu0 %v169
    %v380 = vpop.f32.mrb[0].mxu0
    %v381 = vadd.f32 %v135, %v380
    %v382 = vpop.f32.mrb[0].mxu0
    %v383 = vadd.f32 %v139, %v382
    %v384 = vpop.f32.mrb[0].mxu0
    %v385 = vadd.f32 %v135, %v384
    %v386 = vpop.f32.mrb[0].mxu0
    %v387 = vadd.f32 %v139, %v386
    %388 = vmatprep.mubr.bf16.mxu0 0
    %389 = vmatmul.mubr.bf16.gmra.mrb[0].mxu0 %v170
    %v390 = vpop.f32.mrb[0].mxu0
    %v391 = vadd.f32 %v135, %v390
    %v392 = vpop.f32.mrb[0].mxu0
    %v393 = vadd.f32 %v139, %v392
    %v394 = vpop.f32.mrb[0].mxu0
    %v395 = vadd.f32 %v135, %v394
    %v396 = vpop.f32.mrb[0].mxu0
    %v397 = vadd.f32 %v139, %v396
    %398 = vmatprep.mubr.bf16.mxu0 0
    %399 = vmatmul.mubr.bf16.gmra.mrb[0].mxu0 %v171
    %v400 = vpop.f32.mrb[0].mxu0
    %v401 = vadd.f32 %v135, %v400
    %v402 = vpop.f32.mrb[0].mxu0
    %v403 = vadd.f32 %v139, %v402
    %v404 = vpop.f32.mrb[0].mxu0
    %v405 = vadd.f32 %v135, %v404
    %v406 = vpop.f32.mrb[0].mxu0
    %v407 = vadd.f32 %v139, %v406
    %408 = vdwg.mxu0
    %409 = vmatprep.subr.bf16.mxu0 %v275
    %410 = vmatpush1.bf16.msra.mxu0 %v274
    %411 = vmatprep.subr.bf16.mxu0 %v279
    %412 = vmatpush1.bf16.msra.mxu0 %v278
    %413 = vmatprep.subr.bf16.mxu0 %v283
    %414 = vmatpush1.bf16.msra.mxu0 %v282
    %415 = vmatprep.subr.bf16.mxu0 %v287
    %416 = vmatpush1.bf16.msra.mxu0 %v286
    %417 = vmatprep.subr.bf16.mxu0 %v291
    %418 = vmatpush1.bf16.msra.mxu0 %v290
    %419 = vmatprep.subr.bf16.mxu0 %v295
    %420 = vmatpush1.bf16.msra.mxu0 %v294
    %421 = vmatprep.subr.bf16.mxu0 %v299
    %422 = vmatpush1.bf16.msra.mxu0 %v298
    %423 = vmatprep.subr.bf16.mxu0 %v303
    %424 = vmatpush1.bf16.msra.mxu0 %v302
    %425 = vmatprep.subr.bf16.mxu0 0
    %426 = vmatpush1.bf16.msra.mxu0 0
    %427 = vmatprep.subr.bf16.mxu0 0
    %428 = vmatpush1.bf16.msra.mxu0 0
    %429 = vmatprep.subr.bf16.mxu0 0
    %430 = vmatpush1.bf16.msra.mxu0 0
    %431 = vmatprep.subr.bf16.mxu0 0
    %432 = vmatpush1.bf16.msra.mxu0 0
    %433 = vmatprep.subr.bf16.mxu0 0
    %434 = vmatpush1.bf16.msra.mxu0 0
    %435 = vmatprep.subr.bf16.mxu0 0
    %436 = vmatpush1.bf16.msra.mxu0 0
    %437 = vmatprep.subr.bf16.mxu0 0
    %438 = vmatpush1.bf16.msra.mxu0 0
    %439 = vmatprep.subr.bf16.mxu0 0
    %440 = vmatpush1.bf16.msra.mxu0 0
    %441 = vmatprep.mubr.bf16.mxu0 0
    %442 = vmatmul.mubr.bf16.gmra.mrb[0].mxu0 %v168
    %v443 = vpop.f32.mrb[0].mxu0
    %v444 = vadd.f32 %v143, %v443
    %v445 = vpop.f32.mrb[0].mxu0
    %v446 = vadd.f32 %v147, %v445
    %v447 = vpop.f32.mrb[0].mxu0
    %v448 = vadd.f32 %v143, %v447
    %v449 = vpop.f32.mrb[0].mxu0
    %v450 = vadd.f32 %v147, %v449
    %451 = vmatprep.mubr.bf16.mxu0 0
    %452 = vmatmul.mubr.bf16.gmra.mrb[0].mxu0 %v169
    %v453 = vpop.f32.mrb[0].mxu0
    %v454 = vadd.f32 %v143, %v453
    %v455 = vpop.f32.mrb[0].mxu0
    %v456 = vadd.f32 %v147, %v455
    %v457 = vpop.f32.mrb[0].mxu0
    %v458 = vadd.f32 %v143, %v457
    %v459 = vpop.f32.mrb[0].mxu0
    %v460 = vadd.f32 %v147, %v459
    %461 = vmatprep.mubr.bf16.mxu0 0
    %462 = vmatmul.mubr.bf16.gmra.mrb[0].mxu0 %v170
    %v463 = vpop.f32.mrb[0].mxu0
    %v464 = vadd.f32 %v143, %v463
    %v465 = vpop.f32.mrb[0].mxu0
    %v466 = vadd.f32 %v147, %v465
    %v467 = vpop.f32.mrb[0].mxu0
    %v468 = vadd.f32 %v143, %v467
    %v469 = vpop.f32.mrb[0].mxu0
    %v470 = vadd.f32 %v147, %v469
    %471 = vmatprep.mubr.bf16.mxu0 0
    %472 = vmatmul.mubr.bf16.gmra.mrb[0].mxu0 %v171
    %v473 = vpop.f32.mrb[0].mxu0
    %v474 = vadd.f32 %v143, %v473
    %v475 = vpop.f32.mrb[0].mxu0
    %v476 = vadd.f32 %v147, %v475
    %v477 = vpop.f32.mrb[0].mxu0
    %v478 = vadd.f32 %v143, %v477
    %v479 = vpop.f32.mrb[0].mxu0
    %v480 = vadd.f32 %v147, %v479
    %481 = vdwg.mxu0
    %482 = vst [vmem:[#allocation2] sm:$0xff] %v371
    %483 = vst [vmem:[#allocation2 + $0x8] sm:$0xff] %v373
    %484 = vst [vmem:[#allocation2 + $0x10] sm:$0xff] %v444
    %485 = vst [vmem:[#allocation2 + $0x18] sm:$0xff] %v446
    %486 = vst [vmem:[#allocation2 + $0x20] sm:$0xff] %v375
    %487 = vst [vmem:[#allocation2 + $0x28] sm:$0xff] %v377
    %488 = vst [vmem:[#allocation2 + $0x30] sm:$0xff] %v448
    %489 = vst [vmem:[#allocation2 + $0x38] sm:$0xff] %v450
    %490 = vst [vmem:[#allocation2 + $0x40] sm:$0xff] %v381
    %491 = vst [vmem:[#allocation2 + $0x48] sm:$0xff] %v383
    %492 = vst [vmem:[#allocation2 + $0x50] sm:$0xff] %v454
    %493 = vst [vmem:[#allocation2 + $0x58] sm:$0xff] %v456
    %494 = vst [vmem:[#allocation2 + $0x60] sm:$0xff] %v385
    %495 = vst [vmem:[#allocation2 + $0x68] sm:$0xff] %v387
    %496 = vst [vmem:[#allocation2 + $0x70] sm:$0xff] %v458
    %497 = vst [vmem:[#allocation2 + $0x78] sm:$0xff] %v460
    %498 = vst [vmem:[#allocation2 + $0x80] sm:$0xff] %v391
    %499 = vst [vmem:[#allocation2 + $0x88] sm:$0xff] %v393
    %500 = vst [vmem:[#allocation2 + $0x90] sm:$0xff] %v464
    %501 = vst [vmem:[#allocation2 + $0x98] sm:$0xff] %v466
    %502 = vst [vmem:[#allocation2 + $0xa0] sm:$0xff] %v395
    %503 = vst [vmem:[#allocation2 + $0xa8] sm:$0xff] %v397
    %504 = vst [vmem:[#allocation2 + $0xb0] sm:$0xff] %v468
    %505 = vst [vmem:[#allocation2 + $0xb8] sm:$0xff] %v470
    %506 = vst [vmem:[#allocation2 + $0xc0] sm:$0xff] %v401
    %507 = vst [vmem:[#allocation2 + $0xc8] sm:$0xff] %v403
    %508 = vst [vmem:[#allocation2 + $0xd0] sm:$0xff] %v474
    %509 = vst [vmem:[#allocation2 + $0xd8] sm:$0xff] %v476
    %510 = vst [vmem:[#allocation2 + $0xe0] sm:$0xff] %v405
    %511 = vst [vmem:[#allocation2 + $0xe8] sm:$0xff] %v407
    %512 = vst [vmem:[#allocation2 + $0xf0] sm:$0xff] %v478
    %513 = vst [vmem:[#allocation2 + $0xf8] sm:$0xff] %v480
    %v514 = vld [vmem:[%s6] sm:$0xf]
    %v516 = vlaneseq
    %v517 = vshrl.u32 %v516, 7
    %v518 = vsub.s32 0, %v517
    %v519 = vrot.slane %v514, %v518
    %v520 = vlaneseq
    %v521 = vshrl.u32 %v520, 7
    %v522 = vsub.s32 1, %v521
    %v523 = vrot.slane %v514, %v522
    %v524 = vlaneseq
    %v525 = vshrl.u32 %v524, 7
    %v526 = vsub.s32 2, %v525
    %v527 = vrot.slane %v514, %v526
    %v528 = vlaneseq
    %v529 = vshrl.u32 %v528, 7
    %v530 = vsub.s32 3, %v529
    %v531 = vrot.slane %v514, %v530
    %v536 = vld [vmem:[%s1] sm:$0xff]
    %v537 = vld [vmem:[#allocation2] sm:$0xff]
    %v538 = vld [vmem:[#allocation2 + $0x8] sm:$0xff]
    %v539 = vld [vmem:[#allocation2 + $0x10] sm:$0xff]
    %v540 = vld [vmem:[#allocation2 + $0x18] sm:$0xff]
    %v541 = vld [vmem:[#allocation6] sm:$0xff]
    %v542 = vld [vmem:[#allocation6 + $0x8] sm:$0xff]
    %v543 = vld [vmem:[#allocation6 + $0x10] sm:$0xff]
    %v544 = vld [vmem:[#allocation6 + $0x18] sm:$0xff]
    %v545 = vld [vmem:[#allocation6 + $0x20] sm:$0xff]
    %v546 = vld [vmem:[#allocation6 + $0x28] sm:$0xff]
    %v547 = vld [vmem:[#allocation6 + $0x30] sm:$0xff]
    %v548 = vld [vmem:[#allocation6 + $0x38] sm:$0xff]
    %v549 = vld [vmem:[#allocation6 + $0x40] sm:$0xff]
    %v550 = vld [vmem:[#allocation6 + $0x48] sm:$0xff]
    %v551 = vld [vmem:[#allocation6 + $0x50] sm:$0xff]
    %v552 = vld [vmem:[#allocation6 + $0x58] sm:$0xff]
    %v553 = vld [vmem:[#allocation6 + $0x60] sm:$0xff]
    %v554 = vld [vmem:[#allocation6 + $0x68] sm:$0xff]
    %v555 = vld [vmem:[#allocation6 + $0x70] sm:$0xff]
    %v556 = vld [vmem:[#allocation6 + $0x78] sm:$0xff]
    %v557 = vld [vmem:[#allocation6 + $0x80] sm:$0xff]
    %v558 = vld [vmem:[#allocation6 + $0x88] sm:$0xff]
    %v559 = vld [vmem:[#allocation6 + $0x90] sm:$0xff]
    %v560 = vld [vmem:[#allocation6 + $0x98] sm:$0xff]
    %v561 = vld [vmem:[#allocation6 + $0xa0] sm:$0xff]
    %v562 = vld [vmem:[#allocation6 + $0xa8] sm:$0xff]
    %v563 = vld [vmem:[#allocation6 + $0xb0] sm:$0xff]
    %v564 = vld [vmem:[#allocation6 + $0xb8] sm:$0xff]
    %v565 = vld [vmem:[#allocation6 + $0xc0] sm:$0xff]
    %v566 = vld [vmem:[#allocation6 + $0xc8] sm:$0xff]
    %v567 = vld [vmem:[#allocation6 + $0xd0] sm:$0xff]
    %v568 = vld [vmem:[#allocation6 + $0xd8] sm:$0xff]
    %v569 = vld [vmem:[#allocation6 + $0xe0] sm:$0xff]
    %v570 = vld [vmem:[#allocation6 + $0xe8] sm:$0xff]
    %v571 = vld [vmem:[#allocation6 + $0xf0] sm:$0xff]
    %v572 = vld [vmem:[#allocation6 + $0xf8] sm:$0xff]
    %v605 = vunpack.c.l.b16 %v541
    %v606 = vunpack.c.h.b16 %v541
    %v607 = vunpack.c.l.b16 %v542
    %v608 = vunpack.c.h.b16 %v542
    %v609 = vunpack.c.l.b16 %v543
    %v610 = vunpack.c.h.b16 %v543
    %v611 = vunpack.c.l.b16 %v544
    %v612 = vunpack.c.h.b16 %v544
    %v613 = vunpack.c.l.b16 %v545
    %v614 = vunpack.c.h.b16 %v545
    %v615 = vunpack.c.l.b16 %v546
    %v616 = vunpack.c.h.b16 %v546
    %v617 = vunpack.c.l.b16 %v547
    %v618 = vunpack.c.h.b16 %v547
    %v619 = vunpack.c.l.b16 %v548
    %v620 = vunpack.c.h.b16 %v548
    %v621 = vunpack.c.l.b16 %v549
    %v622 = vunpack.c.h.b16 %v549
    %v623 = vunpack.c.l.b16 %v550
    %v624 = vunpack.c.h.b16 %v550
    %v625 = vunpack.c.l.b16 %v551
    %v626 = vunpack.c.h.b16 %v551
    %v627 = vunpack.c.l.b16 %v552
    %v628 = vunpack.c.h.b16 %v552
    %v629 = vunpack.c.l.b16 %v553
    %v630 = vunpack.c.h.b16 %v553
    %v631 = vunpack.c.l.b16 %v554
    %v632 = vunpack.c.h.b16 %v554
    %v633 = vunpack.c.l.b16 %v555
    %v634 = vunpack.c.h.b16 %v555
    %v635 = vunpack.c.l.b16 %v556
    %v636 = vunpack.c.h.b16 %v556
    %v637 = vunpack.c.l.b16 %v557
    %v638 = vunpack.c.h.b16 %v557
    %v639 = vunpack.c.l.b16 %v558
    %v640 = vunpack.c.h.b16 %v558
    %v641 = vunpack.c.l.b16 %v559
    %v642 = vunpack.c.h.b16 %v559
    %v643 = vunpack.c.l.b16 %v560
    %v644 = vunpack.c.h.b16 %v560
    %v645 = vunpack.c.l.b16 %v561
    %v646 = vunpack.c.h.b16 %v561
    %v647 = vunpack.c.l.b16 %v562
    %v648 = vunpack.c.h.b16 %v562
    %v649 = vunpack.c.l.b16 %v563
    %v650 = vunpack.c.h.b16 %v563
    %v651 = vunpack.c.l.b16 %v564
    %v652 = vunpack.c.h.b16 %v564
    %v653 = vunpack.c.l.b16 %v565
    %v654 = vunpack.c.h.b16 %v565
    %v655 = vunpack.c.l.b16 %v566
    %v656 = vunpack.c.h.b16 %v566
    %v657 = vunpack.c.l.b16 %v567
    %v658 = vunpack.c.h.b16 %v567
    %v659 = vunpack.c.l.b16 %v568
    %v660 = vunpack.c.h.b16 %v568
    %v661 = vunpack.c.l.b16 %v569
    %v662 = vunpack.c.h.b16 %v569
    %v663 = vunpack.c.l.b16 %v570
    %v664 = vunpack.c.h.b16 %v570
    %v665 = vunpack.c.l.b16 %v571
    %v666 = vunpack.c.h.b16 %v571
    %v667 = vunpack.c.l.b16 %v572
    %v668 = vunpack.c.h.b16 %v572
    %v669 = vpack.c.b16 %v609, %v605
    %v670 = vpack.c.b16 %v610, %v606
    %v671 = vpack.c.b16 %v611, %v607
    %v672 = vpack.c.b16 %v612, %v608
    %v673 = vpack.c.b16 %v617, %v613
    %v674 = vpack.c.b16 %v618, %v614
    %v675 = vpack.c.b16 %v619, %v615
    %v676 = vpack.c.b16 %v620, %v616
    %v677 = vpack.c.b16 %v625, %v621
    %v678 = vpack.c.b16 %v626, %v622
    %v679 = vpack.c.b16 %v627, %v623
    %v680 = vpack.c.b16 %v628, %v624
    %v681 = vpack.c.b16 %v633, %v629
    %v682 = vpack.c.b16 %v634, %v630
    %v683 = vpack.c.b16 %v635, %v631
    %v684 = vpack.c.b16 %v636, %v632
    %v685 = vpack.c.b16 %v641, %v637
    %v686 = vpack.c.b16 %v642, %v638
    %v687 = vpack.c.b16 %v643, %v639
    %v688 = vpack.c.b16 %v644, %v640
    %v689 = vpack.c.b16 %v649, %v645
    %v690 = vpack.c.b16 %v650, %v646
    %v691 = vpack.c.b16 %v651, %v647
    %v692 = vpack.c.b16 %v652, %v648
    %v693 = vpack.c.b16 %v657, %v653
    %v694 = vpack.c.b16 %v658, %v654
    %v695 = vpack.c.b16 %v659, %v655
    %v696 = vpack.c.b16 %v660, %v656
    %v697 = vpack.c.b16 %v665, %v661
    %v698 = vpack.c.b16 %v666, %v662
    %v699 = vpack.c.b16 %v667, %v663
    %v700 = vpack.c.b16 %v668, %v664
    %733 = vmatprep.subr.bf16.mxu0 %v670
    %734 = vmatpush1.bf16.msra.mxu0 %v669
    %735 = vmatprep.subr.bf16.mxu0 %v674
    %736 = vmatpush1.bf16.msra.mxu0 %v673
    %737 = vmatprep.subr.bf16.mxu0 %v678
    %738 = vmatpush1.bf16.msra.mxu0 %v677
    %739 = vmatprep.subr.bf16.mxu0 %v682
    %740 = vmatpush1.bf16.msra.mxu0 %v681
    %741 = vmatprep.subr.bf16.mxu0 %v686
    %742 = vmatpush1.bf16.msra.mxu0 %v685
    %743 = vmatprep.subr.bf16.mxu0 %v690
    %744 = vmatpush1.bf16.msra.mxu0 %v689
    %745 = vmatprep.subr.bf16.mxu0 %v694
    %746 = vmatpush1.bf16.msra.mxu0 %v693
    %747 = vmatprep.subr.bf16.mxu0 %v698
    %748 = vmatpush1.bf16.msra.mxu0 %v697
    %749 = vmatprep.subr.bf16.mxu0 0
    %750 = vmatpush1.bf16.msra.mxu0 0
    %751 = vmatprep.subr.bf16.mxu0 0
    %752 = vmatpush1.bf16.msra.mxu0 0
    %753 = vmatprep.subr.bf16.mxu0 0
    %754 = vmatpush1.bf16.msra.mxu0 0
    %755 = vmatprep.subr.bf16.mxu0 0
    %756 = vmatpush1.bf16.msra.mxu0 0
    %757 = vmatprep.subr.bf16.mxu0 0
    %758 = vmatpush1.bf16.msra.mxu0 0
    %759 = vmatprep.subr.bf16.mxu0 0
    %760 = vmatpush1.bf16.msra.mxu0 0
    %761 = vmatprep.subr.bf16.mxu0 0
    %762 = vmatpush1.bf16.msra.mxu0 0
    %763 = vmatprep.subr.bf16.mxu0 0
    %764 = vmatpush1.bf16.msra.mxu0 0
    %765 = vmatprep.mubr.bf16.mxu0 0
    %766 = vmatmul.mubr.bf16.gmra.mrb[0].mxu0 0
    %v767 = vpop.f32.mrb[0].mxu0
    %v768 = vadd.f32 0.0, %v767
    %v769 = vpop.f32.mrb[0].mxu0
    %v770 = vadd.f32 0.0, %v769
    %v771 = vpop.f32.mrb[0].mxu0
    %v772 = vpop.f32.mrb[0].mxu0
    %773 = vdwg.mxu0
    %774 = vmatprep.subr.bf16.mxu0 %v672
    %775 = vmatpush1.bf16.msra.mxu0 %v671
    %776 = vmatprep.subr.bf16.mxu0 %v676
    %777 = vmatpush1.bf16.msra.mxu0 %v675
    %778 = vmatprep.subr.bf16.mxu0 %v680
    %779 = vmatpush1.bf16.msra.mxu0 %v679
    %780 = vmatprep.subr.bf16.mxu0 %v684
    %781 = vmatpush1.bf16.msra.mxu0 %v683
    %782 = vmatprep.subr.bf16.mxu0 %v688
    %783 = vmatpush1.bf16.msra.mxu0 %v687
    %784 = vmatprep.subr.bf16.mxu0 %v692
    %785 = vmatpush1.bf16.msra.mxu0 %v691
    %786 = vmatprep.subr.bf16.mxu0 %v696
    %787 = vmatpush1.bf16.msra.mxu0 %v695
    %788 = vmatprep.subr.bf16.mxu0 %v700
    %789 = vmatpush1.bf16.msra.mxu0 %v699
    %790 = vmatprep.subr.bf16.mxu0 0
    %791 = vmatpush1.bf16.msra.mxu0 0
    %792 = vmatprep.subr.bf16.mxu0 0
    %793 = vmatpush1.bf16.msra.mxu0 0
    %794 = vmatprep.subr.bf16.mxu0 0
    %795 = vmatpush1.bf16.msra.mxu0 0
    %796 = vmatprep.subr.bf16.mxu0 0
    %797 = vmatpush1.bf16.msra.mxu0 0
    %798 = vmatprep.subr.bf16.mxu0 0
    %799 = vmatpush1.bf16.msra.mxu0 0
    %800 = vmatprep.subr.bf16.mxu0 0
    %801 = vmatpush1.bf16.msra.mxu0 0
    %802 = vmatprep.subr.bf16.mxu0 0
    %803 = vmatpush1.bf16.msra.mxu0 0
    %804 = vmatprep.subr.bf16.mxu0 0
    %805 = vmatpush1.bf16.msra.mxu0 0
    %806 = vmatprep.mubr.bf16.mxu0 0
    %807 = vmatmul.mubr.bf16.gmra.mrb[0].mxu0 0
    %v808 = vpop.f32.mrb[0].mxu0
    %v809 = vadd.f32 0.0, %v808
    %v810 = vpop.f32.mrb[0].mxu0
    %v811 = vadd.f32 0.0, %v810
    %v812 = vpop.f32.mrb[0].mxu0
    %v813 = vpop.f32.mrb[0].mxu0
    %814 = vdwg.mxu0
    %v815 = vadd.f32 %v537, %v768
    %v816 = vadd.f32 %v538, %v770
    %v817 = vadd.f32 %v539, %v809
    %v818 = vadd.f32 %v540, %v811
    %v819 = vmul.f32 %v815, 0.5
    %v820 = vtanh.pop %v819
    %v821 = vmul.f32 %v820, 0.5
    %v822 = vadd.f32 %v821, 0.5
    %v823 = vmul.f32 %v816, 0.5
    %v824 = vtanh.pop %v823
    %v825 = vmul.f32 %v824, 0.5
    %v826 = vadd.f32 %v825, 0.5
    %v827 = vtanh.pop %v817
    %v828 = vmul.f32 %v818, 0.5
    %v829 = vtanh.pop %v828
    %v830 = vmul.f32 %v829, 0.5
    %v831 = vadd.f32 %v830, 0.5
    %v832 = vmul.f32 %v826, 0.0
    %v833 = vmul.f32 %v822, %v827
    %v834 = vadd.f32 %v832, %v833
    %v835 = vtanh.pop %v834
    %v836 = vmul.f32 %v831, %v835
    %v837 = vpack.c.bf16 %v836, %v836
    %v838 = vpack.c.bf16 0.0, 0.0
    %v839 = vld [vmem:[#allocation8] sm:$0xff]
    %v840 = vld [vmem:[#allocation8 + $0x8] sm:$0xff]
    %v841 = vld [vmem:[#allocation8 + $0x10] sm:$0xff]
    %v842 = vld [vmem:[#allocation8 + $0x18] sm:$0xff]
    %v843 = vld [vmem:[#allocation8 + $0x20] sm:$0xff]
    %v844 = vld [vmem:[#allocation8 + $0x28] sm:$0xff]
    %v845 = vld [vmem:[#allocation8 + $0x30] sm:$0xff]
    %v846 = vld [vmem:[#allocation8 + $0x38] sm:$0xff]
    %v847 = vld [vmem:[#allocation8 + $0x40] sm:$0xff]
    %v848 = vld [vmem:[#allocation8 + $0x48] sm:$0xff]
    %v849 = vld [vmem:[#allocation8 + $0x50] sm:$0xff]
    %v850 = vld [vmem:[#allocation8 + $0x58] sm:$0xff]
    %v851 = vld [vmem:[#allocation8 + $0x60] sm:$0xff]
    %v852 = vld [vmem:[#allocation8 + $0x68] sm:$0xff]
    %v853 = vld [vmem:[#allocation8 + $0x70] sm:$0xff]
    %v854 = vld [vmem:[#allocation8 + $0x78] sm:$0xff]
    %v855 = vld [vmem:[#allocation8 + $0x80] sm:$0xff]
    %v856 = vld [vmem:[#allocation8 + $0x88] sm:$0xff]
    %v857 = vld [vmem:[#allocation8 + $0x90] sm:$0xff]
    %v858 = vld [vmem:[#allocation8 + $0x98] sm:$0xff]
    %v859 = vld [vmem:[#allocation8 + $0xa0] sm:$0xff]
    %v860 = vld [vmem:[#allocation8 + $0xa8] sm:$0xff]
    %v861 = vld [vmem:[#allocation8 + $0xb0] sm:$0xff]
    %v862 = vld [vmem:[#allocation8 + $0xb8] sm:$0xff]
    %v863 = vld [vmem:[#allocation8 + $0xc0] sm:$0xff]
    %v864 = vld [vmem:[#allocation8 + $0xc8] sm:$0xff]
    %v865 = vld [vmem:[#allocation8 + $0xd0] sm:$0xff]
    %v866 = vld [vmem:[#allocation8 + $0xd8] sm:$0xff]
    %v867 = vld [vmem:[#allocation8 + $0xe0] sm:$0xff]
    %v868 = vld [vmem:[#allocation8 + $0xe8] sm:$0xff]
    %v869 = vld [vmem:[#allocation8 + $0xf0] sm:$0xff]
    %v870 = vld [vmem:[#allocation8 + $0xf8] sm:$0xff]
    %v871 = vld [vmem:[#allocation8 + $0x100] sm:$0xff]
    %v872 = vld [vmem:[#allocation8 + $0x108] sm:$0xff]
    %v873 = vld [vmem:[#allocation8 + $0x110] sm:$0xff]
    %v874 = vld [vmem:[#allocation8 + $0x118] sm:$0xff]
    %v875 = vld [vmem:[#allocation8 + $0x120] sm:$0xff]
    %v876 = vld [vmem:[#allocation8 + $0x128] sm:$0xff]
    %v877 = vld [vmem:[#allocation8 + $0x130] sm:$0xff]
    %v878 = vld [vmem:[#allocation8 + $0x138] sm:$0xff]
    %v879 = vld [vmem:[#allocation8 + $0x140] sm:$0xff]
    %v880 = vld [vmem:[#allocation8 + $0x148] sm:$0xff]
    %v881 = vld [vmem:[#allocation8 + $0x150] sm:$0xff]
    %v882 = vld [vmem:[#allocation8 + $0x158] sm:$0xff]
    %v883 = vld [vmem:[#allocation8 + $0x160] sm:$0xff]
    %v884 = vld [vmem:[#allocation8 + $0x168] sm:$0xff]
    %v885 = vld [vmem:[#allocation8 + $0x170] sm:$0xff]
    %v886 = vld [vmem:[#allocation8 + $0x178] sm:$0xff]
    %v887 = vld [vmem:[#allocation8 + $0x180] sm:$0xff]
    %v888 = vld [vmem:[#allocation8 + $0x188] sm:$0xff]
    %v889 = vld [vmem:[#allocation8 + $0x190] sm:$0xff]
    %v890 = vld [vmem:[#allocation8 + $0x198] sm:$0xff]
    %v891 = vld [vmem:[#allocation8 + $0x1a0] sm:$0xff]
    %v892 = vld [vmem:[#allocation8 + $0x1a8] sm:$0xff]
    %v893 = vld [vmem:[#allocation8 + $0x1b0] sm:$0xff]
    %v894 = vld [vmem:[#allocation8 + $0x1b8] sm:$0xff]
    %v895 = vld [vmem:[#allocation8 + $0x1c0] sm:$0xff]
    %v896 = vld [vmem:[#allocation8 + $0x1c8] sm:$0xff]
    %v897 = vld [vmem:[#allocation8 + $0x1d0] sm:$0xff]
    %v898 = vld [vmem:[#allocation8 + $0x1d8] sm:$0xff]
    %v899 = vld [vmem:[#allocation8 + $0x1e0] sm:$0xff]
    %v900 = vld [vmem:[#allocation8 + $0x1e8] sm:$0xff]
    %v901 = vld [vmem:[#allocation8 + $0x1f0] sm:$0xff]
    %v902 = vld [vmem:[#allocation8 + $0x1f8] sm:$0xff]
    %v967 = vunpack.c.l.b16 %v839
    %v968 = vunpack.c.h.b16 %v839
    %v969 = vunpack.c.l.b16 %v840
    %v970 = vunpack.c.h.b16 %v840
    %v971 = vunpack.c.l.b16 %v841
    %v972 = vunpack.c.h.b16 %v841
    %v973 = vunpack.c.l.b16 %v842
    %v974 = vunpack.c.h.b16 %v842
    %v975 = vunpack.c.l.b16 %v843
    %v976 = vunpack.c.h.b16 %v843
    %v977 = vunpack.c.l.b16 %v844
    %v978 = vunpack.c.h.b16 %v844
    %v979 = vunpack.c.l.b16 %v845
    %v980 = vunpack.c.h.b16 %v845
    %v981 = vunpack.c.l.b16 %v846
    %v982 = vunpack.c.h.b16 %v846
    %v983 = vunpack.c.l.b16 %v847
    %v984 = vunpack.c.h.b16 %v847
    %v985 = vunpack.c.l.b16 %v848
    %v986 = vunpack.c.h.b16 %v848
    %v987 = vunpack.c.l.b16 %v849
    %v988 = vunpack.c.h.b16 %v849
    %v989 = vunpack.c.l.b16 %v850
    %v990 = vunpack.c.h.b16 %v850
    %v991 = vunpack.c.l.b16 %v851
    %v992 = vunpack.c.h.b16 %v851
    %v993 = vunpack.c.l.b16 %v852
    %v994 = vunpack.c.h.b16 %v852
    %v995 = vunpack.c.l.b16 %v853
    %v996 = vunpack.c.h.b16 %v853
    %v997 = vunpack.c.l.b16 %v854
    %v998 = vunpack.c.h.b16 %v854
    %v999 = vunpack.c.l.b16 %v855
    %v1000 = vunpack.c.h.b16 %v855
    %v1001 = vunpack.c.l.b16 %v856
    %v1002 = vunpack.c.h.b16 %v856
    %v1003 = vunpack.c.l.b16 %v857
    %v1004 = vunpack.c.h.b16 %v857
    %v1005 = vunpack.c.l.b16 %v858
    %v1006 = vunpack.c.h.b16 %v858
    %v1007 = vunpack.c.l.b16 %v859
    %v1008 = vunpack.c.h.b16 %v859
    %v1009 = vunpack.c.l.b16 %v860
    %v1010 = vunpack.c.h.b16 %v860
    %v1011 = vunpack.c.l.b16 %v861
    %v1012 = vunpack.c.h.b16 %v861
    %v1013 = vunpack.c.l.b16 %v862
    %v1014 = vunpack.c.h.b16 %v862
    %v1015 = vunpack.c.l.b16 %v863
    %v1016 = vunpack.c.h.b16 %v863
    %v1017 = vunpack.c.l.b16 %v864
    %v1018 = vunpack.c.h.b16 %v864
    %v1019 = vunpack.c.l.b16 %v865
    %v1020 = vunpack.c.h.b16 %v865
    %v1021 = vunpack.c.l.b16 %v866
    %v1022 = vunpack.c.h.b16 %v866
    %v1023 = vunpack.c.l.b16 %v867
    %v1024 = vunpack.c.h.b16 %v867
    %v1025 = vunpack.c.l.b16 %v868
    %v1026 = vunpack.c.h.b16 %v868
    %v1027 = vunpack.c.l.b16 %v869
    %v1028 = vunpack.c.h.b16 %v869
    %v1029 = vunpack.c.l.b16 %v870
    %v1030 = vunpack.c.h.b16 %v870
    %v1031 = vunpack.c.l.b16 %v871
    %v1032 = vunpack.c.h.b16 %v871
    %v1033 = vunpack.c.l.b16 %v872
    %v1034 = vunpack.c.h.b16 %v872
    %v1035 = vunpack.c.l.b16 %v873
    %v1036 = vunpack.c.h.b16 %v873
    %v1037 = vunpack.c.l.b16 %v874
    %v1038 = vunpack.c.h.b16 %v874
    %v1039 = vunpack.c.l.b16 %v875
    %v1040 = vunpack.c.h.b16 %v875
    %v1041 = vunpack.c.l.b16 %v876
    %v1042 = vunpack.c.h.b16 %v876
    %v1043 = vunpack.c.l.b16 %v877
    %v1044 = vunpack.c.h.b16 %v877
    %v1045 = vunpack.c.l.b16 %v878
    %v1046 = vunpack.c.h.b16 %v878
    %v1047 = vunpack.c.l.b16 %v879
    %v1048 = vunpack.c.h.b16 %v879
    %v1049 = vunpack.c.l.b16 %v880
    %v1050 = vunpack.c.h.b16 %v880
    %v1051 = vunpack.c.l.b16 %v881
    %v1052 = vunpack.c.h.b16 %v881
    %v1053 = vunpack.c.l.b16 %v882
    %v1054 = vunpack.c.h.b16 %v882
    %v1055 = vunpack.c.l.b16 %v883
    %v1056 = vunpack.c.h.b16 %v883
    %v1057 = vunpack.c.l.b16 %v884
    %v1058 = vunpack.c.h.b16 %v884
    %v1059 = vunpack.c.l.b16 %v885
    %v1060 = vunpack.c.h.b16 %v885
    %v1061 = vunpack.c.l.b16 %v886
    %v1062 = vunpack.c.h.b16 %v886
    %v1063 = vunpack.c.l.b16 %v887
    %v1064 = vunpack.c.h.b16 %v887
    %v1065 = vunpack.c.l.b16 %v888
    %v1066 = vunpack.c.h.b16 %v888
    %v1067 = vunpack.c.l.b16 %v889
    %v1068 = vunpack.c.h.b16 %v889
    %v1069 = vunpack.c.l.b16 %v890
    %v1070 = vunpack.c.h.b16 %v890
    %v1071 = vunpack.c.l.b16 %v891
    %v1072 = vunpack.c.h.b16 %v891
    %v1073 = vunpack.c.l.b16 %v892
    %v1074 = vunpack.c.h.b16 %v892
    %v1075 = vunpack.c.l.b16 %v893
    %v1076 = vunpack.c.h.b16 %v893
    %v1077 = vunpack.c.l.b16 %v894
    %v1078 = vunpack.c.h.b16 %v894
    %v1079 = vunpack.c.l.b16 %v895
    %v1080 = vunpack.c.h.b16 %v895
    %v1081 = vunpack.c.l.b16 %v896
    %v1082 = vunpack.c.h.b16 %v896
    %v1083 = vunpack.c.l.b16 %v897
    %v1084 = vunpack.c.h.b16 %v897
    %v1085 = vunpack.c.l.b16 %v898
    %v1086 = vunpack.c.h.b16 %v898
    %v1087 = vunpack.c.l.b16 %v899
    %v1088 = vunpack.c.h.b16 %v899
    %v1089 = vunpack.c.l.b16 %v900
    %v1090 = vunpack.c.h.b16 %v900
    %v1091 = vunpack.c.l.b16 %v901
    %v1092 = vunpack.c.h.b16 %v901
    %v1093 = vunpack.c.l.b16 %v902
    %v1094 = vunpack.c.h.b16 %v902
    %v1095 = vpack.c.b16 %v971, %v967
    %v1096 = vpack.c.b16 %v972, %v968
    %v1097 = vpack.c.b16 %v973, %v969
    %v1098 = vpack.c.b16 %v974, %v970
    %v1099 = vpack.c.b16 %v979, %v975
    %v1100 = vpack.c.b16 %v980, %v976
    %v1101 = vpack.c.b16 %v981, %v977
    %v1102 = vpack.c.b16 %v982, %v978
    %v1103 = vpack.c.b16 %v987, %v983
    %v1104 = vpack.c.b16 %v988, %v984
    %v1105 = vpack.c.b16 %v989, %v985
    %v1106 = vpack.c.b16 %v990, %v986
    %v1107 = vpack.c.b16 %v995, %v991
    %v1108 = vpack.c.b16 %v996, %v992
    %v1109 = vpack.c.b16 %v997, %v993
    %v1110 = vpack.c.b16 %v998, %v994
    %v1111 = vpack.c.b16 %v1003, %v999
    %v1112 = vpack.c.b16 %v1004, %v1000
    %v1113 = vpack.c.b16 %v1005, %v1001
    %v1114 = vpack.c.b16 %v1006, %v1002
    %v1115 = vpack.c.b16 %v1011, %v1007
    %v1116 = vpack.c.b16 %v1012, %v1008
    %v1117 = vpack.c.b16 %v1013, %v1009
    %v1118 = vpack.c.b16 %v1014, %v1010
    %v1119 = vpack.c.b16 %v1019, %v1015
    %v1120 = vpack.c.b16 %v1020, %v1016
    %v1121 = vpack.c.b16 %v1021, %v1017
    %v1122 = vpack.c.b16 %v1022, %v1018
    %v1123 = vpack.c.b16 %v1027, %v1023
    %v1124 = vpack.c.b16 %v1028, %v1024
    %v1125 = vpack.c.b16 %v1029, %v1025
    %v1126 = vpack.c.b16 %v1030, %v1026
    %v1127 = vpack.c.b16 %v1035, %v1031
    %v1128 = vpack.c.b16 %v1036, %v1032
    %v1129 = vpack.c.b16 %v1037, %v1033
    %v1130 = vpack.c.b16 %v1038, %v1034
    %v1131 = vpack.c.b16 %v1043, %v1039
    %v1132 = vpack.c.b16 %v1044, %v1040
    %v1133 = vpack.c.b16 %v1045, %v1041
    %v1134 = vpack.c.b16 %v1046, %v1042
    %v1135 = vpack.c.b16 %v1051, %v1047
    %v1136 = vpack.c.b16 %v1052, %v1048
    %v1137 = vpack.c.b16 %v1053, %v1049
    %v1138 = vpack.c.b16 %v1054, %v1050
    %v1139 = vpack.c.b16 %v1059, %v1055
    %v1140 = vpack.c.b16 %v1060, %v1056
    %v1141 = vpack.c.b16 %v1061, %v1057
    %v1142 = vpack.c.b16 %v1062, %v1058
    %v1143 = vpack.c.b16 %v1067, %v1063
    %v1144 = vpack.c.b16 %v1068, %v1064
    %v1145 = vpack.c.b16 %v1069, %v1065
    %v1146 = vpack.c.b16 %v1070, %v1066
    %v1147 = vpack.c.b16 %v1075, %v1071
    %v1148 = vpack.c.b16 %v1076, %v1072
    %v1149 = vpack.c.b16 %v1077, %v1073
    %v1150 = vpack.c.b16 %v1078, %v1074
    %v1151 = vpack.c.b16 %v1083, %v1079
    %v1152 = vpack.c.b16 %v1084, %v1080
    %v1153 = vpack.c.b16 %v1085, %v1081
    %v1154 = vpack.c.b16 %v1086, %v1082
    %v1155 = vpack.c.b16 %v1091, %v1087
    %v1156 = vpack.c.b16 %v1092, %v1088
    %v1157 = vpack.c.b16 %v1093, %v1089
    %v1158 = vpack.c.b16 %v1094, %v1090
    %1223 = vmatprep.subr.bf16.mxu0 %v1096
    %1224 = vmatpush1.bf16.msra.mxu0 %v1095
    %1225 = vmatprep.subr.bf16.mxu0 %v1100
    %1226 = vmatpush1.bf16.msra.mxu0 %v1099
    %1227 = vmatprep.subr.bf16.mxu0 %v1104
    %1228 = vmatpush1.bf16.msra.mxu0 %v1103
    %1229 = vmatprep.subr.bf16.mxu0 %v1108
    %1230 = vmatpush1.bf16.msra.mxu0 %v1107
    %1231 = vmatprep.subr.bf16.mxu0 %v1112
    %1232 = vmatpush1.bf16.msra.mxu0 %v1111
    %1233 = vmatprep.subr.bf16.mxu0 %v1116
    %1234 = vmatpush1.bf16.msra.mxu0 %v1115
    %1235 = vmatprep.subr.bf16.mxu0 %v1120
    %1236 = vmatpush1.bf16.msra.mxu0 %v1119
    %1237 = vmatprep.subr.bf16.mxu0 %v1124
    %1238 = vmatpush1.bf16.msra.mxu0 %v1123
    %1239 = vmatprep.subr.bf16.mxu0 %v1128
    %1240 = vmatpush1.bf16.msra.mxu0 %v1127
    %1241 = vmatprep.subr.bf16.mxu0 %v1132
    %1242 = vmatpush1.bf16.msra.mxu0 %v1131
    %1243 = vmatprep.subr.bf16.mxu0 %v1136
    %1244 = vmatpush1.bf16.msra.mxu0 %v1135
    %1245 = vmatprep.subr.bf16.mxu0 %v1140
    %1246 = vmatpush1.bf16.msra.mxu0 %v1139
    %1247 = vmatprep.subr.bf16.mxu0 %v1144
    %1248 = vmatpush1.bf16.msra.mxu0 %v1143
    %1249 = vmatprep.subr.bf16.mxu0 %v1148
    %1250 = vmatpush1.bf16.msra.mxu0 %v1147
    %1251 = vmatprep.subr.bf16.mxu0 %v1152
    %1252 = vmatpush1.bf16.msra.mxu0 %v1151
    %1253 = vmatprep.subr.bf16.mxu0 %v1156
    %1254 = vmatpush1.bf16.msra.mxu0 %v1155
    %1255 = vmatprep.mubr.bf16.mxu0 %v838
    %1256 = vmatmul.mubr.bf16.gmra.mrb[0].mxu0 %v837
    %v1257 = vpop.f32.mrb[0].mxu0
    %v1258 = vadd.f32 %v519, %v1257
    %v1259 = vpop.f32.mrb[0].mxu0
    %v1260 = vadd.f32 %v523, %v1259
    %v1261 = vpop.f32.mrb[0].mxu0
    %v1262 = vpop.f32.mrb[0].mxu0
    %1263 = vdwg.mxu0
    %1264 = vmatprep.subr.bf16.mxu0 %v1098
    %1265 = vmatpush1.bf16.msra.mxu0 %v1097
    %1266 = vmatprep.subr.bf16.mxu0 %v1102
    %1267 = vmatpush1.bf16.msra.mxu0 %v1101
    %1268 = vmatprep.subr.bf16.mxu0 %v1106
    %1269 = vmatpush1.bf16.msra.mxu0 %v1105
    %1270 = vmatprep.subr.bf16.mxu0 %v1110
    %1271 = vmatpush1.bf16.msra.mxu0 %v1109
    %1272 = vmatprep.subr.bf16.mxu0 %v1114
    %1273 = vmatpush1.bf16.msra.mxu0 %v1113
    %1274 = vmatprep.subr.bf16.mxu0 %v1118
    %1275 = vmatpush1.bf16.msra.mxu0 %v1117
    %1276 = vmatprep.subr.bf16.mxu0 %v1122
    %1277 = vmatpush1.bf16.msra.mxu0 %v1121
    %1278 = vmatprep.subr.bf16.mxu0 %v1126
    %1279 = vmatpush1.bf16.msra.mxu0 %v1125
    %1280 = vmatprep.subr.bf16.mxu0 %v1130
    %1281 = vmatpush1.bf16.msra.mxu0 %v1129
    %1282 = vmatprep.subr.bf16.mxu0 %v1134
    %1283 = vmatpush1.bf16.msra.mxu0 %v1133
    %1284 = vmatprep.subr.bf16.mxu0 %v1138
    %1285 = vmatpush1.bf16.msra.mxu0 %v1137
    %1286 = vmatprep.subr.bf16.mxu0 %v1142
    %1287 = vmatpush1.bf16.msra.mxu0 %v1141
    %1288 = vmatprep.subr.bf16.mxu0 %v1146
    %1289 = vmatpush1.bf16.msra.mxu0 %v1145
    %1290 = vmatprep.subr.bf16.mxu0 %v1150
    %1291 = vmatpush1.bf16.msra.mxu0 %v1149
    %1292 = vmatprep.subr.bf16.mxu0 %v1154
    %1293 = vmatpush1.bf16.msra.mxu0 %v1153
    %1294 = vmatprep.subr.bf16.mxu0 %v1158
    %1295 = vmatpush1.bf16.msra.mxu0 %v1157
    %1296 = vmatprep.mubr.bf16.mxu0 %v838
    %1297 = vmatmul.mubr.bf16.gmra.mrb[0].mxu0 %v837
    %v1298 = vpop.f32.mrb[0].mxu0
    %v1299 = vadd.f32 %v527, %v1298
    %v1300 = vpop.f32.mrb[0].mxu0
    %v1301 = vadd.f32 %v531, %v1300
    %v1302 = vpop.f32.mrb[0].mxu0
    %v1303 = vpop.f32.mrb[0].mxu0
    %1304 = vdwg.mxu0
    %v1305 = vmul.f32 %v1258, 0.5
    %v1306 = vtanh.pop %v1305
    %v1307 = vmul.f32 %v1306, 0.5
    %v1308 = vadd.f32 %v1307, 0.5
    %v1309 = vmul.f32 %v1260, 0.5
    %v1310 = vtanh.pop %v1309
    %v1311 = vmul.f32 %v1310, 0.5
    %v1312 = vadd.f32 %v1311, 0.5
    %v1313 = vtanh.pop %v1299
    %v1314 = vmul.f32 %v1301, 0.5
    %v1315 = vtanh.pop %v1314
    %v1316 = vmul.f32 %v1315, 0.5
    %v1317 = vadd.f32 %v1316, 0.5
    %v1318 = vmul.f32 %v1312, 0.0
    %v1319 = vmul.f32 %v1308, %v1313
    %v1320 = vadd.f32 %v1318, %v1319
    %v1321 = vtanh.pop %v1320
    %v1322 = vmul.f32 %v1317, %v1321
    %vm1323 = vcmp.eq.s32.totalorder %v536, 0
    %v1324 = vsel %vm1323, 1, 0
    %1325 = vset.pattern.permute.xlu0 0
    %1326 = vperm.xlu0 %1325, %v1324
    %v1327 = vpop.permute.xlu0 %1326
    %vm1328 = vcmp.eq.s32.totalorder %v1327, 1
    %v1329 = vsel %vm1328, %v1322, 0.0
    %v1330 = vld [vmem:[#allocation2 + $0x20] sm:$0xff]
    %v1331 = vld [vmem:[#allocation2 + $0x28] sm:$0xff]
    %v1332 = vld [vmem:[#allocation2 + $0x30] sm:$0xff]
    %v1333 = vld [vmem:[#allocation2 + $0x38] sm:$0xff]
    %1334 = vmatprep.subr.bf16.mxu0 %v670
    %1335 = vmatpush1.bf16.msra.mxu0 %v669
    %1336 = vmatprep.subr.bf16.mxu0 %v674
    %1337 = vmatpush1.bf16.msra.mxu0 %v673
    %1338 = vmatprep.subr.bf16.mxu0 %v678
    %1339 = vmatpush1.bf16.msra.mxu0 %v677
    %1340 = vmatprep.subr.bf16.mxu0 %v682
    %1341 = vmatpush1.bf16.msra.mxu0 %v681
    %1342 = vmatprep.subr.bf16.mxu0 %v686
    %1343 = vmatpush1.bf16.msra.mxu0 %v685
    %1344 = vmatprep.subr.bf16.mxu0 %v690
    %1345 = vmatpush1.bf16.msra.mxu0 %v689
    %1346 = vmatprep.subr.bf16.mxu0 %v694
    %1347 = vmatpush1.bf16.msra.mxu0 %v693
    %1348 = vmatprep.subr.bf16.mxu0 %v698
    %1349 = vmatpush1.bf16.msra.mxu0 %v697
    %1350 = vmatprep.subr.bf16.mxu0 0
    %1351 = vmatpush1.bf16.msra.mxu0 0
    %1352 = vmatprep.subr.bf16.mxu0 0
    %1353 = vmatpush1.bf16.msra.mxu0 0
    %1354 = vmatprep.subr.bf16.mxu0 0
    %1355 = vmatpush1.bf16.msra.mxu0 0
    %1356 = vmatprep.subr.bf16.mxu0 0
    %1357 = vmatpush1.bf16.msra.mxu0 0
    %1358 = vmatprep.subr.bf16.mxu0 0
    %1359 = vmatpush1.bf16.msra.mxu0 0
    %1360 = vmatprep.subr.bf16.mxu0 0
    %1361 = vmatpush1.bf16.msra.mxu0 0
    %1362 = vmatprep.subr.bf16.mxu0 0
    %1363 = vmatpush1.bf16.msra.mxu0 0
    %1364 = vmatprep.subr.bf16.mxu0 0
    %1365 = vmatpush1.bf16.msra.mxu0 0
    %1366 = vmatprep.mubr.bf16.mxu0 0
    %1367 = vmatmul.mubr.bf16.gmra.mrb[0].mxu0 %v837
    %v1368 = vpop.f32.mrb[0].mxu0
    %v1369 = vadd.f32 0.0, %v1368
    %v1370 = vpop.f32.mrb[0].mxu0
    %v1371 = vadd.f32 0.0, %v1370
    %v1372 = vpop.f32.mrb[0].mxu0
    %v1373 = vpop.f32.mrb[0].mxu0
    %1374 = vdwg.mxu0
    %1375 = vmatprep.subr.bf16.mxu0 %v672
    %1376 = vmatpush1.bf16.msra.mxu0 %v671
    %1377 = vmatprep.subr.bf16.mxu0 %v676
    %1378 = vmatpush1.bf16.msra.mxu0 %v675
    %1379 = vmatprep.subr.bf16.mxu0 %v680
    %1380 = vmatpush1.bf16.msra.mxu0 %v679
    %1381 = vmatprep.subr.bf16.mxu0 %v684
    %1382 = vmatpush1.bf16.msra.mxu0 %v683
    %1383 = vmatprep.subr.bf16.mxu0 %v688
    %1384 = vmatpush1.bf16.msra.mxu0 %v687
    %1385 = vmatprep.subr.bf16.mxu0 %v692
    %1386 = vmatpush1.bf16.msra.mxu0 %v691
    %1387 = vmatprep.subr.bf16.mxu0 %v696
    %1388 = vmatpush1.bf16.msra.mxu0 %v695
    %1389 = vmatprep.subr.bf16.mxu0 %v700
    %1390 = vmatpush1.bf16.msra.mxu0 %v699
    %1391 = vmatprep.subr.bf16.mxu0 0
    %1392 = vmatpush1.bf16.msra.mxu0 0
    %1393 = vmatprep.subr.bf16.mxu0 0
    %1394 = vmatpush1.bf16.msra.mxu0 0
    %1395 = vmatprep.subr.bf16.mxu0 0
    %1396 = vmatpush1.bf16.msra.mxu0 0
    %1397 = vmatprep.subr.bf16.mxu0 0
    %1398 = vmatpush1.bf16.msra.mxu0 0
    %1399 = vmatprep.subr.bf16.mxu0 0
    %1400 = vmatpush1.bf16.msra.mxu0 0
    %1401 = vmatprep.subr.bf16.mxu0 0
    %1402 = vmatpush1.bf16.msra.mxu0 0
    %1403 = vmatprep.subr.bf16.mxu0 0
    %1404 = vmatpush1.bf16.msra.mxu0 0
    %1405 = vmatprep.subr.bf16.mxu0 0
    %1406 = vmatpush1.bf16.msra.mxu0 0
    %1407 = vmatprep.mubr.bf16.mxu0 0
    %1408 = vmatmul.mubr.bf16.gmra.mrb[0].mxu0 %v837
    %v1409 = vpop.f32.mrb[0].mxu0
    %v1410 = vadd.f32 0.0, %v1409
    %v1411 = vpop.f32.mrb[0].mxu0
    %v1412 = vadd.f32 0.0, %v1411
    %v1413 = vpop.f32.mrb[0].mxu0
    %v1414 = vpop.f32.mrb[0].mxu0
    %1415 = vdwg.mxu0
    %v1416 = vadd.f32 %v1330, %v1369
    %v1417 = vadd.f32 %v1331, %v1371
    %v1418 = vadd.f32 %v1332, %v1410
    %v1419 = vadd.f32 %v1333, %v1412
    %v1420 = vmul.f32 %v1416, 0.5
    %v1421 = vtanh.pop %v1420
    %v1422 = vmul.f32 %v1421, 0.5
    %v1423 = vadd.f32 %v1422, 0.5
    %v1424 = vmul.f32 %v1417, 0.5
    %v1425 = vtanh.pop %v1424
    %v1426 = vmul.f32 %v1425, 0.5
    %v1427 = vadd.f32 %v1426, 0.5
    %v1428 = vtanh.pop %v1418
    %v1429 = vmul.f32 %v1419, 0.5
    %v1430 = vtanh.pop %v1429
    %v1431 = vmul.f32 %v1430, 0.5
    %v1432 = vadd.f32 %v1431, 0.5
    %v1433 = vmul.f32 %v1427, %v834
    %v1434 = vmul.f32 %v1423, %v1428
    %v1435 = vadd.f32 %v1433, %v1434
    %v1436 = vtanh.pop %v1435
    %v1437 = vmul.f32 %v1432, %v1436
    %v1438 = vpack.c.bf16 %v1437, %v1437
    %v1439 = vpack.c.bf16 %v1322, %v1322
    %1440 = vmatprep.subr.bf16.mxu0 %v1096
    %1441 = vmatpush1.bf16.msra.mxu0 %v1095
    %1442 = vmatprep.subr.bf16.mxu0 %v1100
    %1443 = vmatpush1.bf16.msra.mxu0 %v1099
    %1444 = vmatprep.subr.bf16.mxu0 %v1104
    %1445 = vmatpush1.bf16.msra.mxu0 %v1103
    %1446 = vmatprep.subr.bf16.mxu0 %v1108
    %1447 = vmatpush1.bf16.msra.mxu0 %v1107
    %1448 = vmatprep.subr.bf16.mxu0 %v1112
    %1449 = vmatpush1.bf16.msra.mxu0 %v1111
    %1450 = vmatprep.subr.bf16.mxu0 %v1116
    %1451 = vmatpush1.bf16.msra.mxu0 %v1115
    %1452 = vmatprep.subr.bf16.mxu0 %v1120
    %1453 = vmatpush1.bf16.msra.mxu0 %v1119
    %1454 = vmatprep.subr.bf16.mxu0 %v1124
    %1455 = vmatpush1.bf16.msra.mxu0 %v1123
    %1456 = vmatprep.subr.bf16.mxu0 %v1128
    %1457 = vmatpush1.bf16.msra.mxu0 %v1127
    %1458 = vmatprep.subr.bf16.mxu0 %v1132
    %1459 = vmatpush1.bf16.msra.mxu0 %v1131
    %1460 = vmatprep.subr.bf16.mxu0 %v1136
    %1461 = vmatpush1.bf16.msra.mxu0 %v1135
    %1462 = vmatprep.subr.bf16.mxu0 %v1140
    %1463 = vmatpush1.bf16.msra.mxu0 %v1139
    %1464 = vmatprep.subr.bf16.mxu0 %v1144
    %1465 = vmatpush1.bf16.msra.mxu0 %v1143
    %1466 = vmatprep.subr.bf16.mxu0 %v1148
    %1467 = vmatpush1.bf16.msra.mxu0 %v1147
    %1468 = vmatprep.subr.bf16.mxu0 %v1152
    %1469 = vmatpush1.bf16.msra.mxu0 %v1151
    %1470 = vmatprep.subr.bf16.mxu0 %v1156
    %1471 = vmatpush1.bf16.msra.mxu0 %v1155
    %1472 = vmatprep.mubr.bf16.mxu0 %v1439
    %1473 = vmatmul.mubr.bf16.gmra.mrb[0].mxu0 %v1438
    %v1474 = vpop.f32.mrb[0].mxu0
    %v1475 = vadd.f32 %v519, %v1474
    %v1476 = vpop.f32.mrb[0].mxu0
    %v1477 = vadd.f32 %v523, %v1476
    %v1478 = vpop.f32.mrb[0].mxu0
    %v1479 = vpop.f32.mrb[0].mxu0
    %1480 = vdwg.mxu0
    %1481 = vmatprep.subr.bf16.mxu0 %v1098
    %1482 = vmatpush1.bf16.msra.mxu0 %v1097
    %1483 = vmatprep.subr.bf16.mxu0 %v1102
    %1484 = vmatpush1.bf16.msra.mxu0 %v1101
    %1485 = vmatprep.subr.bf16.mxu0 %v1106
    %1486 = vmatpush1.bf16.msra.mxu0 %v1105
    %1487 = vmatprep.subr.bf16.mxu0 %v1110
    %1488 = vmatpush1.bf16.msra.mxu0 %v1109
    %1489 = vmatprep.subr.bf16.mxu0 %v1114
    %1490 = vmatpush1.bf16.msra.mxu0 %v1113
    %1491 = vmatprep.subr.bf16.mxu0 %v1118
    %1492 = vmatpush1.bf16.msra.mxu0 %v1117
    %1493 = vmatprep.subr.bf16.mxu0 %v1122
    %1494 = vmatpush1.bf16.msra.mxu0 %v1121
    %1495 = vmatprep.subr.bf16.mxu0 %v1126
    %1496 = vmatpush1.bf16.msra.mxu0 %v1125
    %1497 = vmatprep.subr.bf16.mxu0 %v1130
    %1498 = vmatpush1.bf16.msra.mxu0 %v1129
    %1499 = vmatprep.subr.bf16.mxu0 %v1134
    %1500 = vmatpush1.bf16.msra.mxu0 %v1133
    %1501 = vmatprep.subr.bf16.mxu0 %v1138
    %1502 = vmatpush1.bf16.msra.mxu0 %v1137
    %1503 = vmatprep.subr.bf16.mxu0 %v1142
    %1504 = vmatpush1.bf16.msra.mxu0 %v1141
    %1505 = vmatprep.subr.bf16.mxu0 %v1146
    %1506 = vmatpush1.bf16.msra.mxu0 %v1145
    %1507 = vmatprep.subr.bf16.mxu0 %v1150
    %1508 = vmatpush1.bf16.msra.mxu0 %v1149
    %1509 = vmatprep.subr.bf16.mxu0 %v1154
    %1510 = vmatpush1.bf16.msra.mxu0 %v1153
    %1511 = vmatprep.subr.bf16.mxu0 %v1158
    %1512 = vmatpush1.bf16.msra.mxu0 %v1157
    %1513 = vmatprep.mubr.bf16.mxu0 %v1439
    %1514 = vmatmul.mubr.bf16.gmra.mrb[0].mxu0 %v1438
    %v1515 = vpop.f32.mrb[0].mxu0
    %v1516 = vadd.f32 %v527, %v1515
    %v1517 = vpop.f32.mrb[0].mxu0
    %v1518 = vadd.f32 %v531, %v1517
    %v1519 = vpop.f32.mrb[0].mxu0
    %v1520 = vpop.f32.mrb[0].mxu0
    %1521 = vdwg.mxu0
    %v1522 = vmul.f32 %v1475, 0.5
    %v1523 = vtanh.pop %v1522
    %v1524 = vmul.f32 %v1523, 0.5
    %v1525 = vadd.f32 %v1524, 0.5
    %v1526 = vmul.f32 %v1477, 0.5
    %v1527 = vtanh.pop %v1526
    %v1528 = vmul.f32 %v1527, 0.5
    %v1529 = vadd.f32 %v1528, 0.5
    %v1530 = vtanh.pop %v1516
    %v1531 = vmul.f32 %v1518, 0.5
    %v1532 = vtanh.pop %v1531
    %v1533 = vmul.f32 %v1532, 0.5
    %v1534 = vadd.f32 %v1533, 0.5
    %v1535 = vmul.f32 %v1529, %v1320
    %v1536 = vmul.f32 %v1525, %v1530
    %v1537 = vadd.f32 %v1535, %v1536
    %v1538 = vtanh.pop %v1537
    %v1539 = vmul.f32 %v1534, %v1538
    %vm1540 = vcmp.eq.s32.totalorder %v536, 1
    %v1541 = vsel %vm1540, 1, 0
    %1542 = vset.pattern.permute.xlu0 0
    %1543 = vperm.xlu0 %1542, %v1541
    %v1544 = vpop.permute.xlu0 %1543
    %vm1545 = vcmp.eq.s32.totalorder %v1544, 1
    %v1546 = vsel %vm1545, %v1539, %v1329
    %v1547 = vld [vmem:[#allocation2 + $0x40] sm:$0xff]
    %v1548 = vld [vmem:[#allocation2 + $0x48] sm:$0xff]
    %v1549 = vld [vmem:[#allocation2 + $0x50] sm:$0xff]
    %v1550 = vld [vmem:[#allocation2 + $0x58] sm:$0xff]
    %1551 = vmatprep.subr.bf16.mxu0 %v670
    %1552 = vmatpush1.bf16.msra.mxu0 %v669
    %1553 = vmatprep.subr.bf16.mxu0 %v674
    %1554 = vmatpush1.bf16.msra.mxu0 %v673
    %1555 = vmatprep.subr.bf16.mxu0 %v678
    %1556 = vmatpush1.bf16.msra.mxu0 %v677
    %1557 = vmatprep.subr.bf16.mxu0 %v682
    %1558 = vmatpush1.bf16.msra.mxu0 %v681
    %1559 = vmatprep.subr.bf16.mxu0 %v686
    %1560 = vmatpush1.bf16.msra.mxu0 %v685
    %1561 = vmatprep.subr.bf16.mxu0 %v690
    %1562 = vmatpush1.bf16.msra.mxu0 %v689
    %1563 = vmatprep.subr.bf16.mxu0 %v694
    %1564 = vmatpush1.bf16.msra.mxu0 %v693
    %1565 = vmatprep.subr.bf16.mxu0 %v698
    %1566 = vmatpush1.bf16.msra.mxu0 %v697
    %1567 = vmatprep.subr.bf16.mxu0 0
    %1568 = vmatpush1.bf16.msra.mxu0 0
    %1569 = vmatprep.subr.bf16.mxu0 0
    %1570 = vmatpush1.bf16.msra.mxu0 0
    %1571 = vmatprep.subr.bf16.mxu0 0
    %1572 = vmatpush1.bf16.msra.mxu0 0
    %1573 = vmatprep.subr.bf16.mxu0 0
    %1574 = vmatpush1.bf16.msra.mxu0 0
    %1575 = vmatprep.subr.bf16.mxu0 0
    %1576 = vmatpush1.bf16.msra.mxu0 0
    %1577 = vmatprep.subr.bf16.mxu0 0
    %1578 = vmatpush1.bf16.msra.mxu0 0
    %1579 = vmatprep.subr.bf16.mxu0 0
    %1580 = vmatpush1.bf16.msra.mxu0 0
    %1581 = vmatprep.subr.bf16.mxu0 0
    %1582 = vmatpush1.bf16.msra.mxu0 0
    %1583 = vmatprep.mubr.bf16.mxu0 0
    %1584 = vmatmul.mubr.bf16.gmra.mrb[0].mxu0 %v1438
    %v1585 = vpop.f32.mrb[0].mxu0
    %v1586 = vadd.f32 0.0, %v1585
    %v1587 = vpop.f32.mrb[0].mxu0
    %v1588 = vadd.f32 0.0, %v1587
    %v1589 = vpop.f32.mrb[0].mxu0
    %v1590 = vpop.f32.mrb[0].mxu0
    %1591 = vdwg.mxu0
    %1592 = vmatprep.subr.bf16.mxu0 %v672
    %1593 = vmatpush1.bf16.msra.mxu0 %v671
    %1594 = vmatprep.subr.bf16.mxu0 %v676
    %1595 = vmatpush1.bf16.msra.mxu0 %v675
    %1596 = vmatprep.subr.bf16.mxu0 %v680
    %1597 = vmatpush1.bf16.msra.mxu0 %v679
    %1598 = vmatprep.subr.bf16.mxu0 %v684
    %1599 = vmatpush1.bf16.msra.mxu0 %v683
    %1600 = vmatprep.subr.bf16.mxu0 %v688
    %1601 = vmatpush1.bf16.msra.mxu0 %v687
    %1602 = vmatprep.subr.bf16.mxu0 %v692
    %1603 = vmatpush1.bf16.msra.mxu0 %v691
    %1604 = vmatprep.subr.bf16.mxu0 %v696
    %1605 = vmatpush1.bf16.msra.mxu0 %v695
    %1606 = vmatprep.subr.bf16.mxu0 %v700
    %1607 = vmatpush1.bf16.msra.mxu0 %v699
    %1608 = vmatprep.subr.bf16.mxu0 0
    %1609 = vmatpush1.bf16.msra.mxu0 0
    %1610 = vmatprep.subr.bf16.mxu0 0
    %1611 = vmatpush1.bf16.msra.mxu0 0
    %1612 = vmatprep.subr.bf16.mxu0 0
    %1613 = vmatpush1.bf16.msra.mxu0 0
    %1614 = vmatprep.subr.bf16.mxu0 0
    %1615 = vmatpush1.bf16.msra.mxu0 0
    %1616 = vmatprep.subr.bf16.mxu0 0
    %1617 = vmatpush1.bf16.msra.mxu0 0
    %1618 = vmatprep.subr.bf16.mxu0 0
    %1619 = vmatpush1.bf16.msra.mxu0 0
    %1620 = vmatprep.subr.bf16.mxu0 0
    %1621 = vmatpush1.bf16.msra.mxu0 0
    %1622 = vmatprep.subr.bf16.mxu0 0
    %1623 = vmatpush1.bf16.msra.mxu0 0
    %1624 = vmatprep.mubr.bf16.mxu0 0
    %1625 = vmatmul.mubr.bf16.gmra.mrb[0].mxu0 %v1438
    %v1626 = vpop.f32.mrb[0].mxu0
    %v1627 = vadd.f32 0.0, %v1626
    %v1628 = vpop.f32.mrb[0].mxu0
    %v1629 = vadd.f32 0.0, %v1628
    %v1630 = vpop.f32.mrb[0].mxu0
    %v1631 = vpop.f32.mrb[0].mxu0
    %1632 = vdwg.mxu0
    %v1633 = vadd.f32 %v1547, %v1586
    %v1634 = vadd.f32 %v1548, %v1588
    %v1635 = vadd.f32 %v1549, %v1627
    %v1636 = vadd.f32 %v1550, %v1629
    %v1637 = vmul.f32 %v1633, 0.5
    %v1638 = vtanh.pop %v1637
    %v1639 = vmul.f32 %v1638, 0.5
    %v1640 = vadd.f32 %v1639, 0.5
    %v1641 = vmul.f32 %v1634, 0.5
    %v1642 = vtanh.pop %v1641
    %v1643 = vmul.f32 %v1642, 0.5
    %v1644 = vadd.f32 %v1643, 0.5
    %v1645 = vtanh.pop %v1635
    %v1646 = vmul.f32 %v1636, 0.5
    %v1647 = vtanh.pop %v1646
    %v1648 = vmul.f32 %v1647, 0.5
    %v1649 = vadd.f32 %v1648, 0.5
    %v1650 = vmul.f32 %v1644, %v1435
    %v1651 = vmul.f32 %v1640, %v1645
    %v1652 = vadd.f32 %v1650, %v1651
    %v1653 = vtanh.pop %v1652
    %v1654 = vmul.f32 %v1649, %v1653
    %v1655 = vpack.c.bf16 %v1654, %v1654
    %v1656 = vpack.c.bf16 %v1539, %v1539
    %1657 = vmatprep.subr.bf16.mxu0 %v1096
    %1658 = vmatpush1.bf16.msra.mxu0 %v1095
    %1659 = vmatprep.subr.bf16.mxu0 %v1100
    %1660 = vmatpush1.bf16.msra.mxu0 %v1099
    %1661 = vmatprep.subr.bf16.mxu0 %v1104
    %1662 = vmatpush1.bf16.msra.mxu0 %v1103
    %1663 = vmatprep.subr.bf16.mxu0 %v1108
    %1664 = vmatpush1.bf16.msra.mxu0 %v1107
    %1665 = vmatprep.subr.bf16.mxu0 %v1112
    %1666 = vmatpush1.bf16.msra.mxu0 %v1111
    %1667 = vmatprep.subr.bf16.mxu0 %v1116
    %1668 = vmatpush1.bf16.msra.mxu0 %v1115
    %1669 = vmatprep.subr.bf16.mxu0 %v1120
    %1670 = vmatpush1.bf16.msra.mxu0 %v1119
    %1671 = vmatprep.subr.bf16.mxu0 %v1124
    %1672 = vmatpush1.bf16.msra.mxu0 %v1123
    %1673 = vmatprep.subr.bf16.mxu0 %v1128
    %1674 = vmatpush1.bf16.msra.mxu0 %v1127
    %1675 = vmatprep.subr.bf16.mxu0 %v1132
    %1676 = vmatpush1.bf16.msra.mxu0 %v1131
    %1677 = vmatprep.subr.bf16.mxu0 %v1136
    %1678 = vmatpush1.bf16.msra.mxu0 %v1135
    %1679 = vmatprep.subr.bf16.mxu0 %v1140
    %1680 = vmatpush1.bf16.msra.mxu0 %v1139
    %1681 = vmatprep.subr.bf16.mxu0 %v1144
    %1682 = vmatpush1.bf16.msra.mxu0 %v1143
    %1683 = vmatprep.subr.bf16.mxu0 %v1148
    %1684 = vmatpush1.bf16.msra.mxu0 %v1147
    %1685 = vmatprep.subr.bf16.mxu0 %v1152
    %1686 = vmatpush1.bf16.msra.mxu0 %v1151
    %1687 = vmatprep.subr.bf16.mxu0 %v1156
    %1688 = vmatpush1.bf16.msra.mxu0 %v1155
    %1689 = vmatprep.mubr.bf16.mxu0 %v1656
    %1690 = vmatmul.mubr.bf16.gmra.mrb[0].mxu0 %v1655
    %v1691 = vpop.f32.mrb[0].mxu0
    %v1692 = vadd.f32 %v519, %v1691
    %v1693 = vpop.f32.mrb[0].mxu0
    %v1694 = vadd.f32 %v523, %v1693
    %v1695 = vpop.f32.mrb[0].mxu0
    %v1696 = vpop.f32.mrb[0].mxu0
    %1697 = vdwg.mxu0
    %1698 = vmatprep.subr.bf16.mxu0 %v1098
    %1699 = vmatpush1.bf16.msra.mxu0 %v1097
    %1700 = vmatprep.subr.bf16.mxu0 %v1102
    %1701 = vmatpush1.bf16.msra.mxu0 %v1101
    %1702 = vmatprep.subr.bf16.mxu0 %v1106
    %1703 = vmatpush1.bf16.msra.mxu0 %v1105
    %1704 = vmatprep.subr.bf16.mxu0 %v1110
    %1705 = vmatpush1.bf16.msra.mxu0 %v1109
    %1706 = vmatprep.subr.bf16.mxu0 %v1114
    %1707 = vmatpush1.bf16.msra.mxu0 %v1113
    %1708 = vmatprep.subr.bf16.mxu0 %v1118
    %1709 = vmatpush1.bf16.msra.mxu0 %v1117
    %1710 = vmatprep.subr.bf16.mxu0 %v1122
    %1711 = vmatpush1.bf16.msra.mxu0 %v1121
    %1712 = vmatprep.subr.bf16.mxu0 %v1126
    %1713 = vmatpush1.bf16.msra.mxu0 %v1125
    %1714 = vmatprep.subr.bf16.mxu0 %v1130
    %1715 = vmatpush1.bf16.msra.mxu0 %v1129
    %1716 = vmatprep.subr.bf16.mxu0 %v1134
    %1717 = vmatpush1.bf16.msra.mxu0 %v1133
    %1718 = vmatprep.subr.bf16.mxu0 %v1138
    %1719 = vmatpush1.bf16.msra.mxu0 %v1137
    %1720 = vmatprep.subr.bf16.mxu0 %v1142
    %1721 = vmatpush1.bf16.msra.mxu0 %v1141
    %1722 = vmatprep.subr.bf16.mxu0 %v1146
    %1723 = vmatpush1.bf16.msra.mxu0 %v1145
    %1724 = vmatprep.subr.bf16.mxu0 %v1150
    %1725 = vmatpush1.bf16.msra.mxu0 %v1149
    %1726 = vmatprep.subr.bf16.mxu0 %v1154
    %1727 = vmatpush1.bf16.msra.mxu0 %v1153
    %1728 = vmatprep.subr.bf16.mxu0 %v1158
    %1729 = vmatpush1.bf16.msra.mxu0 %v1157
    %1730 = vmatprep.mubr.bf16.mxu0 %v1656
    %1731 = vmatmul.mubr.bf16.gmra.mrb[0].mxu0 %v1655
    %v1732 = vpop.f32.mrb[0].mxu0
    %v1733 = vadd.f32 %v527, %v1732
    %v1734 = vpop.f32.mrb[0].mxu0
    %v1735 = vadd.f32 %v531, %v1734
    %v1736 = vpop.f32.mrb[0].mxu0
    %v1737 = vpop.f32.mrb[0].mxu0
    %1738 = vdwg.mxu0
    %v1739 = vmul.f32 %v1692, 0.5
    %v1740 = vtanh.pop %v1739
    %v1741 = vmul.f32 %v1740, 0.5
    %v1742 = vadd.f32 %v1741, 0.5
    %v1743 = vmul.f32 %v1694, 0.5
    %v1744 = vtanh.pop %v1743
    %v1745 = vmul.f32 %v1744, 0.5
    %v1746 = vadd.f32 %v1745, 0.5
    %v1747 = vtanh.pop %v1733
    %v1748 = vmul.f32 %v1735, 0.5
    %v1749 = vtanh.pop %v1748
    %v1750 = vmul.f32 %v1749, 0.5
    %v1751 = vadd.f32 %v1750, 0.5
    %v1752 = vmul.f32 %v1746, %v1537
    %v1753 = vmul.f32 %v1742, %v1747
    %v1754 = vadd.f32 %v1752, %v1753
    %v1755 = vtanh.pop %v1754
    %v1756 = vmul.f32 %v1751, %v1755
    %vm1757 = vcmp.eq.s32.totalorder %v536, 2
    %v1758 = vsel %vm1757, 1, 0
    %1759 = vset.pattern.permute.xlu0 0
    %1760 = vperm.xlu0 %1759, %v1758
    %v1761 = vpop.permute.xlu0 %1760
    %vm1762 = vcmp.eq.s32.totalorder %v1761, 1
    %v1763 = vsel %vm1762, %v1756, %v1546
    %v1764 = vld [vmem:[#allocation2 + $0x60] sm:$0xff]
    %v1765 = vld [vmem:[#allocation2 + $0x68] sm:$0xff]
    %v1766 = vld [vmem:[#allocation2 + $0x70] sm:$0xff]
    %v1767 = vld [vmem:[#allocation2 + $0x78] sm:$0xff]
    %1768 = vmatprep.subr.bf16.mxu0 %v670
    %1769 = vmatpush1.bf16.msra.mxu0 %v669
    %1770 = vmatprep.subr.bf16.mxu0 %v674
    %1771 = vmatpush1.bf16.msra.mxu0 %v673
    %1772 = vmatprep.subr.bf16.mxu0 %v678
    %1773 = vmatpush1.bf16.msra.mxu0 %v677
    %1774 = vmatprep.subr.bf16.mxu0 %v682
    %1775 = vmatpush1.bf16.msra.mxu0 %v681
    %1776 = vmatprep.subr.bf16.mxu0 %v686
    %1777 = vmatpush1.bf16.msra.mxu0 %v685
    %1778 = vmatprep.subr.bf16.mxu0 %v690
    %1779 = vmatpush1.bf16.msra.mxu0 %v689
    %1780 = vmatprep.subr.bf16.mxu0 %v694
    %1781 = vmatpush1.bf16.msra.mxu0 %v693
    %1782 = vmatprep.subr.bf16.mxu0 %v698
    %1783 = vmatpush1.bf16.msra.mxu0 %v697
    %1784 = vmatprep.subr.bf16.mxu0 0
    %1785 = vmatpush1.bf16.msra.mxu0 0
    %1786 = vmatprep.subr.bf16.mxu0 0
    %1787 = vmatpush1.bf16.msra.mxu0 0
    %1788 = vmatprep.subr.bf16.mxu0 0
    %1789 = vmatpush1.bf16.msra.mxu0 0
    %1790 = vmatprep.subr.bf16.mxu0 0
    %1791 = vmatpush1.bf16.msra.mxu0 0
    %1792 = vmatprep.subr.bf16.mxu0 0
    %1793 = vmatpush1.bf16.msra.mxu0 0
    %1794 = vmatprep.subr.bf16.mxu0 0
    %1795 = vmatpush1.bf16.msra.mxu0 0
    %1796 = vmatprep.subr.bf16.mxu0 0
    %1797 = vmatpush1.bf16.msra.mxu0 0
    %1798 = vmatprep.subr.bf16.mxu0 0
    %1799 = vmatpush1.bf16.msra.mxu0 0
    %1800 = vmatprep.mubr.bf16.mxu0 0
    %1801 = vmatmul.mubr.bf16.gmra.mrb[0].mxu0 %v1655
    %v1802 = vpop.f32.mrb[0].mxu0
    %v1803 = vadd.f32 0.0, %v1802
    %v1804 = vpop.f32.mrb[0].mxu0
    %v1805 = vadd.f32 0.0, %v1804
    %v1806 = vpop.f32.mrb[0].mxu0
    %v1807 = vpop.f32.mrb[0].mxu0
    %1808 = vdwg.mxu0
    %1809 = vmatprep.subr.bf16.mxu0 %v672
    %1810 = vmatpush1.bf16.msra.mxu0 %v671
    %1811 = vmatprep.subr.bf16.mxu0 %v676
    %1812 = vmatpush1.bf16.msra.mxu0 %v675
    %1813 = vmatprep.subr.bf16.mxu0 %v680
    %1814 = vmatpush1.bf16.msra.mxu0 %v679
    %1815 = vmatprep.subr.bf16.mxu0 %v684
    %1816 = vmatpush1.bf16.msra.mxu0 %v683
    %1817 = vmatprep.subr.bf16.mxu0 %v688
    %1818 = vmatpush1.bf16.msra.mxu0 %v687
    %1819 = vmatprep.subr.bf16.mxu0 %v692
    %1820 = vmatpush1.bf16.msra.mxu0 %v691
    %1821 = vmatprep.subr.bf16.mxu0 %v696
    %1822 = vmatpush1.bf16.msra.mxu0 %v695
    %1823 = vmatprep.subr.bf16.mxu0 %v700
    %1824 = vmatpush1.bf16.msra.mxu0 %v699
    %1825 = vmatprep.subr.bf16.mxu0 0
    %1826 = vmatpush1.bf16.msra.mxu0 0
    %1827 = vmatprep.subr.bf16.mxu0 0
    %1828 = vmatpush1.bf16.msra.mxu0 0
    %1829 = vmatprep.subr.bf16.mxu0 0
    %1830 = vmatpush1.bf16.msra.mxu0 0
    %1831 = vmatprep.subr.bf16.mxu0 0
    %1832 = vmatpush1.bf16.msra.mxu0 0
    %1833 = vmatprep.subr.bf16.mxu0 0
    %1834 = vmatpush1.bf16.msra.mxu0 0
    %1835 = vmatprep.subr.bf16.mxu0 0
    %1836 = vmatpush1.bf16.msra.mxu0 0
    %1837 = vmatprep.subr.bf16.mxu0 0
    %1838 = vmatpush1.bf16.msra.mxu0 0
    %1839 = vmatprep.subr.bf16.mxu0 0
    %1840 = vmatpush1.bf16.msra.mxu0 0
    %1841 = vmatprep.mubr.bf16.mxu0 0
    %1842 = vmatmul.mubr.bf16.gmra.mrb[0].mxu0 %v1655
    %v1843 = vpop.f32.mrb[0].mxu0
    %v1844 = vadd.f32 0.0, %v1843
    %v1845 = vpop.f32.mrb[0].mxu0
    %v1846 = vadd.f32 0.0, %v1845
    %v1847 = vpop.f32.mrb[0].mxu0
    %v1848 = vpop.f32.mrb[0].mxu0
    %1849 = vdwg.mxu0
    %v1850 = vadd.f32 %v1764, %v1803
    %v1851 = vadd.f32 %v1765, %v1805
    %v1852 = vadd.f32 %v1766, %v1844
    %v1853 = vadd.f32 %v1767, %v1846
    %v1854 = vmul.f32 %v1850, 0.5
    %v1855 = vtanh.pop %v1854
    %v1856 = vmul.f32 %v1855, 0.5
    %v1857 = vadd.f32 %v1856, 0.5
    %v1858 = vmul.f32 %v1851, 0.5
    %v1859 = vtanh.pop %v1858
    %v1860 = vmul.f32 %v1859, 0.5
    %v1861 = vadd.f32 %v1860, 0.5
    %v1862 = vtanh.pop %v1852
    %v1863 = vmul.f32 %v1853, 0.5
    %v1864 = vtanh.pop %v1863
    %v1865 = vmul.f32 %v1864, 0.5
    %v1866 = vadd.f32 %v1865, 0.5
    %v1867 = vmul.f32 %v1861, %v1652
    %v1868 = vmul.f32 %v1857, %v1862
    %v1869 = vadd.f32 %v1867, %v1868
    %v1870 = vtanh.pop %v1869
    %v1871 = vmul.f32 %v1866, %v1870
    %v1872 = vpack.c.bf16 %v1871, %v1871
    %v1873 = vpack.c.bf16 %v1756, %v1756
    %1874 = vmatprep.subr.bf16.mxu0 %v1096
    %1875 = vmatpush1.bf16.msra.mxu0 %v1095
    %1876 = vmatprep.subr.bf16.mxu0 %v1100
    %1877 = vmatpush1.bf16.msra.mxu0 %v1099
    %1878 = vmatprep.subr.bf16.mxu0 %v1104
    %1879 = vmatpush1.bf16.msra.mxu0 %v1103
    %1880 = vmatprep.subr.bf16.mxu0 %v1108
    %1881 = vmatpush1.bf16.msra.mxu0 %v1107
    %1882 = vmatprep.subr.bf16.mxu0 %v1112
    %1883 = vmatpush1.bf16.msra.mxu0 %v1111
    %1884 = vmatprep.subr.bf16.mxu0 %v1116
    %1885 = vmatpush1.bf16.msra.mxu0 %v1115
    %1886 = vmatprep.subr.bf16.mxu0 %v1120
    %1887 = vmatpush1.bf16.msra.mxu0 %v1119
    %1888 = vmatprep.subr.bf16.mxu0 %v1124
    %1889 = vmatpush1.bf16.msra.mxu0 %v1123
    %1890 = vmatprep.subr.bf16.mxu0 %v1128
    %1891 = vmatpush1.bf16.msra.mxu0 %v1127
    %1892 = vmatprep.subr.bf16.mxu0 %v1132
    %1893 = vmatpush1.bf16.msra.mxu0 %v1131
    %1894 = vmatprep.subr.bf16.mxu0 %v1136
    %1895 = vmatpush1.bf16.msra.mxu0 %v1135
    %1896 = vmatprep.subr.bf16.mxu0 %v1140
    %1897 = vmatpush1.bf16.msra.mxu0 %v1139
    %1898 = vmatprep.subr.bf16.mxu0 %v1144
    %1899 = vmatpush1.bf16.msra.mxu0 %v1143
    %1900 = vmatprep.subr.bf16.mxu0 %v1148
    %1901 = vmatpush1.bf16.msra.mxu0 %v1147
    %1902 = vmatprep.subr.bf16.mxu0 %v1152
    %1903 = vmatpush1.bf16.msra.mxu0 %v1151
    %1904 = vmatprep.subr.bf16.mxu0 %v1156
    %1905 = vmatpush1.bf16.msra.mxu0 %v1155
    %1906 = vmatprep.mubr.bf16.mxu0 %v1873
    %1907 = vmatmul.mubr.bf16.gmra.mrb[0].mxu0 %v1872
    %v1908 = vpop.f32.mrb[0].mxu0
    %v1909 = vadd.f32 %v519, %v1908
    %v1910 = vpop.f32.mrb[0].mxu0
    %v1911 = vadd.f32 %v523, %v1910
    %v1912 = vpop.f32.mrb[0].mxu0
    %v1913 = vpop.f32.mrb[0].mxu0
    %1914 = vdwg.mxu0
    %1915 = vmatprep.subr.bf16.mxu0 %v1098
    %1916 = vmatpush1.bf16.msra.mxu0 %v1097
    %1917 = vmatprep.subr.bf16.mxu0 %v1102
    %1918 = vmatpush1.bf16.msra.mxu0 %v1101
    %1919 = vmatprep.subr.bf16.mxu0 %v1106
    %1920 = vmatpush1.bf16.msra.mxu0 %v1105
    %1921 = vmatprep.subr.bf16.mxu0 %v1110
    %1922 = vmatpush1.bf16.msra.mxu0 %v1109
    %1923 = vmatprep.subr.bf16.mxu0 %v1114
    %1924 = vmatpush1.bf16.msra.mxu0 %v1113
    %1925 = vmatprep.subr.bf16.mxu0 %v1118
    %1926 = vmatpush1.bf16.msra.mxu0 %v1117
    %1927 = vmatprep.subr.bf16.mxu0 %v1122
    %1928 = vmatpush1.bf16.msra.mxu0 %v1121
    %1929 = vmatprep.subr.bf16.mxu0 %v1126
    %1930 = vmatpush1.bf16.msra.mxu0 %v1125
    %1931 = vmatprep.subr.bf16.mxu0 %v1130
    %1932 = vmatpush1.bf16.msra.mxu0 %v1129
    %1933 = vmatprep.subr.bf16.mxu0 %v1134
    %1934 = vmatpush1.bf16.msra.mxu0 %v1133
    %1935 = vmatprep.subr.bf16.mxu0 %v1138
    %1936 = vmatpush1.bf16.msra.mxu0 %v1137
    %1937 = vmatprep.subr.bf16.mxu0 %v1142
    %1938 = vmatpush1.bf16.msra.mxu0 %v1141
    %1939 = vmatprep.subr.bf16.mxu0 %v1146
    %1940 = vmatpush1.bf16.msra.mxu0 %v1145
    %1941 = vmatprep.subr.bf16.mxu0 %v1150
    %1942 = vmatpush1.bf16.msra.mxu0 %v1149
    %1943 = vmatprep.subr.bf16.mxu0 %v1154
    %1944 = vmatpush1.bf16.msra.mxu0 %v1153
    %1945 = vmatprep.subr.bf16.mxu0 %v1158
    %1946 = vmatpush1.bf16.msra.mxu0 %v1157
    %1947 = vmatprep.mubr.bf16.mxu0 %v1873
    %1948 = vmatmul.mubr.bf16.gmra.mrb[0].mxu0 %v1872
    %v1949 = vpop.f32.mrb[0].mxu0
    %v1950 = vadd.f32 %v527, %v1949
    %v1951 = vpop.f32.mrb[0].mxu0
    %v1952 = vadd.f32 %v531, %v1951
    %v1953 = vpop.f32.mrb[0].mxu0
    %v1954 = vpop.f32.mrb[0].mxu0
    %1955 = vdwg.mxu0
    %v1956 = vmul.f32 %v1909, 0.5
    %v1957 = vtanh.pop %v1956
    %v1958 = vmul.f32 %v1957, 0.5
    %v1959 = vadd.f32 %v1958, 0.5
    %v1960 = vmul.f32 %v1911, 0.5
    %v1961 = vtanh.pop %v1960
    %v1962 = vmul.f32 %v1961, 0.5
    %v1963 = vadd.f32 %v1962, 0.5
    %v1964 = vtanh.pop %v1950
    %v1965 = vmul.f32 %v1952, 0.5
    %v1966 = vtanh.pop %v1965
    %v1967 = vmul.f32 %v1966, 0.5
    %v1968 = vadd.f32 %v1967, 0.5
    %v1969 = vmul.f32 %v1963, %v1754
    %v1970 = vmul.f32 %v1959, %v1964
    %v1971 = vadd.f32 %v1969, %v1970
    %v1972 = vtanh.pop %v1971
    %v1973 = vmul.f32 %v1968, %v1972
    %vm1974 = vcmp.eq.s32.totalorder %v536, 3
    %v1975 = vsel %vm1974, 1, 0
    %1976 = vset.pattern.permute.xlu0 0
    %1977 = vperm.xlu0 %1976, %v1975
    %v1978 = vpop.permute.xlu0 %1977
    %vm1979 = vcmp.eq.s32.totalorder %v1978, 1
    %v1980 = vsel %vm1979, %v1973, %v1763
    %v1981 = vld [vmem:[#allocation2 + $0x80] sm:$0xff]
    %v1982 = vld [vmem:[#allocation2 + $0x88] sm:$0xff]
    %v1983 = vld [vmem:[#allocation2 + $0x90] sm:$0xff]
    %v1984 = vld [vmem:[#allocation2 + $0x98] sm:$0xff]
    %1985 = vmatprep.subr.bf16.mxu0 %v670
    %1986 = vmatpush1.bf16.msra.mxu0 %v669
    %1987 = vmatprep.subr.bf16.mxu0 %v674
    %1988 = vmatpush1.bf16.msra.mxu0 %v673
    %1989 = vmatprep.subr.bf16.mxu0 %v678
    %1990 = vmatpush1.bf16.msra.mxu0 %v677
    %1991 = vmatprep.subr.bf16.mxu0 %v682
    %1992 = vmatpush1.bf16.msra.mxu0 %v681
    %1993 = vmatprep.subr.bf16.mxu0 %v686
    %1994 = vmatpush1.bf16.msra.mxu0 %v685
    %1995 = vmatprep.subr.bf16.mxu0 %v690
    %1996 = vmatpush1.bf16.msra.mxu0 %v689
    %1997 = vmatprep.subr.bf16.mxu0 %v694
    %1998 = vmatpush1.bf16.msra.mxu0 %v693
    %1999 = vmatprep.subr.bf16.mxu0 %v698
    %2000 = vmatpush1.bf16.msra.mxu0 %v697
    %2001 = vmatprep.subr.bf16.mxu0 0
    %2002 = vmatpush1.bf16.msra.mxu0 0
    %2003 = vmatprep.subr.bf16.mxu0 0
    %2004 = vmatpush1.bf16.msra.mxu0 0
    %2005 = vmatprep.subr.bf16.mxu0 0
    %2006 = vmatpush1.bf16.msra.mxu0 0
    %2007 = vmatprep.subr.bf16.mxu0 0
    %2008 = vmatpush1.bf16.msra.mxu0 0
    %2009 = vmatprep.subr.bf16.mxu0 0
    %2010 = vmatpush1.bf16.msra.mxu0 0
    %2011 = vmatprep.subr.bf16.mxu0 0
    %2012 = vmatpush1.bf16.msra.mxu0 0
    %2013 = vmatprep.subr.bf16.mxu0 0
    %2014 = vmatpush1.bf16.msra.mxu0 0
    %2015 = vmatprep.subr.bf16.mxu0 0
    %2016 = vmatpush1.bf16.msra.mxu0 0
    %2017 = vmatprep.mubr.bf16.mxu0 0
    %2018 = vmatmul.mubr.bf16.gmra.mrb[0].mxu0 %v1872
    %v2019 = vpop.f32.mrb[0].mxu0
    %v2020 = vadd.f32 0.0, %v2019
    %v2021 = vpop.f32.mrb[0].mxu0
    %v2022 = vadd.f32 0.0, %v2021
    %v2023 = vpop.f32.mrb[0].mxu0
    %v2024 = vpop.f32.mrb[0].mxu0
    %2025 = vdwg.mxu0
    %2026 = vmatprep.subr.bf16.mxu0 %v672
    %2027 = vmatpush1.bf16.msra.mxu0 %v671
    %2028 = vmatprep.subr.bf16.mxu0 %v676
    %2029 = vmatpush1.bf16.msra.mxu0 %v675
    %2030 = vmatprep.subr.bf16.mxu0 %v680
    %2031 = vmatpush1.bf16.msra.mxu0 %v679
    %2032 = vmatprep.subr.bf16.mxu0 %v684
    %2033 = vmatpush1.bf16.msra.mxu0 %v683
    %2034 = vmatprep.subr.bf16.mxu0 %v688
    %2035 = vmatpush1.bf16.msra.mxu0 %v687
    %2036 = vmatprep.subr.bf16.mxu0 %v692
    %2037 = vmatpush1.bf16.msra.mxu0 %v691
    %2038 = vmatprep.subr.bf16.mxu0 %v696
    %2039 = vmatpush1.bf16.msra.mxu0 %v695
    %2040 = vmatprep.subr.bf16.mxu0 %v700
    %2041 = vmatpush1.bf16.msra.mxu0 %v699
    %2042 = vmatprep.subr.bf16.mxu0 0
    %2043 = vmatpush1.bf16.msra.mxu0 0
    %2044 = vmatprep.subr.bf16.mxu0 0
    %2045 = vmatpush1.bf16.msra.mxu0 0
    %2046 = vmatprep.subr.bf16.mxu0 0
    %2047 = vmatpush1.bf16.msra.mxu0 0
    %2048 = vmatprep.subr.bf16.mxu0 0
    %2049 = vmatpush1.bf16.msra.mxu0 0
    %2050 = vmatprep.subr.bf16.mxu0 0
    %2051 = vmatpush1.bf16.msra.mxu0 0
    %2052 = vmatprep.subr.bf16.mxu0 0
    %2053 = vmatpush1.bf16.msra.mxu0 0
    %2054 = vmatprep.subr.bf16.mxu0 0
    %2055 = vmatpush1.bf16.msra.mxu0 0
    %2056 = vmatprep.subr.bf16.mxu0 0
    %2057 = vmatpush1.bf16.msra.mxu0 0
    %2058 = vmatprep.mubr.bf16.mxu0 0
    %2059 = vmatmul.mubr.bf16.gmra.mrb[0].mxu0 %v1872
    %v2060 = vpop.f32.mrb[0].mxu0
    %v2061 = vadd.f32 0.0, %v2060
    %v2062 = vpop.f32.mrb[0].mxu0
    %v2063 = vadd.f32 0.0, %v2062
    %v2064 = vpop.f32.mrb[0].mxu0
    %v2065 = vpop.f32.mrb[0].mxu0
    %2066 = vdwg.mxu0
    %v2067 = vadd.f32 %v1981, %v2020
    %v2068 = vadd.f32 %v1982, %v2022
    %v2069 = vadd.f32 %v1983, %v2061
    %v2070 = vadd.f32 %v1984, %v2063
    %v2071 = vmul.f32 %v2067, 0.5
    %v2072 = vtanh.pop %v2071
    %v2073 = vmul.f32 %v2072, 0.5
    %v2074 = vadd.f32 %v2073, 0.5
    %v2075 = vmul.f32 %v2068, 0.5
    %v2076 = vtanh.pop %v2075
    %v2077 = vmul.f32 %v2076, 0.5
    %v2078 = vadd.f32 %v2077, 0.5
    %v2079 = vtanh.pop %v2069
    %v2080 = vmul.f32 %v2070, 0.5
    %v2081 = vtanh.pop %v2080
    %v2082 = vmul.f32 %v2081, 0.5
    %v2083 = vadd.f32 %v2082, 0.5
    %v2084 = vmul.f32 %v2078, %v1869
    %v2085 = vmul.f32 %v2074, %v2079
    %v2086 = vadd.f32 %v2084, %v2085
    %v2087 = vtanh.pop %v2086
    %v2088 = vmul.f32 %v2083, %v2087
    %v2089 = vpack.c.bf16 %v2088, %v2088
    %v2090 = vpack.c.bf16 %v1973, %v1973
    %2091 = vmatprep.subr.bf16.mxu0 %v1096
    %2092 = vmatpush1.bf16.msra.mxu0 %v1095
    %2093 = vmatprep.subr.bf16.mxu0 %v1100
    %2094 = vmatpush1.bf16.msra.mxu0 %v1099
    %2095 = vmatprep.subr.bf16.mxu0 %v1104
    %2096 = vmatpush1.bf16.msra.mxu0 %v1103
    %2097 = vmatprep.subr.bf16.mxu0 %v1108
    %2098 = vmatpush1.bf16.msra.mxu0 %v1107
    %2099 = vmatprep.subr.bf16.mxu0 %v1112
    %2100 = vmatpush1.bf16.msra.mxu0 %v1111
    %2101 = vmatprep.subr.bf16.mxu0 %v1116
    %2102 = vmatpush1.bf16.msra.mxu0 %v1115
    %2103 = vmatprep.subr.bf16.mxu0 %v1120
    %2104 = vmatpush1.bf16.msra.mxu0 %v1119
    %2105 = vmatprep.subr.bf16.mxu0 %v1124
    %2106 = vmatpush1.bf16.msra.mxu0 %v1123
    %2107 = vmatprep.subr.bf16.mxu0 %v1128
    %2108 = vmatpush1.bf16.msra.mxu0 %v1127
    %2109 = vmatprep.subr.bf16.mxu0 %v1132
    %2110 = vmatpush1.bf16.msra.mxu0 %v1131
    %2111 = vmatprep.subr.bf16.mxu0 %v1136
    %2112 = vmatpush1.bf16.msra.mxu0 %v1135
    %2113 = vmatprep.subr.bf16.mxu0 %v1140
    %2114 = vmatpush1.bf16.msra.mxu0 %v1139
    %2115 = vmatprep.subr.bf16.mxu0 %v1144
    %2116 = vmatpush1.bf16.msra.mxu0 %v1143
    %2117 = vmatprep.subr.bf16.mxu0 %v1148
    %2118 = vmatpush1.bf16.msra.mxu0 %v1147
    %2119 = vmatprep.subr.bf16.mxu0 %v1152
    %2120 = vmatpush1.bf16.msra.mxu0 %v1151
    %2121 = vmatprep.subr.bf16.mxu0 %v1156
    %2122 = vmatpush1.bf16.msra.mxu0 %v1155
    %2123 = vmatprep.mubr.bf16.mxu0 %v2090
    %2124 = vmatmul.mubr.bf16.gmra.mrb[0].mxu0 %v2089
    %v2125 = vpop.f32.mrb[0].mxu0
    %v2126 = vadd.f32 %v519, %v2125
    %v2127 = vpop.f32.mrb[0].mxu0
    %v2128 = vadd.f32 %v523, %v2127
    %v2129 = vpop.f32.mrb[0].mxu0
    %v2130 = vpop.f32.mrb[0].mxu0
    %2131 = vdwg.mxu0
    %2132 = vmatprep.subr.bf16.mxu0 %v1098
    %2133 = vmatpush1.bf16.msra.mxu0 %v1097
    %2134 = vmatprep.subr.bf16.mxu0 %v1102
    %2135 = vmatpush1.bf16.msra.mxu0 %v1101
    %2136 = vmatprep.subr.bf16.mxu0 %v1106
    %2137 = vmatpush1.bf16.msra.mxu0 %v1105
    %2138 = vmatprep.subr.bf16.mxu0 %v1110
    %2139 = vmatpush1.bf16.msra.mxu0 %v1109
    %2140 = vmatprep.subr.bf16.mxu0 %v1114
    %2141 = vmatpush1.bf16.msra.mxu0 %v1113
    %2142 = vmatprep.subr.bf16.mxu0 %v1118
    %2143 = vmatpush1.bf16.msra.mxu0 %v1117
    %2144 = vmatprep.subr.bf16.mxu0 %v1122
    %2145 = vmatpush1.bf16.msra.mxu0 %v1121
    %2146 = vmatprep.subr.bf16.mxu0 %v1126
    %2147 = vmatpush1.bf16.msra.mxu0 %v1125
    %2148 = vmatprep.subr.bf16.mxu0 %v1130
    %2149 = vmatpush1.bf16.msra.mxu0 %v1129
    %2150 = vmatprep.subr.bf16.mxu0 %v1134
    %2151 = vmatpush1.bf16.msra.mxu0 %v1133
    %2152 = vmatprep.subr.bf16.mxu0 %v1138
    %2153 = vmatpush1.bf16.msra.mxu0 %v1137
    %2154 = vmatprep.subr.bf16.mxu0 %v1142
    %2155 = vmatpush1.bf16.msra.mxu0 %v1141
    %2156 = vmatprep.subr.bf16.mxu0 %v1146
    %2157 = vmatpush1.bf16.msra.mxu0 %v1145
    %2158 = vmatprep.subr.bf16.mxu0 %v1150
    %2159 = vmatpush1.bf16.msra.mxu0 %v1149
    %2160 = vmatprep.subr.bf16.mxu0 %v1154
    %2161 = vmatpush1.bf16.msra.mxu0 %v1153
    %2162 = vmatprep.subr.bf16.mxu0 %v1158
    %2163 = vmatpush1.bf16.msra.mxu0 %v1157
    %2164 = vmatprep.mubr.bf16.mxu0 %v2090
    %2165 = vmatmul.mubr.bf16.gmra.mrb[0].mxu0 %v2089
    %v2166 = vpop.f32.mrb[0].mxu0
    %v2167 = vadd.f32 %v527, %v2166
    %v2168 = vpop.f32.mrb[0].mxu0
    %v2169 = vadd.f32 %v531, %v2168
    %v2170 = vpop.f32.mrb[0].mxu0
    %v2171 = vpop.f32.mrb[0].mxu0
    %2172 = vdwg.mxu0
    %v2173 = vmul.f32 %v2126, 0.5
    %v2174 = vtanh.pop %v2173
    %v2175 = vmul.f32 %v2174, 0.5
    %v2176 = vadd.f32 %v2175, 0.5
    %v2177 = vmul.f32 %v2128, 0.5
    %v2178 = vtanh.pop %v2177
    %v2179 = vmul.f32 %v2178, 0.5
    %v2180 = vadd.f32 %v2179, 0.5
    %v2181 = vtanh.pop %v2167
    %v2182 = vmul.f32 %v2169, 0.5
    %v2183 = vtanh.pop %v2182
    %v2184 = vmul.f32 %v2183, 0.5
    %v2185 = vadd.f32 %v2184, 0.5
    %v2186 = vmul.f32 %v2180, %v1971
    %v2187 = vmul.f32 %v2176, %v2181
    %v2188 = vadd.f32 %v2186, %v2187
    %v2189 = vtanh.pop %v2188
    %v2190 = vmul.f32 %v2185, %v2189
    %vm2191 = vcmp.eq.s32.totalorder %v536, 4
    %v2192 = vsel %vm2191, 1, 0
    %2193 = vset.pattern.permute.xlu0 0
    %2194 = vperm.xlu0 %2193, %v2192
    %v2195 = vpop.permute.xlu0 %2194
    %vm2196 = vcmp.eq.s32.totalorder %v2195, 1
    %v2197 = vsel %vm2196, %v2190, %v1980
    %v2198 = vld [vmem:[#allocation2 + $0xa0] sm:$0xff]
    %v2199 = vld [vmem:[#allocation2 + $0xa8] sm:$0xff]
    %v2200 = vld [vmem:[#allocation2 + $0xb0] sm:$0xff]
    %v2201 = vld [vmem:[#allocation2 + $0xb8] sm:$0xff]
    %2202 = vmatprep.subr.bf16.mxu0 %v670
    %2203 = vmatpush1.bf16.msra.mxu0 %v669
    %2204 = vmatprep.subr.bf16.mxu0 %v674
    %2205 = vmatpush1.bf16.msra.mxu0 %v673
    %2206 = vmatprep.subr.bf16.mxu0 %v678
    %2207 = vmatpush1.bf16.msra.mxu0 %v677
    %2208 = vmatprep.subr.bf16.mxu0 %v682
    %2209 = vmatpush1.bf16.msra.mxu0 %v681
    %2210 = vmatprep.subr.bf16.mxu0 %v686
    %2211 = vmatpush1.bf16.msra.mxu0 %v685
    %2212 = vmatprep.subr.bf16.mxu0 %v690
    %2213 = vmatpush1.bf16.msra.mxu0 %v689
    %2214 = vmatprep.subr.bf16.mxu0 %v694
    %2215 = vmatpush1.bf16.msra.mxu0 %v693
    %2216 = vmatprep.subr.bf16.mxu0 %v698
    %2217 = vmatpush1.bf16.msra.mxu0 %v697
    %2218 = vmatprep.subr.bf16.mxu0 0
    %2219 = vmatpush1.bf16.msra.mxu0 0
    %2220 = vmatprep.subr.bf16.mxu0 0
    %2221 = vmatpush1.bf16.msra.mxu0 0
    %2222 = vmatprep.subr.bf16.mxu0 0
    %2223 = vmatpush1.bf16.msra.mxu0 0
    %2224 = vmatprep.subr.bf16.mxu0 0
    %2225 = vmatpush1.bf16.msra.mxu0 0
    %2226 = vmatprep.subr.bf16.mxu0 0
    %2227 = vmatpush1.bf16.msra.mxu0 0
    %2228 = vmatprep.subr.bf16.mxu0 0
    %2229 = vmatpush1.bf16.msra.mxu0 0
    %2230 = vmatprep.subr.bf16.mxu0 0
    %2231 = vmatpush1.bf16.msra.mxu0 0
    %2232 = vmatprep.subr.bf16.mxu0 0
    %2233 = vmatpush1.bf16.msra.mxu0 0
    %2234 = vmatprep.mubr.bf16.mxu0 0
    %2235 = vmatmul.mubr.bf16.gmra.mrb[0].mxu0 %v2089
    %v2236 = vpop.f32.mrb[0].mxu0
    %v2237 = vadd.f32 0.0, %v2236
    %v2238 = vpop.f32.mrb[0].mxu0
    %v2239 = vadd.f32 0.0, %v2238
    %v2240 = vpop.f32.mrb[0].mxu0
    %v2241 = vpop.f32.mrb[0].mxu0
    %2242 = vdwg.mxu0
    %2243 = vmatprep.subr.bf16.mxu0 %v672
    %2244 = vmatpush1.bf16.msra.mxu0 %v671
    %2245 = vmatprep.subr.bf16.mxu0 %v676
    %2246 = vmatpush1.bf16.msra.mxu0 %v675
    %2247 = vmatprep.subr.bf16.mxu0 %v680
    %2248 = vmatpush1.bf16.msra.mxu0 %v679
    %2249 = vmatprep.subr.bf16.mxu0 %v684
    %2250 = vmatpush1.bf16.msra.mxu0 %v683
    %2251 = vmatprep.subr.bf16.mxu0 %v688
    %2252 = vmatpush1.bf16.msra.mxu0 %v687
    %2253 = vmatprep.subr.bf16.mxu0 %v692
    %2254 = vmatpush1.bf16.msra.mxu0 %v691
    %2255 = vmatprep.subr.bf16.mxu0 %v696
    %2256 = vmatpush1.bf16.msra.mxu0 %v695
    %2257 = vmatprep.subr.bf16.mxu0 %v700
    %2258 = vmatpush1.bf16.msra.mxu0 %v699
    %2259 = vmatprep.subr.bf16.mxu0 0
    %2260 = vmatpush1.bf16.msra.mxu0 0
    %2261 = vmatprep.subr.bf16.mxu0 0
    %2262 = vmatpush1.bf16.msra.mxu0 0
    %2263 = vmatprep.subr.bf16.mxu0 0
    %2264 = vmatpush1.bf16.msra.mxu0 0
    %2265 = vmatprep.subr.bf16.mxu0 0
    %2266 = vmatpush1.bf16.msra.mxu0 0
    %2267 = vmatprep.subr.bf16.mxu0 0
    %2268 = vmatpush1.bf16.msra.mxu0 0
    %2269 = vmatprep.subr.bf16.mxu0 0
    %2270 = vmatpush1.bf16.msra.mxu0 0
    %2271 = vmatprep.subr.bf16.mxu0 0
    %2272 = vmatpush1.bf16.msra.mxu0 0
    %2273 = vmatprep.subr.bf16.mxu0 0
    %2274 = vmatpush1.bf16.msra.mxu0 0
    %2275 = vmatprep.mubr.bf16.mxu0 0
    %2276 = vmatmul.mubr.bf16.gmra.mrb[0].mxu0 %v2089
    %v2277 = vpop.f32.mrb[0].mxu0
    %v2278 = vadd.f32 0.0, %v2277
    %v2279 = vpop.f32.mrb[0].mxu0
    %v2280 = vadd.f32 0.0, %v2279
    %v2281 = vpop.f32.mrb[0].mxu0
    %v2282 = vpop.f32.mrb[0].mxu0
    %2283 = vdwg.mxu0
    %v2284 = vadd.f32 %v2198, %v2237
    %v2285 = vadd.f32 %v2199, %v2239
    %v2286 = vadd.f32 %v2200, %v2278
    %v2287 = vadd.f32 %v2201, %v2280
    %v2288 = vmul.f32 %v2284, 0.5
    %v2289 = vtanh.pop %v2288
    %v2290 = vmul.f32 %v2289, 0.5
    %v2291 = vadd.f32 %v2290, 0.5
    %v2292 = vmul.f32 %v2285, 0.5
    %v2293 = vtanh.pop %v2292
    %v2294 = vmul.f32 %v2293, 0.5
    %v2295 = vadd.f32 %v2294, 0.5
    %v2296 = vtanh.pop %v2286
    %v2297 = vmul.f32 %v2287, 0.5
    %v2298 = vtanh.pop %v2297
    %v2299 = vmul.f32 %v2298, 0.5
    %v2300 = vadd.f32 %v2299, 0.5
    %v2301 = vmul.f32 %v2295, %v2086
    %v2302 = vmul.f32 %v2291, %v2296
    %v2303 = vadd.f32 %v2301, %v2302
    %v2304 = vtanh.pop %v2303
    %v2305 = vmul.f32 %v2300, %v2304
    %v2306 = vpack.c.bf16 %v2305, %v2305
    %v2307 = vpack.c.bf16 %v2190, %v2190
    %2308 = vmatprep.subr.bf16.mxu0 %v1096
    %2309 = vmatpush1.bf16.msra.mxu0 %v1095
    %2310 = vmatprep.subr.bf16.mxu0 %v1100
    %2311 = vmatpush1.bf16.msra.mxu0 %v1099
    %2312 = vmatprep.subr.bf16.mxu0 %v1104
    %2313 = vmatpush1.bf16.msra.mxu0 %v1103
    %2314 = vmatprep.subr.bf16.mxu0 %v1108
    %2315 = vmatpush1.bf16.msra.mxu0 %v1107
    %2316 = vmatprep.subr.bf16.mxu0 %v1112
    %2317 = vmatpush1.bf16.msra.mxu0 %v1111
    %2318 = vmatprep.subr.bf16.mxu0 %v1116
    %2319 = vmatpush1.bf16.msra.mxu0 %v1115
    %2320 = vmatprep.subr.bf16.mxu0 %v1120
    %2321 = vmatpush1.bf16.msra.mxu0 %v1119
    %2322 = vmatprep.subr.bf16.mxu0 %v1124
    %2323 = vmatpush1.bf16.msra.mxu0 %v1123
    %2324 = vmatprep.subr.bf16.mxu0 %v1128
    %2325 = vmatpush1.bf16.msra.mxu0 %v1127
    %2326 = vmatprep.subr.bf16.mxu0 %v1132
    %2327 = vmatpush1.bf16.msra.mxu0 %v1131
    %2328 = vmatprep.subr.bf16.mxu0 %v1136
    %2329 = vmatpush1.bf16.msra.mxu0 %v1135
    %2330 = vmatprep.subr.bf16.mxu0 %v1140
    %2331 = vmatpush1.bf16.msra.mxu0 %v1139
    %2332 = vmatprep.subr.bf16.mxu0 %v1144
    %2333 = vmatpush1.bf16.msra.mxu0 %v1143
    %2334 = vmatprep.subr.bf16.mxu0 %v1148
    %2335 = vmatpush1.bf16.msra.mxu0 %v1147
    %2336 = vmatprep.subr.bf16.mxu0 %v1152
    %2337 = vmatpush1.bf16.msra.mxu0 %v1151
    %2338 = vmatprep.subr.bf16.mxu0 %v1156
    %2339 = vmatpush1.bf16.msra.mxu0 %v1155
    %2340 = vmatprep.mubr.bf16.mxu0 %v2307
    %2341 = vmatmul.mubr.bf16.gmra.mrb[0].mxu0 %v2306
    %v2342 = vpop.f32.mrb[0].mxu0
    %v2343 = vadd.f32 %v519, %v2342
    %v2344 = vpop.f32.mrb[0].mxu0
    %v2345 = vadd.f32 %v523, %v2344
    %v2346 = vpop.f32.mrb[0].mxu0
    %v2347 = vpop.f32.mrb[0].mxu0
    %2348 = vdwg.mxu0
    %2349 = vmatprep.subr.bf16.mxu0 %v1098
    %2350 = vmatpush1.bf16.msra.mxu0 %v1097
    %2351 = vmatprep.subr.bf16.mxu0 %v1102
    %2352 = vmatpush1.bf16.msra.mxu0 %v1101
    %2353 = vmatprep.subr.bf16.mxu0 %v1106
    %2354 = vmatpush1.bf16.msra.mxu0 %v1105
    %2355 = vmatprep.subr.bf16.mxu0 %v1110
    %2356 = vmatpush1.bf16.msra.mxu0 %v1109
    %2357 = vmatprep.subr.bf16.mxu0 %v1114
    %2358 = vmatpush1.bf16.msra.mxu0 %v1113
    %2359 = vmatprep.subr.bf16.mxu0 %v1118
    %2360 = vmatpush1.bf16.msra.mxu0 %v1117
    %2361 = vmatprep.subr.bf16.mxu0 %v1122
    %2362 = vmatpush1.bf16.msra.mxu0 %v1121
    %2363 = vmatprep.subr.bf16.mxu0 %v1126
    %2364 = vmatpush1.bf16.msra.mxu0 %v1125
    %2365 = vmatprep.subr.bf16.mxu0 %v1130
    %2366 = vmatpush1.bf16.msra.mxu0 %v1129
    %2367 = vmatprep.subr.bf16.mxu0 %v1134
    %2368 = vmatpush1.bf16.msra.mxu0 %v1133
    %2369 = vmatprep.subr.bf16.mxu0 %v1138
    %2370 = vmatpush1.bf16.msra.mxu0 %v1137
    %2371 = vmatprep.subr.bf16.mxu0 %v1142
    %2372 = vmatpush1.bf16.msra.mxu0 %v1141
    %2373 = vmatprep.subr.bf16.mxu0 %v1146
    %2374 = vmatpush1.bf16.msra.mxu0 %v1145
    %2375 = vmatprep.subr.bf16.mxu0 %v1150
    %2376 = vmatpush1.bf16.msra.mxu0 %v1149
    %2377 = vmatprep.subr.bf16.mxu0 %v1154
    %2378 = vmatpush1.bf16.msra.mxu0 %v1153
    %2379 = vmatprep.subr.bf16.mxu0 %v1158
    %2380 = vmatpush1.bf16.msra.mxu0 %v1157
    %2381 = vmatprep.mubr.bf16.mxu0 %v2307
    %2382 = vmatmul.mubr.bf16.gmra.mrb[0].mxu0 %v2306
    %v2383 = vpop.f32.mrb[0].mxu0
    %v2384 = vadd.f32 %v527, %v2383
    %v2385 = vpop.f32.mrb[0].mxu0
    %v2386 = vadd.f32 %v531, %v2385
    %v2387 = vpop.f32.mrb[0].mxu0
    %v2388 = vpop.f32.mrb[0].mxu0
    %2389 = vdwg.mxu0
    %v2390 = vmul.f32 %v2343, 0.5
    %v2391 = vtanh.pop %v2390
    %v2392 = vmul.f32 %v2391, 0.5
    %v2393 = vadd.f32 %v2392, 0.5
    %v2394 = vmul.f32 %v2345, 0.5
    %v2395 = vtanh.pop %v2394
    %v2396 = vmul.f32 %v2395, 0.5
    %v2397 = vadd.f32 %v2396, 0.5
    %v2398 = vtanh.pop %v2384
    %v2399 = vmul.f32 %v2386, 0.5
    %v2400 = vtanh.pop %v2399
    %v2401 = vmul.f32 %v2400, 0.5
    %v2402 = vadd.f32 %v2401, 0.5
    %v2403 = vmul.f32 %v2397, %v2188
    %v2404 = vmul.f32 %v2393, %v2398
    %v2405 = vadd.f32 %v2403, %v2404
    %v2406 = vtanh.pop %v2405
    %v2407 = vmul.f32 %v2402, %v2406
    %vm2408 = vcmp.eq.s32.totalorder %v536, 5
    %v2409 = vsel %vm2408, 1, 0
    %2410 = vset.pattern.permute.xlu0 0
    %2411 = vperm.xlu0 %2410, %v2409
    %v2412 = vpop.permute.xlu0 %2411
    %vm2413 = vcmp.eq.s32.totalorder %v2412, 1
    %v2414 = vsel %vm2413, %v2407, %v2197
    %v2415 = vld [vmem:[#allocation2 + $0xc0] sm:$0xff]
    %v2416 = vld [vmem:[#allocation2 + $0xc8] sm:$0xff]
    %v2417 = vld [vmem:[#allocation2 + $0xd0] sm:$0xff]
    %v2418 = vld [vmem:[#allocation2 + $0xd8] sm:$0xff]
    %2419 = vmatprep.subr.bf16.mxu0 %v670
    %2420 = vmatpush1.bf16.msra.mxu0 %v669
    %2421 = vmatprep.subr.bf16.mxu0 %v674
    %2422 = vmatpush1.bf16.msra.mxu0 %v673
    %2423 = vmatprep.subr.bf16.mxu0 %v678
    %2424 = vmatpush1.bf16.msra.mxu0 %v677
    %2425 = vmatprep.subr.bf16.mxu0 %v682
    %2426 = vmatpush1.bf16.msra.mxu0 %v681
    %2427 = vmatprep.subr.bf16.mxu0 %v686
    %2428 = vmatpush1.bf16.msra.mxu0 %v685
    %2429 = vmatprep.subr.bf16.mxu0 %v690
    %2430 = vmatpush1.bf16.msra.mxu0 %v689
    %2431 = vmatprep.subr.bf16.mxu0 %v694
    %2432 = vmatpush1.bf16.msra.mxu0 %v693
    %2433 = vmatprep.subr.bf16.mxu0 %v698
    %2434 = vmatpush1.bf16.msra.mxu0 %v697
    %2435 = vmatprep.subr.bf16.mxu0 0
    %2436 = vmatpush1.bf16.msra.mxu0 0
    %2437 = vmatprep.subr.bf16.mxu0 0
    %2438 = vmatpush1.bf16.msra.mxu0 0
    %2439 = vmatprep.subr.bf16.mxu0 0
    %2440 = vmatpush1.bf16.msra.mxu0 0
    %2441 = vmatprep.subr.bf16.mxu0 0
    %2442 = vmatpush1.bf16.msra.mxu0 0
    %2443 = vmatprep.subr.bf16.mxu0 0
    %2444 = vmatpush1.bf16.msra.mxu0 0
    %2445 = vmatprep.subr.bf16.mxu0 0
    %2446 = vmatpush1.bf16.msra.mxu0 0
    %2447 = vmatprep.subr.bf16.mxu0 0
    %2448 = vmatpush1.bf16.msra.mxu0 0
    %2449 = vmatprep.subr.bf16.mxu0 0
    %2450 = vmatpush1.bf16.msra.mxu0 0
    %2451 = vmatprep.mubr.bf16.mxu0 0
    %2452 = vmatmul.mubr.bf16.gmra.mrb[0].mxu0 %v2306
    %v2453 = vpop.f32.mrb[0].mxu0
    %v2454 = vadd.f32 0.0, %v2453
    %v2455 = vpop.f32.mrb[0].mxu0
    %v2456 = vadd.f32 0.0, %v2455
    %v2457 = vpop.f32.mrb[0].mxu0
    %v2458 = vpop.f32.mrb[0].mxu0
    %2459 = vdwg.mxu0
    %2460 = vmatprep.subr.bf16.mxu0 %v672
    %2461 = vmatpush1.bf16.msra.mxu0 %v671
    %2462 = vmatprep.subr.bf16.mxu0 %v676
    %2463 = vmatpush1.bf16.msra.mxu0 %v675
    %2464 = vmatprep.subr.bf16.mxu0 %v680
    %2465 = vmatpush1.bf16.msra.mxu0 %v679
    %2466 = vmatprep.subr.bf16.mxu0 %v684
    %2467 = vmatpush1.bf16.msra.mxu0 %v683
    %2468 = vmatprep.subr.bf16.mxu0 %v688
    %2469 = vmatpush1.bf16.msra.mxu0 %v687
    %2470 = vmatprep.subr.bf16.mxu0 %v692
    %2471 = vmatpush1.bf16.msra.mxu0 %v691
    %2472 = vmatprep.subr.bf16.mxu0 %v696
    %2473 = vmatpush1.bf16.msra.mxu0 %v695
    %2474 = vmatprep.subr.bf16.mxu0 %v700
    %2475 = vmatpush1.bf16.msra.mxu0 %v699
    %2476 = vmatprep.subr.bf16.mxu0 0
    %2477 = vmatpush1.bf16.msra.mxu0 0
    %2478 = vmatprep.subr.bf16.mxu0 0
    %2479 = vmatpush1.bf16.msra.mxu0 0
    %2480 = vmatprep.subr.bf16.mxu0 0
    %2481 = vmatpush1.bf16.msra.mxu0 0
    %2482 = vmatprep.subr.bf16.mxu0 0
    %2483 = vmatpush1.bf16.msra.mxu0 0
    %2484 = vmatprep.subr.bf16.mxu0 0
    %2485 = vmatpush1.bf16.msra.mxu0 0
    %2486 = vmatprep.subr.bf16.mxu0 0
    %2487 = vmatpush1.bf16.msra.mxu0 0
    %2488 = vmatprep.subr.bf16.mxu0 0
    %2489 = vmatpush1.bf16.msra.mxu0 0
    %2490 = vmatprep.subr.bf16.mxu0 0
    %2491 = vmatpush1.bf16.msra.mxu0 0
    %2492 = vmatprep.mubr.bf16.mxu0 0
    %2493 = vmatmul.mubr.bf16.gmra.mrb[0].mxu0 %v2306
    %v2494 = vpop.f32.mrb[0].mxu0
    %v2495 = vadd.f32 0.0, %v2494
    %v2496 = vpop.f32.mrb[0].mxu0
    %v2497 = vadd.f32 0.0, %v2496
    %v2498 = vpop.f32.mrb[0].mxu0
    %v2499 = vpop.f32.mrb[0].mxu0
    %2500 = vdwg.mxu0
    %v2501 = vadd.f32 %v2415, %v2454
    %v2502 = vadd.f32 %v2416, %v2456
    %v2503 = vadd.f32 %v2417, %v2495
    %v2504 = vadd.f32 %v2418, %v2497
    %v2505 = vmul.f32 %v2501, 0.5
    %v2506 = vtanh.pop %v2505
    %v2507 = vmul.f32 %v2506, 0.5
    %v2508 = vadd.f32 %v2507, 0.5
    %v2509 = vmul.f32 %v2502, 0.5
    %v2510 = vtanh.pop %v2509
    %v2511 = vmul.f32 %v2510, 0.5
    %v2512 = vadd.f32 %v2511, 0.5
    %v2513 = vtanh.pop %v2503
    %v2514 = vmul.f32 %v2504, 0.5
    %v2515 = vtanh.pop %v2514
    %v2516 = vmul.f32 %v2515, 0.5
    %v2517 = vadd.f32 %v2516, 0.5
    %v2518 = vmul.f32 %v2512, %v2303
    %v2519 = vmul.f32 %v2508, %v2513
    %v2520 = vadd.f32 %v2518, %v2519
    %v2521 = vtanh.pop %v2520
    %v2522 = vmul.f32 %v2517, %v2521
    %v2523 = vpack.c.bf16 %v2522, %v2522
    %v2524 = vpack.c.bf16 %v2407, %v2407
    %2525 = vmatprep.subr.bf16.mxu0 %v1096
    %2526 = vmatpush1.bf16.msra.mxu0 %v1095
    %2527 = vmatprep.subr.bf16.mxu0 %v1100
    %2528 = vmatpush1.bf16.msra.mxu0 %v1099
    %2529 = vmatprep.subr.bf16.mxu0 %v1104
    %2530 = vmatpush1.bf16.msra.mxu0 %v1103
    %2531 = vmatprep.subr.bf16.mxu0 %v1108
    %2532 = vmatpush1.bf16.msra.mxu0 %v1107
    %2533 = vmatprep.subr.bf16.mxu0 %v1112
    %2534 = vmatpush1.bf16.msra.mxu0 %v1111
    %2535 = vmatprep.subr.bf16.mxu0 %v1116
    %2536 = vmatpush1.bf16.msra.mxu0 %v1115
    %2537 = vmatprep.subr.bf16.mxu0 %v1120
    %2538 = vmatpush1.bf16.msra.mxu0 %v1119
    %2539 = vmatprep.subr.bf16.mxu0 %v1124
    %2540 = vmatpush1.bf16.msra.mxu0 %v1123
    %2541 = vmatprep.subr.bf16.mxu0 %v1128
    %2542 = vmatpush1.bf16.msra.mxu0 %v1127
    %2543 = vmatprep.subr.bf16.mxu0 %v1132
    %2544 = vmatpush1.bf16.msra.mxu0 %v1131
    %2545 = vmatprep.subr.bf16.mxu0 %v1136
    %2546 = vmatpush1.bf16.msra.mxu0 %v1135
    %2547 = vmatprep.subr.bf16.mxu0 %v1140
    %2548 = vmatpush1.bf16.msra.mxu0 %v1139
    %2549 = vmatprep.subr.bf16.mxu0 %v1144
    %2550 = vmatpush1.bf16.msra.mxu0 %v1143
    %2551 = vmatprep.subr.bf16.mxu0 %v1148
    %2552 = vmatpush1.bf16.msra.mxu0 %v1147
    %2553 = vmatprep.subr.bf16.mxu0 %v1152
    %2554 = vmatpush1.bf16.msra.mxu0 %v1151
    %2555 = vmatprep.subr.bf16.mxu0 %v1156
    %2556 = vmatpush1.bf16.msra.mxu0 %v1155
    %2557 = vmatprep.mubr.bf16.mxu0 %v2524
    %2558 = vmatmul.mubr.bf16.gmra.mrb[0].mxu0 %v2523
    %v2559 = vpop.f32.mrb[0].mxu0
    %v2560 = vadd.f32 %v519, %v2559
    %v2561 = vpop.f32.mrb[0].mxu0
    %v2562 = vadd.f32 %v523, %v2561
    %v2563 = vpop.f32.mrb[0].mxu0
    %v2564 = vpop.f32.mrb[0].mxu0
    %2565 = vdwg.mxu0
    %2566 = vmatprep.subr.bf16.mxu0 %v1098
    %2567 = vmatpush1.bf16.msra.mxu0 %v1097
    %2568 = vmatprep.subr.bf16.mxu0 %v1102
    %2569 = vmatpush1.bf16.msra.mxu0 %v1101
    %2570 = vmatprep.subr.bf16.mxu0 %v1106
    %2571 = vmatpush1.bf16.msra.mxu0 %v1105
    %2572 = vmatprep.subr.bf16.mxu0 %v1110
    %2573 = vmatpush1.bf16.msra.mxu0 %v1109
    %2574 = vmatprep.subr.bf16.mxu0 %v1114
    %2575 = vmatpush1.bf16.msra.mxu0 %v1113
    %2576 = vmatprep.subr.bf16.mxu0 %v1118
    %2577 = vmatpush1.bf16.msra.mxu0 %v1117
    %2578 = vmatprep.subr.bf16.mxu0 %v1122
    %2579 = vmatpush1.bf16.msra.mxu0 %v1121
    %2580 = vmatprep.subr.bf16.mxu0 %v1126
    %2581 = vmatpush1.bf16.msra.mxu0 %v1125
    %2582 = vmatprep.subr.bf16.mxu0 %v1130
    %2583 = vmatpush1.bf16.msra.mxu0 %v1129
    %2584 = vmatprep.subr.bf16.mxu0 %v1134
    %2585 = vmatpush1.bf16.msra.mxu0 %v1133
    %2586 = vmatprep.subr.bf16.mxu0 %v1138
    %2587 = vmatpush1.bf16.msra.mxu0 %v1137
    %2588 = vmatprep.subr.bf16.mxu0 %v1142
    %2589 = vmatpush1.bf16.msra.mxu0 %v1141
    %2590 = vmatprep.subr.bf16.mxu0 %v1146
    %2591 = vmatpush1.bf16.msra.mxu0 %v1145
    %2592 = vmatprep.subr.bf16.mxu0 %v1150
    %2593 = vmatpush1.bf16.msra.mxu0 %v1149
    %2594 = vmatprep.subr.bf16.mxu0 %v1154
    %2595 = vmatpush1.bf16.msra.mxu0 %v1153
    %2596 = vmatprep.subr.bf16.mxu0 %v1158
    %2597 = vmatpush1.bf16.msra.mxu0 %v1157
    %2598 = vmatprep.mubr.bf16.mxu0 %v2524
    %2599 = vmatmul.mubr.bf16.gmra.mrb[0].mxu0 %v2523
    %v2600 = vpop.f32.mrb[0].mxu0
    %v2601 = vadd.f32 %v527, %v2600
    %v2602 = vpop.f32.mrb[0].mxu0
    %v2603 = vadd.f32 %v531, %v2602
    %v2604 = vpop.f32.mrb[0].mxu0
    %v2605 = vpop.f32.mrb[0].mxu0
    %2606 = vdwg.mxu0
    %v2607 = vmul.f32 %v2560, 0.5
    %v2608 = vtanh.pop %v2607
    %v2609 = vmul.f32 %v2608, 0.5
    %v2610 = vadd.f32 %v2609, 0.5
    %v2611 = vmul.f32 %v2562, 0.5
    %v2612 = vtanh.pop %v2611
    %v2613 = vmul.f32 %v2612, 0.5
    %v2614 = vadd.f32 %v2613, 0.5
    %v2615 = vtanh.pop %v2601
    %v2616 = vmul.f32 %v2603, 0.5
    %v2617 = vtanh.pop %v2616
    %v2618 = vmul.f32 %v2617, 0.5
    %v2619 = vadd.f32 %v2618, 0.5
    %v2620 = vmul.f32 %v2614, %v2405
    %v2621 = vmul.f32 %v2610, %v2615
    %v2622 = vadd.f32 %v2620, %v2621
    %v2623 = vtanh.pop %v2622
    %v2624 = vmul.f32 %v2619, %v2623
    %vm2625 = vcmp.eq.s32.totalorder %v536, 6
    %v2626 = vsel %vm2625, 1, 0
    %2627 = vset.pattern.permute.xlu0 0
    %2628 = vperm.xlu0 %2627, %v2626
    %v2629 = vpop.permute.xlu0 %2628
    %vm2630 = vcmp.eq.s32.totalorder %v2629, 1
    %v2631 = vsel %vm2630, %v2624, %v2414
    %v2632 = vld [vmem:[#allocation2 + $0xe0] sm:$0xff]
    %v2633 = vld [vmem:[#allocation2 + $0xe8] sm:$0xff]
    %v2634 = vld [vmem:[#allocation2 + $0xf0] sm:$0xff]
    %v2635 = vld [vmem:[#allocation2 + $0xf8] sm:$0xff]
    %2636 = vmatprep.subr.bf16.mxu0 %v670
    %2637 = vmatpush1.bf16.msra.mxu0 %v669
    %2638 = vmatprep.subr.bf16.mxu0 %v674
    %2639 = vmatpush1.bf16.msra.mxu0 %v673
    %2640 = vmatprep.subr.bf16.mxu0 %v678
    %2641 = vmatpush1.bf16.msra.mxu0 %v677
    %2642 = vmatprep.subr.bf16.mxu0 %v682
    %2643 = vmatpush1.bf16.msra.mxu0 %v681
    %2644 = vmatprep.subr.bf16.mxu0 %v686
    %2645 = vmatpush1.bf16.msra.mxu0 %v685
    %2646 = vmatprep.subr.bf16.mxu0 %v690
    %2647 = vmatpush1.bf16.msra.mxu0 %v689
    %2648 = vmatprep.subr.bf16.mxu0 %v694
    %2649 = vmatpush1.bf16.msra.mxu0 %v693
    %2650 = vmatprep.subr.bf16.mxu0 %v698
    %2651 = vmatpush1.bf16.msra.mxu0 %v697
    %2652 = vmatprep.subr.bf16.mxu0 0
    %2653 = vmatpush1.bf16.msra.mxu0 0
    %2654 = vmatprep.subr.bf16.mxu0 0
    %2655 = vmatpush1.bf16.msra.mxu0 0
    %2656 = vmatprep.subr.bf16.mxu0 0
    %2657 = vmatpush1.bf16.msra.mxu0 0
    %2658 = vmatprep.subr.bf16.mxu0 0
    %2659 = vmatpush1.bf16.msra.mxu0 0
    %2660 = vmatprep.subr.bf16.mxu0 0
    %2661 = vmatpush1.bf16.msra.mxu0 0
    %2662 = vmatprep.subr.bf16.mxu0 0
    %2663 = vmatpush1.bf16.msra.mxu0 0
    %2664 = vmatprep.subr.bf16.mxu0 0
    %2665 = vmatpush1.bf16.msra.mxu0 0
    %2666 = vmatprep.subr.bf16.mxu0 0
    %2667 = vmatpush1.bf16.msra.mxu0 0
    %2668 = vmatprep.mubr.bf16.mxu0 0
    %2669 = vmatmul.mubr.bf16.gmra.mrb[0].mxu0 %v2523
    %v2670 = vpop.f32.mrb[0].mxu0
    %v2671 = vadd.f32 0.0, %v2670
    %v2672 = vpop.f32.mrb[0].mxu0
    %v2673 = vadd.f32 0.0, %v2672
    %v2674 = vpop.f32.mrb[0].mxu0
    %v2675 = vpop.f32.mrb[0].mxu0
    %2676 = vdwg.mxu0
    %2677 = vmatprep.subr.bf16.mxu0 %v672
    %2678 = vmatpush1.bf16.msra.mxu0 %v671
    %2679 = vmatprep.subr.bf16.mxu0 %v676
    %2680 = vmatpush1.bf16.msra.mxu0 %v675
    %2681 = vmatprep.subr.bf16.mxu0 %v680
    %2682 = vmatpush1.bf16.msra.mxu0 %v679
    %2683 = vmatprep.subr.bf16.mxu0 %v684
    %2684 = vmatpush1.bf16.msra.mxu0 %v683
    %2685 = vmatprep.subr.bf16.mxu0 %v688
    %2686 = vmatpush1.bf16.msra.mxu0 %v687
    %2687 = vmatprep.subr.bf16.mxu0 %v692
    %2688 = vmatpush1.bf16.msra.mxu0 %v691
    %2689 = vmatprep.subr.bf16.mxu0 %v696
    %2690 = vmatpush1.bf16.msra.mxu0 %v695
    %2691 = vmatprep.subr.bf16.mxu0 %v700
    %2692 = vmatpush1.bf16.msra.mxu0 %v699
    %2693 = vmatprep.subr.bf16.mxu0 0
    %2694 = vmatpush1.bf16.msra.mxu0 0
    %2695 = vmatprep.subr.bf16.mxu0 0
    %2696 = vmatpush1.bf16.msra.mxu0 0
    %2697 = vmatprep.subr.bf16.mxu0 0
    %2698 = vmatpush1.bf16.msra.mxu0 0
    %2699 = vmatprep.subr.bf16.mxu0 0
    %2700 = vmatpush1.bf16.msra.mxu0 0
    %2701 = vmatprep.subr.bf16.mxu0 0
    %2702 = vmatpush1.bf16.msra.mxu0 0
    %2703 = vmatprep.subr.bf16.mxu0 0
    %2704 = vmatpush1.bf16.msra.mxu0 0
    %2705 = vmatprep.subr.bf16.mxu0 0
    %2706 = vmatpush1.bf16.msra.mxu0 0
    %2707 = vmatprep.subr.bf16.mxu0 0
    %2708 = vmatpush1.bf16.msra.mxu0 0
    %2709 = vmatprep.mubr.bf16.mxu0 0
    %2710 = vmatmul.mubr.bf16.gmra.mrb[0].mxu0 %v2523
    %v2711 = vpop.f32.mrb[0].mxu0
    %v2712 = vadd.f32 0.0, %v2711
    %v2713 = vpop.f32.mrb[0].mxu0
    %v2714 = vadd.f32 0.0, %v2713
    %v2715 = vpop.f32.mrb[0].mxu0
    %v2716 = vpop.f32.mrb[0].mxu0
    %2717 = vdwg.mxu0
    %v2718 = vadd.f32 %v2632, %v2671
    %v2719 = vadd.f32 %v2633, %v2673
    %v2720 = vadd.f32 %v2634, %v2712
    %v2721 = vadd.f32 %v2635, %v2714
    %v2722 = vmul.f32 %v2718, 0.5
    %v2723 = vtanh.pop %v2722
    %v2724 = vmul.f32 %v2723, 0.5
    %v2725 = vadd.f32 %v2724, 0.5
    %v2726 = vmul.f32 %v2719, 0.5
    %v2727 = vtanh.pop %v2726
    %v2728 = vmul.f32 %v2727, 0.5
    %v2729 = vadd.f32 %v2728, 0.5
    %v2730 = vtanh.pop %v2720
    %v2731 = vmul.f32 %v2721, 0.5
    %v2732 = vtanh.pop %v2731
    %v2733 = vmul.f32 %v2732, 0.5
    %v2734 = vadd.f32 %v2733, 0.5
    %v2735 = vmul.f32 %v2729, %v2520
    %v2736 = vmul.f32 %v2725, %v2730
    %v2737 = vadd.f32 %v2735, %v2736
    %v2738 = vtanh.pop %v2737
    %v2739 = vmul.f32 %v2734, %v2738
    %v2740 = vpack.c.bf16 %v2739, %v2739
    %v2741 = vpack.c.bf16 %v2624, %v2624
    %2742 = vmatprep.subr.bf16.mxu0 %v1096
    %2743 = vmatpush1.bf16.msra.mxu0 %v1095
    %2744 = vmatprep.subr.bf16.mxu0 %v1100
    %2745 = vmatpush1.bf16.msra.mxu0 %v1099
    %2746 = vmatprep.subr.bf16.mxu0 %v1104
    %2747 = vmatpush1.bf16.msra.mxu0 %v1103
    %2748 = vmatprep.subr.bf16.mxu0 %v1108
    %2749 = vmatpush1.bf16.msra.mxu0 %v1107
    %2750 = vmatprep.subr.bf16.mxu0 %v1112
    %2751 = vmatpush1.bf16.msra.mxu0 %v1111
    %2752 = vmatprep.subr.bf16.mxu0 %v1116
    %2753 = vmatpush1.bf16.msra.mxu0 %v1115
    %2754 = vmatprep.subr.bf16.mxu0 %v1120
    %2755 = vmatpush1.bf16.msra.mxu0 %v1119
    %2756 = vmatprep.subr.bf16.mxu0 %v1124
    %2757 = vmatpush1.bf16.msra.mxu0 %v1123
    %2758 = vmatprep.subr.bf16.mxu0 %v1128
    %2759 = vmatpush1.bf16.msra.mxu0 %v1127
    %2760 = vmatprep.subr.bf16.mxu0 %v1132
    %2761 = vmatpush1.bf16.msra.mxu0 %v1131
    %2762 = vmatprep.subr.bf16.mxu0 %v1136
    %2763 = vmatpush1.bf16.msra.mxu0 %v1135
    %2764 = vmatprep.subr.bf16.mxu0 %v1140
    %2765 = vmatpush1.bf16.msra.mxu0 %v1139
    %2766 = vmatprep.subr.bf16.mxu0 %v1144
    %2767 = vmatpush1.bf16.msra.mxu0 %v1143
    %2768 = vmatprep.subr.bf16.mxu0 %v1148
    %2769 = vmatpush1.bf16.msra.mxu0 %v1147
    %2770 = vmatprep.subr.bf16.mxu0 %v1152
    %2771 = vmatpush1.bf16.msra.mxu0 %v1151
    %2772 = vmatprep.subr.bf16.mxu0 %v1156
    %2773 = vmatpush1.bf16.msra.mxu0 %v1155
    %2774 = vmatprep.mubr.bf16.mxu0 %v2741
    %2775 = vmatmul.mubr.bf16.gmra.mrb[0].mxu0 %v2740
    %v2776 = vpop.f32.mrb[0].mxu0
    %v2777 = vadd.f32 %v519, %v2776
    %v2778 = vpop.f32.mrb[0].mxu0
    %v2779 = vadd.f32 %v523, %v2778
    %v2780 = vpop.f32.mrb[0].mxu0
    %v2781 = vpop.f32.mrb[0].mxu0
    %2782 = vdwg.mxu0
    %2783 = vmatprep.subr.bf16.mxu0 %v1098
    %2784 = vmatpush1.bf16.msra.mxu0 %v1097
    %2785 = vmatprep.subr.bf16.mxu0 %v1102
    %2786 = vmatpush1.bf16.msra.mxu0 %v1101
    %2787 = vmatprep.subr.bf16.mxu0 %v1106
    %2788 = vmatpush1.bf16.msra.mxu0 %v1105
    %2789 = vmatprep.subr.bf16.mxu0 %v1110
    %2790 = vmatpush1.bf16.msra.mxu0 %v1109
    %2791 = vmatprep.subr.bf16.mxu0 %v1114
    %2792 = vmatpush1.bf16.msra.mxu0 %v1113
    %2793 = vmatprep.subr.bf16.mxu0 %v1118
    %2794 = vmatpush1.bf16.msra.mxu0 %v1117
    %2795 = vmatprep.subr.bf16.mxu0 %v1122
    %2796 = vmatpush1.bf16.msra.mxu0 %v1121
    %2797 = vmatprep.subr.bf16.mxu0 %v1126
    %2798 = vmatpush1.bf16.msra.mxu0 %v1125
    %2799 = vmatprep.subr.bf16.mxu0 %v1130
    %2800 = vmatpush1.bf16.msra.mxu0 %v1129
    %2801 = vmatprep.subr.bf16.mxu0 %v1134
    %2802 = vmatpush1.bf16.msra.mxu0 %v1133
    %2803 = vmatprep.subr.bf16.mxu0 %v1138
    %2804 = vmatpush1.bf16.msra.mxu0 %v1137
    %2805 = vmatprep.subr.bf16.mxu0 %v1142
    %2806 = vmatpush1.bf16.msra.mxu0 %v1141
    %2807 = vmatprep.subr.bf16.mxu0 %v1146
    %2808 = vmatpush1.bf16.msra.mxu0 %v1145
    %2809 = vmatprep.subr.bf16.mxu0 %v1150
    %2810 = vmatpush1.bf16.msra.mxu0 %v1149
    %2811 = vmatprep.subr.bf16.mxu0 %v1154
    %2812 = vmatpush1.bf16.msra.mxu0 %v1153
    %2813 = vmatprep.subr.bf16.mxu0 %v1158
    %2814 = vmatpush1.bf16.msra.mxu0 %v1157
    %2815 = vmatprep.mubr.bf16.mxu0 %v2741
    %2816 = vmatmul.mubr.bf16.gmra.mrb[0].mxu0 %v2740
    %v2817 = vpop.f32.mrb[0].mxu0
    %v2818 = vadd.f32 %v527, %v2817
    %v2819 = vpop.f32.mrb[0].mxu0
    %v2820 = vadd.f32 %v531, %v2819
    %v2821 = vpop.f32.mrb[0].mxu0
    %v2822 = vpop.f32.mrb[0].mxu0
    %2823 = vdwg.mxu0
    %v2824 = vmul.f32 %v2777, 0.5
    %v2825 = vtanh.pop %v2824
    %v2826 = vmul.f32 %v2825, 0.5
    %v2827 = vadd.f32 %v2826, 0.5
    %v2828 = vmul.f32 %v2779, 0.5
    %v2829 = vtanh.pop %v2828
    %v2830 = vmul.f32 %v2829, 0.5
    %v2831 = vadd.f32 %v2830, 0.5
    %v2832 = vtanh.pop %v2818
    %v2833 = vmul.f32 %v2820, 0.5
    %v2834 = vtanh.pop %v2833
    %v2835 = vmul.f32 %v2834, 0.5
    %v2836 = vadd.f32 %v2835, 0.5
    %v2837 = vmul.f32 %v2831, %v2622
    %v2838 = vmul.f32 %v2827, %v2832
    %v2839 = vadd.f32 %v2837, %v2838
    %v2840 = vtanh.pop %v2839
    %v2841 = vmul.f32 %v2836, %v2840
    %vm2842 = vcmp.eq.s32.totalorder %v536, 7
    %v2843 = vsel %vm2842, 1, 0
    %2844 = vset.pattern.permute.xlu0 0
    %2845 = vperm.xlu0 %2844, %v2843
    %v2846 = vpop.permute.xlu0 %2845
    %vm2847 = vcmp.eq.s32.totalorder %v2846, 1
    %v2848 = vsel %vm2847, %v2841, %v2631
    %v2849 = vld [vmem:[%s7] sm:$0xff]
    %v2850 = vld [vmem:[%s7 + $0x8] sm:$0xff]
    %v2851 = vld [vmem:[%s7 + $0x10] sm:$0xff]
    %v2852 = vld [vmem:[%s7 + $0x18] sm:$0xff]
    %v2853 = vld [vmem:[%s7 + $0x20] sm:$0xff]
    %v2854 = vld [vmem:[%s7 + $0x28] sm:$0xff]
    %v2855 = vld [vmem:[%s7 + $0x30] sm:$0xff]
    %v2856 = vld [vmem:[%s7 + $0x38] sm:$0xff]
    %v2857 = vld [vmem:[%s7 + $0x40] sm:$0xff]
    %v2858 = vld [vmem:[%s7 + $0x48] sm:$0xff]
    %v2859 = vld [vmem:[%s7 + $0x50] sm:$0xff]
    %v2860 = vld [vmem:[%s7 + $0x58] sm:$0xff]
    %v2861 = vld [vmem:[%s7 + $0x60] sm:$0xff]
    %v2862 = vld [vmem:[%s7 + $0x68] sm:$0xff]
    %v2863 = vld [vmem:[%s7 + $0x70] sm:$0xff]
    %v2864 = vld [vmem:[%s7 + $0x78] sm:$0xff]
    %v2865 = vld [vmem:[%s8] sm:$0x1]
    %v2867 = vlaneseq
    %v2868 = vshrl.u32 %v2867, 7
    %v2869 = vsub.s32 0, %v2868
    %v2870 = vrot.slane %v2865, %v2869
    %2872 = vmatprep.subr.mxu0 0.0
    %2873 = vmatpush1.msra.mxu0 %v2849
    %2874 = vmatprep.subr.mxu0 0.0
    %2875 = vmatpush1.msra.mxu0 %v2850
    %2876 = vmatprep.subr.mxu0 0.0
    %2877 = vmatpush1.msra.mxu0 %v2851
    %2878 = vmatprep.subr.mxu0 0.0
    %2879 = vmatpush1.msra.mxu0 %v2852
    %2880 = vmatprep.subr.mxu0 0.0
    %2881 = vmatpush1.msra.mxu0 %v2853
    %2882 = vmatprep.subr.mxu0 0.0
    %2883 = vmatpush1.msra.mxu0 %v2854
    %2884 = vmatprep.subr.mxu0 0.0
    %2885 = vmatpush1.msra.mxu0 %v2855
    %2886 = vmatprep.subr.mxu0 0.0
    %2887 = vmatpush1.msra.mxu0 %v2856
    %2888 = vmatprep.subr.mxu0 0.0
    %2889 = vmatpush1.msra.mxu0 %v2857
    %2890 = vmatprep.subr.mxu0 0.0
    %2891 = vmatpush1.msra.mxu0 %v2858
    %2892 = vmatprep.subr.mxu0 0.0
    %2893 = vmatpush1.msra.mxu0 %v2859
    %2894 = vmatprep.subr.mxu0 0.0
    %2895 = vmatpush1.msra.mxu0 %v2860
    %2896 = vmatprep.subr.mxu0 0.0
    %2897 = vmatpush1.msra.mxu0 %v2861
    %2898 = vmatprep.subr.mxu0 0.0
    %2899 = vmatpush1.msra.mxu0 %v2862
    %2900 = vmatprep.subr.mxu0 0.0
    %2901 = vmatpush1.msra.mxu0 %v2863
    %2902 = vmatprep.subr.mxu0 0.0
    %2903 = vmatpush1.msra.mxu0 %v2864
    %2904 = vmatprep.subr.mxu0 0.0
    %2905 = vmatpush1.msra.mxu0 0.0
    %2906 = vmatprep.subr.mxu0 0.0
    %2907 = vmatpush1.msra.mxu0 0.0
    %2908 = vmatprep.subr.mxu0 0.0
    %2909 = vmatpush1.msra.mxu0 0.0
    %2910 = vmatprep.subr.mxu0 0.0
    %2911 = vmatpush1.msra.mxu0 0.0
    %2912 = vmatprep.subr.mxu0 0.0
    %2913 = vmatpush1.msra.mxu0 0.0
    %2914 = vmatprep.subr.mxu0 0.0
    %2915 = vmatpush1.msra.mxu0 0.0
    %2916 = vmatprep.subr.mxu0 0.0
    %2917 = vmatpush1.msra.mxu0 0.0
    %2918 = vmatprep.subr.mxu0 0.0
    %2919 = vmatpush1.msra.mxu0 0.0
    %2920 = vmatprep.subr.mxu0 0.0
    %2921 = vmatpush1.msra.mxu0 0.0
    %2922 = vmatprep.subr.mxu0 0.0
    %2923 = vmatpush1.msra.mxu0 0.0
    %2924 = vmatprep.subr.mxu0 0.0
    %2925 = vmatpush1.msra.mxu0 0.0
    %2926 = vmatprep.subr.mxu0 0.0
    %2927 = vmatpush1.msra.mxu0 0.0
    %2928 = vmatprep.subr.mxu0 0.0
    %2929 = vmatpush1.msra.mxu0 0.0
    %2930 = vmatprep.subr.mxu0 0.0
    %2931 = vmatpush1.msra.mxu0 0.0
    %2932 = vmatprep.subr.mxu0 0.0
    %2933 = vmatpush1.msra.mxu0 0.0
    %2934 = vmatprep.subr.mxu0 0.0
    %2935 = vmatpush1.msra.mxu0 0.0
    %2936 = vmatprep.mubr.f32.mxu0 0.0
    %2937 = vmatmul.mubr.f32.gmra.mrb[0].mxu0 %v2848
    %v2938 = vpop.f32.mrb[0].mxu0
    %v2939 = vadd.f32 %v2870, %v2938
    %v2940 = vpop.f32.mrb[0].mxu0
    %2941 = vdwg.mxu0
    %v2942 = vmax.f32 %v2939, 0.0
    %v2943 = vld [vmem:[%s9] sm:$0xf]
    %v2944 = vld [vmem:[%s10] sm:$0x1]
    %v2946 = vlaneseq
    %v2947 = vshrl.u32 %v2946, 7
    %v2948 = vsub.s32 0, %v2947
    %v2949 = vrot.slane %v2944, %v2948
    %vm2951 = vcmask 31744
    %v2953 = vsel %vm2951, %v2942, 0
    %vm2955 = vcmask 1043456
    %v2957 = vsel %vm2955, %v2943, 0
    %2959 = vmatprep.subr.mxu0 0.0
    %2960 = vmatpush1.msra.mxu0 %v2957
    %2961 = vmatprep.subr.mxu0 0.0
    %2962 = vmatpush1.msra.mxu0 0.0
    %2963 = vmatprep.subr.mxu0 0.0
    %2964 = vmatpush1.msra.mxu0 0.0
    %2965 = vmatprep.subr.mxu0 0.0
    %2966 = vmatpush1.msra.mxu0 0.0
    %2967 = vmatprep.subr.mxu0 0.0
    %2968 = vmatpush1.msra.mxu0 0.0
    %2969 = vmatprep.subr.mxu0 0.0
    %2970 = vmatpush1.msra.mxu0 0.0
    %2971 = vmatprep.subr.mxu0 0.0
    %2972 = vmatpush1.msra.mxu0 0.0
    %2973 = vmatprep.subr.mxu0 0.0
    %2974 = vmatpush1.msra.mxu0 0.0
    %2975 = vmatprep.subr.mxu0 0.0
    %2976 = vmatpush1.msra.mxu0 0.0
    %2977 = vmatprep.subr.mxu0 0.0
    %2978 = vmatpush1.msra.mxu0 0.0
    %2979 = vmatprep.subr.mxu0 0.0
    %2980 = vmatpush1.msra.mxu0 0.0
    %2981 = vmatprep.subr.mxu0 0.0
    %2982 = vmatpush1.msra.mxu0 0.0
    %2983 = vmatprep.subr.mxu0 0.0
    %2984 = vmatpush1.msra.mxu0 0.0
    %2985 = vmatprep.subr.mxu0 0.0
    %2986 = vmatpush1.msra.mxu0 0.0
    %2987 = vmatprep.subr.mxu0 0.0
    %2988 = vmatpush1.msra.mxu0 0.0
    %2989 = vmatprep.subr.mxu0 0.0
    %2990 = vmatpush1.msra.mxu0 0.0
    %2991 = vmatprep.subr.mxu0 0.0
    %2992 = vmatpush1.msra.mxu0 0.0
    %2993 = vmatprep.subr.mxu0 0.0
    %2994 = vmatpush1.msra.mxu0 0.0
    %2995 = vmatprep.subr.mxu0 0.0
    %2996 = vmatpush1.msra.mxu0 0.0
    %2997 = vmatprep.subr.mxu0 0.0
    %2998 = vmatpush1.msra.mxu0 0.0
    %2999 = vmatprep.subr.mxu0 0.0
    %3000 = vmatpush1.msra.mxu0 0.0
    %3001 = vmatprep.subr.mxu0 0.0
    %3002 = vmatpush1.msra.mxu0 0.0
    %3003 = vmatprep.subr.mxu0 0.0
    %3004 = vmatpush1.msra.mxu0 0.0
    %3005 = vmatprep.subr.mxu0 0.0
    %3006 = vmatpush1.msra.mxu0 0.0
    %3007 = vmatprep.subr.mxu0 0.0
    %3008 = vmatpush1.msra.mxu0 0.0
    %3009 = vmatprep.subr.mxu0 0.0
    %3010 = vmatpush1.msra.mxu0 0.0
    %3011 = vmatprep.subr.mxu0 0.0
    %3012 = vmatpush1.msra.mxu0 0.0
    %3013 = vmatprep.subr.mxu0 0.0
    %3014 = vmatpush1.msra.mxu0 0.0
    %3015 = vmatprep.subr.mxu0 0.0
    %3016 = vmatpush1.msra.mxu0 0.0
    %3017 = vmatprep.subr.mxu0 0.0
    %3018 = vmatpush1.msra.mxu0 0.0
    %3019 = vmatprep.subr.mxu0 0.0
    %3020 = vmatpush1.msra.mxu0 0.0
    %3021 = vmatprep.subr.mxu0 0.0
    %3022 = vmatpush1.msra.mxu0 0.0
    %3023 = vmatprep.mubr.f32.mxu0 0.0
    %3024 = vmatmul.mubr.f32.gmra.mrb[0].mxu0 %v2953
    %v3025 = vpop.f32.mrb[0].mxu0
    %v3026 = vadd.f32 %v2949, %v3025
    %v3027 = vpop.f32.mrb[0].mxu0
    %3028 = vdwg.mxu0
    %v3029 = vmax.f32 %v3026, 0.0
    %v3030 = vld [vmem:[%s11] sm:$0xf]
    %v3031 = vld [vmem:[%s12] sm:$0x1]
    %v3033 = vlaneseq
    %v3034 = vshrl.u32 %v3033, 7
    %v3035 = vsub.s32 0, %v3034
    %v3036 = vrot.slane %v3031, %v3035
    %v3039 = vsel %vm2951, %v3029, 0
    %v3042 = vsel %vm2955, %v3030, 0
    %3044 = vmatprep.subr.mxu0 0.0
    %3045 = vmatpush1.msra.mxu0 %v3042
    %3046 = vmatprep.subr.mxu0 0.0
    %3047 = vmatpush1.msra.mxu0 0.0
    %3048 = vmatprep.subr.mxu0 0.0
    %3049 = vmatpush1.msra.mxu0 0.0
    %3050 = vmatprep.subr.mxu0 0.0
    %3051 = vmatpush1.msra.mxu0 0.0
    %3052 = vmatprep.subr.mxu0 0.0
    %3053 = vmatpush1.msra.mxu0 0.0
    %3054 = vmatprep.subr.mxu0 0.0
    %3055 = vmatpush1.msra.mxu0 0.0
    %3056 = vmatprep.subr.mxu0 0.0
    %3057 = vmatpush1.msra.mxu0 0.0
    %3058 = vmatprep.subr.mxu0 0.0
    %3059 = vmatpush1.msra.mxu0 0.0
    %3060 = vmatprep.subr.mxu0 0.0
    %3061 = vmatpush1.msra.mxu0 0.0
    %3062 = vmatprep.subr.mxu0 0.0
    %3063 = vmatpush1.msra.mxu0 0.0
    %3064 = vmatprep.subr.mxu0 0.0
    %3065 = vmatpush1.msra.mxu0 0.0
    %3066 = vmatprep.subr.mxu0 0.0
    %3067 = vmatpush1.msra.mxu0 0.0
    %3068 = vmatprep.subr.mxu0 0.0
    %3069 = vmatpush1.msra.mxu0 0.0
    %3070 = vmatprep.subr.mxu0 0.0
    %3071 = vmatpush1.msra.mxu0 0.0
    %3072 = vmatprep.subr.mxu0 0.0
    %3073 = vmatpush1.msra.mxu0 0.0
    %3074 = vmatprep.subr.mxu0 0.0
    %3075 = vmatpush1.msra.mxu0 0.0
    %3076 = vmatprep.subr.mxu0 0.0
    %3077 = vmatpush1.msra.mxu0 0.0
    %3078 = vmatprep.subr.mxu0 0.0
    %3079 = vmatpush1.msra.mxu0 0.0
    %3080 = vmatprep.subr.mxu0 0.0
    %3081 = vmatpush1.msra.mxu0 0.0
    %3082 = vmatprep.subr.mxu0 0.0
    %3083 = vmatpush1.msra.mxu0 0.0
    %3084 = vmatprep.subr.mxu0 0.0
    %3085 = vmatpush1.msra.mxu0 0.0
    %3086 = vmatprep.subr.mxu0 0.0
    %3087 = vmatpush1.msra.mxu0 0.0
    %3088 = vmatprep.subr.mxu0 0.0
    %3089 = vmatpush1.msra.mxu0 0.0
    %3090 = vmatprep.subr.mxu0 0.0
    %3091 = vmatpush1.msra.mxu0 0.0
    %3092 = vmatprep.subr.mxu0 0.0
    %3093 = vmatpush1.msra.mxu0 0.0
    %3094 = vmatprep.subr.mxu0 0.0
    %3095 = vmatpush1.msra.mxu0 0.0
    %3096 = vmatprep.subr.mxu0 0.0
    %3097 = vmatpush1.msra.mxu0 0.0
    %3098 = vmatprep.subr.mxu0 0.0
    %3099 = vmatpush1.msra.mxu0 0.0
    %3100 = vmatprep.subr.mxu0 0.0
    %3101 = vmatpush1.msra.mxu0 0.0
    %3102 = vmatprep.subr.mxu0 0.0
    %3103 = vmatpush1.msra.mxu0 0.0
    %3104 = vmatprep.subr.mxu0 0.0
    %3105 = vmatpush1.msra.mxu0 0.0
    %3106 = vmatprep.subr.mxu0 0.0
    %3107 = vmatpush1.msra.mxu0 0.0
    %3108 = vmatprep.mubr.f32.mxu0 0.0
    %3109 = vmatmul.mubr.f32.gmra.mrb[0].mxu0 %v3039
    %v3110 = vpop.f32.mrb[0].mxu0
    %v3111 = vadd.f32 %v3036, %v3110
    %v3112 = vpop.f32.mrb[0].mxu0
    %3113 = vdwg.mxu0
    %v3114 = vmax.f32 %v3111, 0.0
    %vm3115 = vcmask 64512
    %3116 = vst.msk [vmem:[#allocation9] sm:$0xff] %vm3115, %v3114
    %v3117 = vsel %vm3115, %v3114, -inf
    %3118 = vmax.xlane.f32.xlu0 %v3117
    %v3119 = vpop.xlane.xlu0 %3118
    %v3120 = vsub.f32 %v3114, %v3119
    %v3121 = vmul.f32 %v3120, 1.442695
    %v3122 = vpow.pop %v3121
    %v3123 = vsel %vm3115, %v3122, 0.0
    %3124 = vadd.xlane.f32.xlu0 %v3123
    %v3125 = vpop.xlane.xlu0 %3124
    %v3126 = vrcp.pop %v3125
    %v3127 = vmul.f32 %v3122, %v3126
    %3128 = vst.msk [vmem:[#allocation10] sm:$0xff] %vm3115, %v3127
    // Predicated region
    $region66: #{tpu_custom_call.1} parent=1 // pred_check
      _
    $region67: #{tpu_custom_call.1} parent=1 // pred_check_branch
      %3130 = sbr.rel (0) target = $region69
    $region68: #{tpu_custom_call.1} parent=1 // pred_region
      %s3132 = ssub.s32 128, 128
      %3133 = vsyncadd [#allocation5], %s3132
      %s3135 = sshll.u32 [#allocation9], 4
      %s3136 = int_to_ptr.vmem [resolvable:$true] %s3135
      %3138 = dma.vmem_to_hbm [thread:$0]  %s3136, 128, %s13, [#allocation5]
    $region69: #{tpu_custom_call.1} parent=1 // pred_fallthru
      _
    // Predicated region
    $region70: #{tpu_custom_call.1} parent=1 // pred_check
      _
    $region71: #{tpu_custom_call.1} parent=1 // pred_check_branch
      %3140 = sbr.rel (0) target = $region73
    $region72: #{tpu_custom_call.1} parent=1 // pred_region
      %s3142 = ssub.s32 128, 128
      %3143 = vsyncadd [#allocation11], %s3142
      %s3145 = sshll.u32 [#allocation10], 4
      %s3146 = int_to_ptr.vmem [resolvable:$true] %s3145
      %3148 = dma.vmem_to_hbm [thread:$0]  %s3146, 128, %s14, [#allocation11]
    $region73: #{tpu_custom_call.1} parent=1 // pred_fallthru
      _
    // Predicated region
    $region74: #{tpu_custom_call.1} parent=1 // pred_check
      _
    $region75: #{tpu_custom_call.1} parent=1 // pred_check_branch
      %3150 = sbr.rel (0) target = $region77
    $region76: #{tpu_custom_call.1} parent=1 // pred_region
      %3151 = dma.done [#allocation5], 128
    $region77: #{tpu_custom_call.1} parent=1 // pred_fallthru
      _
    // Predicated region
    $region78: #{tpu_custom_call.1} parent=1 // pred_check
      _
    $region79: #{tpu_custom_call.1} parent=1 // pred_check_branch
      %3153 = sbr.rel (0) target = $region81
    $region80: #{tpu_custom_call.1} parent=1 // pred_region
      %3154 = dma.done [#allocation11], 128
    $region81: #{tpu_custom_call.1} parent=1 // pred_fallthru
      _
    %3155 = vsyncpa [#allocation4], 1
    %3156 = vsyncpa [#allocation7], 1
    %3157 = vsyncpa [#allocation5], 1
    %3158 = vsyncpa [#allocation11], 1

</llo_original>
